<compile_context>
chip_gen: v7x
topology: tpu7x:2x2x1
jax: 0.10.0
libtpu: 0.0.40
codegen_flags: <defaults>
</compile_context>

<pallas_src>
import jax
import jax.numpy as jnp
from jax.experimental import pallas as pl
from jax.experimental.pallas import tpu as pltpu

LANES = 128  # TPU lane width; conv/head output channels are padded to this.


# ---------------------------------------------------------------------------
# Pallas kernels
# ---------------------------------------------------------------------------
def _matmul_bias_relu_kernel(a_ref, w_ref, b_ref, o_ref):
    acc = jnp.dot(a_ref[...], w_ref[...], preferred_element_type=jnp.float32)
    o_ref[...] = jnp.maximum(acc + b_ref[...], 0.0)


def matmul_bias_relu(a, w, b, tm):
    """relu(a @ w + b); a:(M,K), w:(K,N), b:(1,N); M % tm == 0, N % 128 == 0."""
    M, K = a.shape
    N = w.shape[1]
    assert M % tm == 0 and tm % 8 == 0 and N % LANES == 0
    return pl.pallas_call(
        _matmul_bias_relu_kernel,
        out_shape=jax.ShapeDtypeStruct((M, N), jnp.float32),
        grid=(M // tm,),
        in_specs=[
            pl.BlockSpec((tm, K), lambda i: (i, 0)),
            pl.BlockSpec((K, N), lambda i: (0, 0)),   # constant block -> loaded once
            pl.BlockSpec((1, N), lambda i: (0, 0)),
        ],
        out_specs=pl.BlockSpec((tm, N), lambda i: (i, 0)),
        compiler_params=pltpu.CompilerParams(dimension_semantics=("arbitrary",)),
    )(a, w, b)


def _head_kernel(x_ref, w1_ref, b1_ref, wh_ref, bh_ref, o_ref, acc_ref):
    k = pl.program_id(0)

    @pl.when(k == 0)
    def _():
        acc_ref[...] = jnp.zeros_like(acc_ref)

    # fc1 contraction, K-tiled over the grid; weight DMA pipelines with this dot.
    acc_ref[...] += jnp.dot(x_ref[...], w1_ref[...],
                            preferred_element_type=jnp.float32)

    @pl.when(k == pl.num_programs(0) - 1)
    def _():
        h = jnp.maximum(acc_ref[...] + b1_ref[...], 0.0)          # relu(fc1)
        # Fused [mu | log_std | value | zero-pad] projection, lane-dense (B,128).
        o_ref[...] = (jnp.dot(h, wh_ref[...], preferred_element_type=jnp.float32)
                      + bh_ref[...])


def head_forward(x, w1, b1, wh, bh, tk=1280):
    """x:(B,Kin) -> (B,128) = [mu | log_std | value | pad]."""
    B, Kin = x.shape
    hidden = w1.shape[1]
    Np = wh.shape[1]
    assert Kin % tk == 0 and tk % LANES == 0 and Np % LANES == 0
    return pl.pallas_call(
        _head_kernel,
        out_shape=jax.ShapeDtypeStruct((B, Np), jnp.float32),
        grid=(Kin // tk,),
        in_specs=[
            pl.BlockSpec((B, tk), lambda k: (0, k)),
            pl.BlockSpec((tk, hidden), lambda k: (k, 0)),
            pl.BlockSpec((1, hidden), lambda k: (0, 0)),
            pl.BlockSpec((hidden, Np), lambda k: (0, 0)),
            pl.BlockSpec((1, Np), lambda k: (0, 0)),
        ],
        out_specs=pl.BlockSpec((B, Np), lambda k: (0, 0)),
        scratch_shapes=[pltpu.VMEM((B, hidden), jnp.float32)],
        compiler_params=pltpu.CompilerParams(dimension_semantics=("arbitrary",)),
    )(x, w1, b1, wh, bh)


# ---------------------------------------------------------------------------
# Conv = space-to-depth im2col (light XLA glue) + Pallas GEMM (hot path)
# ---------------------------------------------------------------------------
def _s2d_im2col(x_nhwc, K, S, P):
    """Patches with column order (bi, bj, sh, sw, cin); rows ordered (b,ho,wo)."""
    B, H, W, C = x_nhwc.shape
    assert K % S == 0
    Kb = K // S
    Ho = (H + 2 * P - K) // S + 1
    Wo = (W + 2 * P - K) // S + 1
    Hp = (Ho - 1) * S + K          # minimal padded extent, divisible by S
    Wp = (Wo - 1) * S + K
    ph, pw = Hp - H - P, Wp - W - P
    assert ph >= 0 and pw >= 0
    xp = jnp.pad(x_nhwc, ((0, 0), (P, ph), (P, pw), (0, 0)))
    if S > 1:
        Hb, Wb = Hp // S, Wp // S
        xs = (xp.reshape(B, Hb, S, Wb, S, C)
                .transpose(0, 1, 3, 2, 4, 5)
                .reshape(B, Hb, Wb, S * S * C))
    else:
        xs = xp
    taps = [xs[:, i:i + Ho, j:j + Wo, :] for i in range(Kb) for j in range(Kb)]
    patches = jnp.concatenate(taps, axis=-1)        # (B, Ho, Wo, K*K*C)
    return patches.reshape(B * Ho * Wo, K * K * C), Ho, Wo


def conv2d_relu(x_nhwc, w2d, b2d, *, K, S, P, Cout, tm):
    B = x_nhwc.shape[0]
    cols, Ho, Wo = _s2d_im2col(x_nhwc, K, S, P)
    out = matmul_bias_relu(cols, w2d, b2d, tm=tm)   # (B*Ho*Wo, 128), lane-dense
    return out[:, :Cout].reshape(B, Ho, Wo, Cout)


# ---------------------------------------------------------------------------
# Parameters (torch layout) + one-time prep into kernel-friendly layout
# ---------------------------------------------------------------------------
def init_params(key, action_dim, hidden_dim=64):
    ks = jax.random.split(key, 14)

    def init(k, shape, fan_in):
        return jax.random.normal(k, shape, jnp.float32) * (1.0 / jnp.sqrt(fan_in))

    return {
        "conv1_w": init(ks[0], (32, 3, 8, 8), 3 * 8 * 8),
        "conv1_b": init(ks[1], (32,), 3 * 8 * 8),
        "conv2_w": init(ks[2], (64, 32, 4, 4), 32 * 4 * 4),
        "conv2_b": init(ks[3], (64,), 32 * 4 * 4),
        "conv3_w": init(ks[4], (64, 64, 3, 3), 64 * 3 * 3),
        "conv3_b": init(ks[5], (64,), 64 * 3 * 3),
        "fc1_w": init(ks[6], (6400, hidden_dim), 6400),      # rows in torch (C,H,W) order
        "fc1_b": init(ks[7], (1, hidden_dim), 6400),
        "fc_mu_w": init(ks[8], (hidden_dim, action_dim), hidden_dim),
        "fc_mu_b": init(ks[9], (1, action_dim), hidden_dim),
        "fc_ls_w": init(ks[10], (hidden_dim, action_dim), hidden_dim),
        "fc_ls_b": init(ks[11], (1, action_dim), hidden_dim),
        "critic_w": init(ks[12], (hidden_dim, 1), hidden_dim),
        "critic_b": init(ks[13], (1, 1), hidden_dim),
    }


def _prep_conv(w_oihw, b, S):
    """(Cout,Cin,K,K) -> (K*K*Cin, 128) with rows ordered (bi,bj,sh,sw,cin)."""
    Cout, Cin, K, _ = w_oihw.shape
    Kb = K // S
    w2d = (w_oihw.reshape(Cout, Cin, Kb, S, Kb, S)
                 .transpose(2, 4, 3, 5, 1, 0)
                 .reshape(K * K * Cin, Cout))
    w2d = jnp.pad(w2d, ((0, 0), (0, LANES - Cout)))
    b2d = jnp.pad(b.reshape(1, Cout), ((0, 0), (0, LANES - Cout)))
    return w2d, b2d


def prepare_params(params, hidden_dim):
    """One-time reshape/pad of weights into the layouts the kernels consume."""
    A = params["fc_mu_w"].shape[1]
    nh = 2 * A + 1
    assert nh <= LANES
    p = {}
    p["conv1_w"], p["conv1_b"] = _prep_conv(params["conv1_w"], params["conv1_b"], S=4)
    p["conv2_w"], p["conv2_b"] = _prep_conv(params["conv2_w"], params["conv2_b"], S=2)
    p["conv3_w"], p["conv3_b"] = _prep_conv(params["conv3_w"], params["conv3_b"], S=1)
    # fc1: permute rows from torch (C,H,W) flatten order to NHWC (H,W,C) order
    # so activations can stay NHWC (no per-forward transpose). 6400 = 64*10*10.
    C3, Hf, Wf = 64, 10, 10
    p["fc1_w"] = (params["fc1_w"].reshape(C3, Hf, Wf, hidden_dim)
                                 .transpose(1, 2, 0, 3)
                                 .reshape(C3 * Hf * Wf, hidden_dim))
    p["fc1_b"] = params["fc1_b"].reshape(1, hidden_dim)
    # Fused head projection: [mu | log_std | value], zero-padded to 128 lanes.
    wh = jnp.concatenate([params["fc_mu_w"], params["fc_ls_w"], params["critic_w"]], axis=1)
    bh = jnp.concatenate([params["fc_mu_b"], params["fc_ls_b"], params["critic_b"]], axis=1)
    p["head_w"] = jnp.pad(wh, ((0, 0), (0, LANES - nh)))
    p["head_b"] = jnp.pad(bh.reshape(1, nh), ((0, 0), (0, LANES - nh)))
    return p


# ---------------------------------------------------------------------------
# Forward pass
# ---------------------------------------------------------------------------
def ppo_forward(prep, x_nchw, action_dim):
    # NCHW (PyTorch) -> NHWC once at entry; activations stay NHWC after that.
    x = jnp.transpose(x_nchw, (0, 2, 3, 1))
    x = conv2d_relu(x, prep["conv1_w"], prep["conv1_b"], K=8, S=4, P=3, Cout=32, tm=200)
    x = conv2d_relu(x, prep["conv2_w"], prep["conv2_b"], K=4, S=2, P=1, Cout=64, tm=200)
    x = conv2d_relu(x, prep["conv3_w"], prep["conv3_b"], K=3, S=1, P=1, Cout=64, tm=200)
    B = x.shape[0]
    feat = x.reshape(B, -1)           # NHWC flatten; fc1_w rows permuted to match torch
    out = head_forward(feat, prep["fc1_w"], prep["fc1_b"],
                       prep["head_w"], prep["head_b"])
    A = action_dim
    mu = out[:, :A]
    std = jnp.exp(out[:, A:2 * A])
    value = out[:, 2 * A:2 * A + 1]
    return mu, std, value


if __name__ == "__main__":
    key = jax.random.PRNGKey(0)
    pkey, xkey = jax.random.split(key)

    action_dim, hidden_dim = 6, 64
    params = init_params(pkey, action_dim, hidden_dim)
    prep = prepare_params(params, hidden_dim)   # one-time weight prep (outside jit)

    # Input: batch=2, 3 channels, 80x80 (fc1 in-features 6400 == 64*10*10 forces 80x80)
    x = jax.random.normal(xkey, (2, 3, 80, 80), jnp.float32)

    fwd = jax.jit(ppo_forward, static_argnums=2)
    mu, std, value = fwd(prep, x, action_dim)
    jax.block_until_ready((mu, std, value))

    assert mu.shape == (2, action_dim)
    assert std.shape == (2, action_dim)
    assert value.shape == (2, 1)
    assert bool(jnp.all(std > 0.0))
    assert bool(jnp.all(jnp.isfinite(mu))) and bool(jnp.all(jnp.isfinite(value)))

    print("KERNEL_OK")
</pallas_src>

<mosaic_0001>
module attributes {stable_mosaic.version = 11 : i64} {
  func.func @_matmul_bias_relu_kernel(%arg0: i32, %arg1: memref<200x192xf32, #tpu.memory_space<vmem>>, %arg2: memref<192x128xf32, #tpu.memory_space<vmem>>, %arg3: memref<1x128xf32, #tpu.memory_space<vmem>>, %arg4: memref<200x128xf32, #tpu.memory_space<vmem>>) attributes {dimension_semantics = [#tpu.dimension_semantics<arbitrary>], iteration_bounds = array<i64: 4>, scalar_prefetch = 0 : i64, scratch_operands = 0 : i64, tpu.core_type = #tpu.core_type<tc>, window_params = [{transform_indices = @transform_0, window_bounds = array<i64: 200, 192>}, {pipeline_mode = #tpu.pipeline_mode<synchronous>, transform_indices = @transform_1, window_bounds = array<i64: 192, 128>}, {pipeline_mode = #tpu.pipeline_mode<synchronous>, transform_indices = @transform_2, window_bounds = array<i64: 1, 128>}, {transform_indices = @transform_3, window_bounds = array<i64: 200, 128>}]} {
    %c0 = arith.constant 0 : index
    %c0_0 = arith.constant 0 : index
    %0 = vector.load %arg1[%c0, %c0_0] : memref<200x192xf32, #tpu.memory_space<vmem>>, vector<200x192xf32>
    %c0_1 = arith.constant 0 : index
    %c0_2 = arith.constant 0 : index
    %1 = vector.load %arg2[%c0_1, %c0_2] : memref<192x128xf32, #tpu.memory_space<vmem>>, vector<192x128xf32>
    %cst = arith.constant dense<0.000000e+00> : vector<200x128xf32>
    %2 = tpu.matmul %0, %1, %cst {dimension_numbers = #tpu.dot_dimension_numbers<[1], [0], [0], [1], [0, 0, 1, 1], [], []>} : vector<200x192xf32>, vector<192x128xf32>, vector<200x128xf32> -> vector<200x128xf32>
    %c0_3 = arith.constant 0 : index
    %c0_4 = arith.constant 0 : index
    %3 = vector.load %arg3[%c0_3, %c0_4] : memref<1x128xf32, #tpu.memory_space<vmem>>, vector<1x128xf32>
    %4 = vector.broadcast %3 : vector<1x128xf32> to vector<200x128xf32>
    %5 = arith.addf %2, %4 : vector<200x128xf32>
    %cst_5 = arith.constant 0.000000e+00 : f32
    %6 = vector.broadcast %cst_5 : f32 to vector<200x128xf32>
    %7 = arith.maximumf %5, %6 : vector<200x128xf32>
    %c0_6 = arith.constant 0 : index
    %c0_7 = arith.constant 0 : index
    %8 = vector.load %arg4[%c0_6, %c0_7] : memref<200x128xf32, #tpu.memory_space<vmem>>, vector<200x128xf32>
    tpu.vector_store %arg4[%c0_6, %c0_7], %7 {strides = array<i32>} : memref<200x128xf32, #tpu.memory_space<vmem>>, vector<200x128xf32>,
    return
  }
  func.func @transform_0(%arg0: i32) -> (i32, i32) {
    %c0_i32 = arith.constant 0 : i32
    %c0_i32_0 = arith.constant 0 : i32
    return %arg0, %c0_i32 : i32, i32
  }
  func.func @transform_1(%arg0: i32) -> (i32, i32) {
    %c0_i32 = arith.constant 0 : i32
    %c0_i32_0 = arith.constant 0 : i32
    %c0_i32_1 = arith.constant 0 : i32
    return %c0_i32, %c0_i32_0 : i32, i32
  }
  func.func @transform_2(%arg0: i32) -> (i32, i32) {
    %c0_i32 = arith.constant 0 : i32
    %c0_i32_0 = arith.constant 0 : i32
    %c0_i32_1 = arith.constant 0 : i32
    return %c0_i32, %c0_i32_0 : i32, i32
  }
  func.func @transform_3(%arg0: i32) -> (i32, i32) {
    %c0_i32 = arith.constant 0 : i32
    %c0_i32_0 = arith.constant 0 : i32
    return %arg0, %c0_i32 : i32, i32
  }
}

module attributes {stable_mosaic.version = 11 : i64} {
  func.func @_matmul_bias_relu_kernel(%arg0: i32, %arg1: memref<200x512xf32, #tpu.memory_space<vmem>>, %arg2: memref<512x128xf32, #tpu.memory_space<vmem>>, %arg3: memref<1x128xf32, #tpu.memory_space<vmem>>, %arg4: memref<200x128xf32, #tpu.memory_space<vmem>>) attributes {dimension_semantics = [#tpu.dimension_semantics<arbitrary>], iteration_bounds = array<i64: 1>, scalar_prefetch = 0 : i64, scratch_operands = 0 : i64, tpu.core_type = #tpu.core_type<tc>, window_params = [{transform_indices = @transform_0, window_bounds = array<i64: 200, 512>}, {pipeline_mode = #tpu.pipeline_mode<synchronous>, transform_indices = @transform_1, window_bounds = array<i64: 512, 128>}, {pipeline_mode = #tpu.pipeline_mode<synchronous>, transform_indices = @transform_2, window_bounds = array<i64: 1, 128>}, {transform_indices = @transform_3, window_bounds = array<i64: 200, 128>}]} {
    %c0 = arith.constant 0 : index
    %c0_0 = arith.constant 0 : index
    %0 = vector.load %arg1[%c0, %c0_0] : memref<200x512xf32, #tpu.memory_space<vmem>>, vector<200x512xf32>
    %c0_1 = arith.constant 0 : index
    %c0_2 = arith.constant 0 : index
    %1 = vector.load %arg2[%c0_1, %c0_2] : memref<512x128xf32, #tpu.memory_space<vmem>>, vector<512x128xf32>
    %cst = arith.constant dense<0.000000e+00> : vector<200x128xf32>
    %2 = tpu.matmul %0, %1, %cst {dimension_numbers = #tpu.dot_dimension_numbers<[1], [0], [0], [1], [0, 0, 1, 1], [], []>} : vector<200x512xf32>, vector<512x128xf32>, vector<200x128xf32> -> vector<200x128xf32>
    %c0_3 = arith.constant 0 : index
    %c0_4 = arith.constant 0 : index
    %3 = vector.load %arg3[%c0_3, %c0_4] : memref<1x128xf32, #tpu.memory_space<vmem>>, vector<1x128xf32>
    %4 = vector.broadcast %3 : vector<1x128xf32> to vector<200x128xf32>
    %5 = arith.addf %2, %4 : vector<200x128xf32>
    %cst_5 = arith.constant 0.000000e+00 : f32
    %6 = vector.broadcast %cst_5 : f32 to vector<200x128xf32>
    %7 = arith.maximumf %5, %6 : vector<200x128xf32>
    %c0_6 = arith.constant 0 : index
    %c0_7 = arith.constant 0 : index
    %8 = vector.load %arg4[%c0_6, %c0_7] : memref<200x128xf32, #tpu.memory_space<vmem>>, vector<200x128xf32>
    tpu.vector_store %arg4[%c0_6, %c0_7], %7 {strides = array<i32>} : memref<200x128xf32, #tpu.memory_space<vmem>>, vector<200x128xf32>,
    return
  }
  func.func @transform_0(%arg0: i32) -> (i32, i32) {
    %c0_i32 = arith.constant 0 : i32
    %c0_i32_0 = arith.constant 0 : i32
    return %arg0, %c0_i32 : i32, i32
  }
  func.func @transform_1(%arg0: i32) -> (i32, i32) {
    %c0_i32 = arith.constant 0 : i32
    %c0_i32_0 = arith.constant 0 : i32
    %c0_i32_1 = arith.constant 0 : i32
    return %c0_i32, %c0_i32_0 : i32, i32
  }
  func.func @transform_2(%arg0: i32) -> (i32, i32) {
    %c0_i32 = arith.constant 0 : i32
    %c0_i32_0 = arith.constant 0 : i32
    %c0_i32_1 = arith.constant 0 : i32
    return %c0_i32, %c0_i32_0 : i32, i32
  }
  func.func @transform_3(%arg0: i32) -> (i32, i32) {
    %c0_i32 = arith.constant 0 : i32
    %c0_i32_0 = arith.constant 0 : i32
    return %arg0, %c0_i32 : i32, i32
  }
}

module attributes {stable_mosaic.version = 11 : i64} {
  func.func @_matmul_bias_relu_kernel(%arg0: i32, %arg1: memref<200x576xf32, #tpu.memory_space<vmem>>, %arg2: memref<576x128xf32, #tpu.memory_space<vmem>>, %arg3: memref<1x128xf32, #tpu.memory_space<vmem>>, %arg4: memref<200x128xf32, #tpu.memory_space<vmem>>) attributes {dimension_semantics = [#tpu.dimension_semantics<arbitrary>], iteration_bounds = array<i64: 1>, scalar_prefetch = 0 : i64, scratch_operands = 0 : i64, tpu.core_type = #tpu.core_type<tc>, window_params = [{transform_indices = @transform_0, window_bounds = array<i64: 200, 576>}, {pipeline_mode = #tpu.pipeline_mode<synchronous>, transform_indices = @transform_1, window_bounds = array<i64: 576, 128>}, {pipeline_mode = #tpu.pipeline_mode<synchronous>, transform_indices = @transform_2, window_bounds = array<i64: 1, 128>}, {transform_indices = @transform_3, window_bounds = array<i64: 200, 128>}]} {
    %c0 = arith.constant 0 : index
    %c0_0 = arith.constant 0 : index
    %0 = vector.load %arg1[%c0, %c0_0] : memref<200x576xf32, #tpu.memory_space<vmem>>, vector<200x576xf32>
    %c0_1 = arith.constant 0 : index
    %c0_2 = arith.constant 0 : index
    %1 = vector.load %arg2[%c0_1, %c0_2] : memref<576x128xf32, #tpu.memory_space<vmem>>, vector<576x128xf32>
    %cst = arith.constant dense<0.000000e+00> : vector<200x128xf32>
    %2 = tpu.matmul %0, %1, %cst {dimension_numbers = #tpu.dot_dimension_numbers<[1], [0], [0], [1], [0, 0, 1, 1], [], []>} : vector<200x576xf32>, vector<576x128xf32>, vector<200x128xf32> -> vector<200x128xf32>
    %c0_3 = arith.constant 0 : index
    %c0_4 = arith.constant 0 : index
    %3 = vector.load %arg3[%c0_3, %c0_4] : memref<1x128xf32, #tpu.memory_space<vmem>>, vector<1x128xf32>
    %4 = vector.broadcast %3 : vector<1x128xf32> to vector<200x128xf32>
    %5 = arith.addf %2, %4 : vector<200x128xf32>
    %cst_5 = arith.constant 0.000000e+00 : f32
    %6 = vector.broadcast %cst_5 : f32 to vector<200x128xf32>
    %7 = arith.maximumf %5, %6 : vector<200x128xf32>
    %c0_6 = arith.constant 0 : index
    %c0_7 = arith.constant 0 : index
    %8 = vector.load %arg4[%c0_6, %c0_7] : memref<200x128xf32, #tpu.memory_space<vmem>>, vector<200x128xf32>
    tpu.vector_store %arg4[%c0_6, %c0_7], %7 {strides = array<i32>} : memref<200x128xf32, #tpu.memory_space<vmem>>, vector<200x128xf32>,
    return
  }
  func.func @transform_0(%arg0: i32) -> (i32, i32) {
    %c0_i32 = arith.constant 0 : i32
    %c0_i32_0 = arith.constant 0 : i32
    return %arg0, %c0_i32 : i32, i32
  }
  func.func @transform_1(%arg0: i32) -> (i32, i32) {
    %c0_i32 = arith.constant 0 : i32
    %c0_i32_0 = arith.constant 0 : i32
    %c0_i32_1 = arith.constant 0 : i32
    return %c0_i32, %c0_i32_0 : i32, i32
  }
  func.func @transform_2(%arg0: i32) -> (i32, i32) {
    %c0_i32 = arith.constant 0 : i32
    %c0_i32_0 = arith.constant 0 : i32
    %c0_i32_1 = arith.constant 0 : i32
    return %c0_i32, %c0_i32_0 : i32, i32
  }
  func.func @transform_3(%arg0: i32) -> (i32, i32) {
    %c0_i32 = arith.constant 0 : i32
    %c0_i32_0 = arith.constant 0 : i32
    return %arg0, %c0_i32 : i32, i32
  }
}

module attributes {stable_mosaic.version = 11 : i64} {
  func.func @_head_kernel(%arg0: i32, %arg1: memref<2x1280xf32, #tpu.memory_space<vmem>>, %arg2: memref<1280x64xf32, #tpu.memory_space<vmem>>, %arg3: memref<1x64xf32, #tpu.memory_space<vmem>>, %arg4: memref<64x128xf32, #tpu.memory_space<vmem>>, %arg5: memref<1x128xf32, #tpu.memory_space<vmem>>, %arg6: memref<2x128xf32, #tpu.memory_space<vmem>>, %arg7: memref<2x64xf32, #tpu.memory_space<vmem>>) attributes {dimension_semantics = [#tpu.dimension_semantics<arbitrary>], iteration_bounds = array<i64: 5>, scalar_prefetch = 0 : i64, scratch_operands = 1 : i64, tpu.core_type = #tpu.core_type<tc>, window_params = [{transform_indices = @transform_0, window_bounds = array<i64: 2, 1280>}, {transform_indices = @transform_1, window_bounds = array<i64: 1280, 64>}, {pipeline_mode = #tpu.pipeline_mode<synchronous>, transform_indices = @transform_2, window_bounds = array<i64: 1, 64>}, {pipeline_mode = #tpu.pipeline_mode<synchronous>, transform_indices = @transform_3, window_bounds = array<i64: 64, 128>}, {pipeline_mode = #tpu.pipeline_mode<synchronous>, transform_indices = @transform_4, window_bounds = array<i64: 1, 128>}, {pipeline_mode = #tpu.pipeline_mode<synchronous>, transform_indices = @transform_5, window_bounds = array<i64: 2, 128>}]} {
    %c0_i32 = arith.constant 0 : i32
    %0 = arith.cmpi eq, %arg0, %c0_i32 : i32
    %1 = arith.extui %0 : i1 to i32
    %c0_i32_0 = arith.constant 0 : i32
    %2 = arith.cmpi ne, %1, %c0_i32_0 : i32
    scf.if %2 {
      %cst_9 = arith.constant 0.000000e+00 : f32
      %12 = vector.broadcast %cst_9 : f32 to vector<2x64xf32>
      %c0_10 = arith.constant 0 : index
      %c0_11 = arith.constant 0 : index
      %13 = vector.load %arg7[%c0_10, %c0_11] : memref<2x64xf32, #tpu.memory_space<vmem>>, vector<2x64xf32>
      tpu.vector_store %arg7[%c0_10, %c0_11], %12 {strides = array<i32>} : memref<2x64xf32, #tpu.memory_space<vmem>>, vector<2x64xf32>,
    } else {
    }
    %c0 = arith.constant 0 : index
    %c0_1 = arith.constant 0 : index
    %3 = vector.load %arg7[%c0, %c0_1] : memref<2x64xf32, #tpu.memory_space<vmem>>, vector<2x64xf32>
    %c0_2 = arith.constant 0 : index
    %c0_3 = arith.constant 0 : index
    %4 = vector.load %arg1[%c0_2, %c0_3] : memref<2x1280xf32, #tpu.memory_space<vmem>>, vector<2x1280xf32>
    %c0_4 = arith.constant 0 : index
    %c0_5 = arith.constant 0 : index
    %5 = vector.load %arg2[%c0_4, %c0_5] : memref<1280x64xf32, #tpu.memory_space<vmem>>, vector<1280x64xf32>
    %cst = arith.constant dense<0.000000e+00> : vector<2x64xf32>
    %6 = tpu.matmul %4, %5, %cst {dimension_numbers = #tpu.dot_dimension_numbers<[1], [0], [0], [1], [0, 0, 1, 1], [], []>} : vector<2x1280xf32>, vector<1280x64xf32>, vector<2x64xf32> -> vector<2x64xf32>
    %7 = arith.addf %3, %6 : vector<2x64xf32>
    %c0_6 = arith.constant 0 : index
    %c0_7 = arith.constant 0 : index
    %8 = vector.load %arg7[%c0_6, %c0_7] : memref<2x64xf32, #tpu.memory_space<vmem>>, vector<2x64xf32>
    tpu.vector_store %arg7[%c0_6, %c0_7], %7 {strides = array<i32>} : memref<2x64xf32, #tpu.memory_space<vmem>>, vector<2x64xf32>,
    %c4_i32 = arith.constant 4 : i32
    %9 = arith.cmpi eq, %arg0, %c4_i32 : i32
    %10 = arith.extui %9 : i1 to i32
    %c0_i32_8 = arith.constant 0 : i32
    %11 = arith.cmpi ne, %10, %c0_i32_8 : i32
    scf.if %11 {
      %c0_9 = arith.constant 0 : index
      %c0_10 = arith.constant 0 : index
      %12 = vector.load %arg7[%c0_9, %c0_10] : memref<2x64xf32, #tpu.memory_space<vmem>>, vector<2x64xf32>
      %c0_11 = arith.constant 0 : index
      %c0_12 = arith.constant 0 : index
      %13 = vector.load %arg3[%c0_11, %c0_12] : memref<1x64xf32, #tpu.memory_space<vmem>>, vector<1x64xf32>
      %14 = vector.broadcast %13 : vector<1x64xf32> to vector<2x64xf32>
      %15 = arith.addf %12, %14 : vector<2x64xf32>
      %cst_13 = arith.constant 0.000000e+00 : f32
      %16 = vector.broadcast %cst_13 : f32 to vector<2x64xf32>
      %17 = arith.maximumf %15, %16 : vector<2x64xf32>
      %c0_14 = arith.constant 0 : index
      %c0_15 = arith.constant 0 : index
      %18 = vector.load %arg4[%c0_14, %c0_15] : memref<64x128xf32, #tpu.memory_space<vmem>>, vector<64x128xf32>
      %cst_16 = arith.constant dense<0.000000e+00> : vector<2x128xf32>
      %19 = tpu.matmul %17, %18, %cst_16 {dimension_numbers = #tpu.dot_dimension_numbers<[1], [0], [0], [1], [0, 0, 1, 1], [], []>} : vector<2x64xf32>, vector<64x128xf32>, vector<2x128xf32> -> vector<2x128xf32>
      %c0_17 = arith.constant 0 : index
      %c0_18 = arith.constant 0 : index
      %20 = vector.load %arg5[%c0_17, %c0_18] : memref<1x128xf32, #tpu.memory_space<vmem>>, vector<1x128xf32>
      %21 = vector.broadcast %20 : vector<1x128xf32> to vector<2x128xf32>
      %22 = arith.addf %19, %21 : vector<2x128xf32>
      %c0_19 = arith.constant 0 : index
      %c0_20 = arith.constant 0 : index
      %23 = vector.load %arg6[%c0_19, %c0_20] : memref<2x128xf32, #tpu.memory_space<vmem>>, vector<2x128xf32>
      tpu.vector_store %arg6[%c0_19, %c0_20], %22 {strides = array<i32>} : memref<2x128xf32, #tpu.memory_space<vmem>>, vector<2x128xf32>,
    } else {
    }
    return
  }
  func.func @transform_0(%arg0: i32) -> (i32, i32) {
    %c0_i32 = arith.constant 0 : i32
    %c0_i32_0 = arith.constant 0 : i32
    return %c0_i32, %arg0 : i32, i32
  }
  func.func @transform_1(%arg0: i32) -> (i32, i32) {
    %c0_i32 = arith.constant 0 : i32
    %c0_i32_0 = arith.constant 0 : i32
    return %arg0, %c0_i32 : i32, i32
  }
  func.func @transform_2(%arg0: i32) -> (i32, i32) {
    %c0_i32 = arith.constant 0 : i32
    %c0_i32_0 = arith.constant 0 : i32
    %c0_i32_1 = arith.constant 0 : i32
    return %c0_i32, %c0_i32_0 : i32, i32
  }
  func.func @transform_3(%arg0: i32) -> (i32, i32) {
    %c0_i32 = arith.constant 0 : i32
    %c0_i32_0 = arith.constant 0 : i32
    %c0_i32_1 = arith.constant 0 : i32
    return %c0_i32, %c0_i32_0 : i32, i32
  }
  func.func @transform_4(%arg0: i32) -> (i32, i32) {
    %c0_i32 = arith.constant 0 : i32
    %c0_i32_0 = arith.constant 0 : i32
    %c0_i32_1 = arith.constant 0 : i32
    return %c0_i32, %c0_i32_0 : i32, i32
  }
  func.func @transform_5(%arg0: i32) -> (i32, i32) {
    %c0_i32 = arith.constant 0 : i32
    %c0_i32_0 = arith.constant 0 : i32
    %c0_i32_1 = arith.constant 0 : i32
    return %c0_i32, %c0_i32_0 : i32, i32
  }
}

</mosaic_0001>

<llo_original>
// kernel: ppo_forward.4
$region0: #{ppo_forward.4}
  #allocation0 [shape = 'u32[]', space=smem, size = 0x4, offset = 0x4, fixed_abs, tag = 'smem constant byte address 0x4 - core index']
  #allocation1 [shape = 'u32[144,128]{1,0:T(1,128)}', space=vmem, size = 0x12000, scoped, tag = 'internal scratch']
  %s0 = inlined_call_operand.vmem [shape: f32[800,192], index: 0, kind: input, shape index: {}]
  %s1 = inlined_call_operand.vmem [shape: f32[192,128], index: 1, kind: input, shape index: {}]
  %s2 = inlined_call_operand.vmem [shape: f32[1,128], index: 2, kind: input, shape index: {}]
  %s3 = inlined_call_operand.vmem [shape: f32[800,128], index: 3, kind: output, shape index: {}]
  %s4 = sld [smem:[#allocation0]]
  $region45: #{ppo_forward.4} parent=0
    _
  %s6 = ssub.s32 1, %s4
  %s7 = scalar_select 0, %s6, %s4
  loop: start=0, step=1, limit=6
  $region2: #{ppo_forward.4} parent=0 // loop_pre_header
    _
  $region3: #{ppo_forward.4} parent=0 // loop_header
    %s9 = sphi 0, %s13
    %p10 = scmp.ge.s32.totalorder %s9, 6
    %s19 = sphi 0, %s21
    %s22 = sphi 0, %s19
    %s23 = sphi 0, %s22
    %s39 = sphi 0, %s23
    %s43 = sphi 0, %s43
    %s45 = sphi 0, %s43
    %s46 = sphi 0, %s45
    %s60 = sphi 0, %s46
    %s64 = sphi 0, %s64
    %s66 = sphi 0, %s64
    %s67 = sphi 0, %s66
    %s81 = sphi 0, %s67
    %s87 = sphi 0, %s89
    %s90 = sphi 0, %s87
    %s91 = sphi 0, %s90
    %s107 = sphi 0, %s91
  $region4: #{ppo_forward.4} parent=0 // loop_header_branch
    %12 = sbr.rel (%p10) target = $region8
  $region5: #{ppo_forward.4} parent=0 // loop_body
    %s14 = ssub.s32 %s9, 1
    %s15 = ssub.s32 %s9, 2
    %s16 = sadd.s32 %s9, 1
    %s17 = ssub.s32 %s9, %s16
    %p18 = scmp.eq.s32.totalorder %s17, 0
    %s20 = sadd.s32 %s19, 1
    %s21 = scalar_select %p18, %s19, %s20
    %p24 = pneg %p18
    %p25 = scmp.eq.s32.totalorder %s9, 3
    %p26 = por %p24, %p25
    %p27 = scmp.ne.s32.totalorder %s19, %s22
    %p28 = scmp.eq.s32.totalorder %s9, 0
    %p29 = por %p27, %p28
    %p30 = scmp.ne.s32.totalorder %s19, %s22
    %p31 = scmp.eq.s32.totalorder %s14, 3
    %p32 = por %p30, %p31
    %p33 = scmp.ne.s32.totalorder %s22, %s23
    %p34 = scmp.eq.s32.totalorder %s14, 0
    %p35 = por %p33, %p34
    %p36 = scmp.ne.s32.totalorder %s22, %s23
    %p37 = scmp.eq.s32.totalorder %s15, 3
    %p38 = por %p36, %p37
    %p40 = scmp.ne.s32.totalorder %s23, %s39
    %p41 = scmp.eq.s32.totalorder %s15, 0
    %p42 = por %p40, %p41
    %s44 = sadd.s32 %s43, 1
    %p47 = scmp.eq.s32.totalorder %s9, 3
    %p48 = scmp.ne.s32.totalorder %s43, %s45
    %p49 = scmp.eq.s32.totalorder %s9, 0
    %p50 = por %p48, %p49
    %p51 = scmp.ne.s32.totalorder %s43, %s45
    %p52 = scmp.eq.s32.totalorder %s14, 3
    %p53 = por %p51, %p52
    %p54 = scmp.ne.s32.totalorder %s45, %s46
    %p55 = scmp.eq.s32.totalorder %s14, 0
    %p56 = por %p54, %p55
    %p57 = scmp.ne.s32.totalorder %s45, %s46
    %p58 = scmp.eq.s32.totalorder %s15, 3
    %p59 = por %p57, %p58
    %p61 = scmp.ne.s32.totalorder %s46, %s60
    %p62 = scmp.eq.s32.totalorder %s15, 0
    %p63 = por %p61, %p62
    %s65 = sadd.s32 %s64, 1
    %p68 = scmp.eq.s32.totalorder %s9, 3
    %p69 = scmp.ne.s32.totalorder %s64, %s66
    %p70 = scmp.eq.s32.totalorder %s9, 0
    %p71 = por %p69, %p70
    %p72 = scmp.ne.s32.totalorder %s64, %s66
    %p73 = scmp.eq.s32.totalorder %s14, 3
    %p74 = por %p72, %p73
    %p75 = scmp.ne.s32.totalorder %s66, %s67
    %p76 = scmp.eq.s32.totalorder %s14, 0
    %p77 = por %p75, %p76
    %p78 = scmp.ne.s32.totalorder %s66, %s67
    %p79 = scmp.eq.s32.totalorder %s15, 3
    %p80 = por %p78, %p79
    %p82 = scmp.ne.s32.totalorder %s67, %s81
    %p83 = scmp.eq.s32.totalorder %s15, 0
    %p84 = por %p82, %p83
    %s85 = ssub.s32 %s9, %s16
    %p86 = scmp.eq.s32.totalorder %s85, 0
    %s88 = sadd.s32 %s87, 1
    %s89 = scalar_select %p86, %s87, %s88
    %p92 = pneg %p86
    %p93 = scmp.eq.s32.totalorder %s9, 3
    %p94 = por %p92, %p93
    %p95 = scmp.ne.s32.totalorder %s87, %s90
    %p96 = scmp.eq.s32.totalorder %s9, 0
    %p97 = por %p95, %p96
    %p98 = scmp.ne.s32.totalorder %s87, %s90
    %p99 = scmp.eq.s32.totalorder %s14, 3
    %p100 = por %p98, %p99
    %p101 = scmp.ne.s32.totalorder %s90, %s91
    %p102 = scmp.eq.s32.totalorder %s14, 0
    %p103 = por %p101, %p102
    %p104 = scmp.ne.s32.totalorder %s90, %s91
    %p105 = scmp.eq.s32.totalorder %s15, 3
    %p106 = por %p104, %p105
    %p108 = scmp.ne.s32.totalorder %s91, %s107
    %p109 = scmp.eq.s32.totalorder %s15, 0
    %p110 = por %p108, %p109
    %p111 = scmp.le.s32.totalorder 1, %s9
    %p112 = scmp.lt.s32.totalorder %s9, 5
    %p113 = pnand %p111, %p112
    %p114 = pneg %p113
    // Predicated region
    $region9: #{ppo_forward.4} parent=5 // pred_check
      _
    $region10: #{ppo_forward.4} parent=5 // pred_check_branch
      %116 = sbr.rel (%p113) target = $region12
    $region11: #{ppo_forward.4} parent=5 // pred_region
      %s117 = ssub.s32 %s9, 1
      // Predicated region
      $region13: #{ppo_forward.4} parent=11 // pred_check
        %p118 = pneg %p56
      $region14: #{ppo_forward.4} parent=11 // pred_check_branch
        %120 = sbr.rel (%p118) target = $region16
      $region15: #{ppo_forward.4} parent=11 // pred_region
        _
      $region16: #{ppo_forward.4} parent=11 // pred_fallthru
        _
      // Predicated region
      $region17: #{ppo_forward.4} parent=11 // pred_check
        %p121 = pneg %p77
      $region18: #{ppo_forward.4} parent=11 // pred_check_branch
        %123 = sbr.rel (%p121) target = $region20
      $region19: #{ppo_forward.4} parent=11 // pred_region
        _
      $region20: #{ppo_forward.4} parent=11 // pred_fallthru
        _
    $region12: #{ppo_forward.4} parent=5 // pred_fallthru
      _
    %p124 = scmp.lt.s32.totalorder %s9, 4
    // Predicated region
    $region21: #{ppo_forward.4} parent=5 // pred_check
      %p125 = pneg %p124
    $region22: #{ppo_forward.4} parent=5 // pred_check_branch
      %127 = sbr.rel (%p125) target = $region24
    $region23: #{ppo_forward.4} parent=5 // pred_region
      // Predicated region
      $region25: #{ppo_forward.4} parent=23 // pred_check
        %p128 = pneg %p29
      $region26: #{ppo_forward.4} parent=23 // pred_check_branch
        %130 = sbr.rel (%p128) target = $region28
      $region27: #{ppo_forward.4} parent=23 // pred_region
        %s131 = smul.u32 25, %s9
        %p132 = scmp.lt.s32.totalorder %s131, 99
        %s133 = scalar_select %p132, %s131, 99
        %s134 = smul.addr %s133, 2
        %s135 = smul.addr %s134, 8
        %s136 = scalar_lea.vmem %s0, %s135
        %s137 = smul.u32 25, %s9
      $region28: #{ppo_forward.4} parent=23 // pred_fallthru
        _
    $region24: #{ppo_forward.4} parent=5 // pred_fallthru
      _
    %p138 = scmp.le.s32.totalorder 1, %s9
    %p139 = scmp.lt.s32.totalorder %s9, 5
    %p140 = pnand %p138, %p139
    %p141 = pneg %p140
    // Predicated region
    $region29: #{ppo_forward.4} parent=5 // pred_check
      _
    $region30: #{ppo_forward.4} parent=5 // pred_check_branch
      %143 = sbr.rel (%p140) target = $region32
    $region31: #{ppo_forward.4} parent=5 // pred_region
      %s144 = ssub.s32 %s9, 1
      %s145 = smul.u32 25, %s14
      %p146 = scmp.lt.s32.totalorder %s145, 99
      %s147 = scalar_select %p146, %s145, 99
      %s148 = smul.addr %s147, 2
      %s149 = smul.addr %s148, 8
      %s150 = scalar_lea.vmem %s0, %s149
      %p151 = pneg %p35
      %p152 = pneg %p32
      %p153 = pneg %p56
      %p154 = pneg %p53
      %p155 = pneg %p77
      %p156 = pneg %p74
      %p157 = pneg %p103
      %p158 = pneg %p100
      %s159 = smul.u32 25, %s14
      %p160 = scmp.lt.s32.totalorder %s159, 99
      %s161 = scalar_select %p160, %s159, 99
      %s162 = smul.addr %s161, 8
      %s163 = scalar_lea.vmem %s3, %s162
      %s164 = smul.u32 25, %s14
      %p165 = scmp.lt.s32.totalorder %s164, 99
      %s166 = scalar_select %p165, %s164, 99
      %s167 = smul.addr %s166, 2
      %s168 = smul.addr %s167, 8
      %s169 = scalar_lea.vmem %s0, %s168
      %s170 = smul.u32 25, %s14
      %s171 = smul.u32 25, %s14
      %p172 = scmp.lt.s32.totalorder %s171, 99
      %s173 = scalar_select %p172, %s171, 99
      %s174 = smul.addr %s173, 8
      %s175 = scalar_lea.vmem %s3, %s174
      %s176 = smul.u32 25, %s14
      %v177 = vld [vmem:[%s169] sm:$0xff]
      %v178 = vld [vmem:[%s169 + $0x8] sm:$0xff]
      %v179 = vld [vmem:[%s169 + $0x10] sm:$0xff]
      %v180 = vld [vmem:[%s169 + $0x18] sm:$0xff]
      %v181 = vld [vmem:[%s169 + $0x20] sm:$0xff]
      %v182 = vld [vmem:[%s169 + $0x28] sm:$0xff]
      %v183 = vld [vmem:[%s169 + $0x30] sm:$0xff]
      %v184 = vld [vmem:[%s169 + $0x38] sm:$0xff]
      %v185 = vld [vmem:[%s169 + $0x40] sm:$0xff]
      %v186 = vld [vmem:[%s169 + $0x48] sm:$0xff]
      %v187 = vld [vmem:[%s169 + $0x50] sm:$0xff]
      %v188 = vld [vmem:[%s169 + $0x58] sm:$0xff]
      %v189 = vld [vmem:[%s169 + $0x60] sm:$0xff]
      %v190 = vld [vmem:[%s169 + $0x68] sm:$0xff]
      %v191 = vld [vmem:[%s169 + $0x70] sm:$0xff]
      %v192 = vld [vmem:[%s169 + $0x78] sm:$0xff]
      %v193 = vld [vmem:[%s169 + $0x80] sm:$0xff]
      %v194 = vld [vmem:[%s169 + $0x88] sm:$0xff]
      %v195 = vld [vmem:[%s169 + $0x90] sm:$0xff]
      %v196 = vld [vmem:[%s169 + $0x98] sm:$0xff]
      %v197 = vld [vmem:[%s169 + $0xa0] sm:$0xff]
      %v198 = vld [vmem:[%s169 + $0xa8] sm:$0xff]
      %v199 = vld [vmem:[%s169 + $0xb0] sm:$0xff]
      %v200 = vld [vmem:[%s169 + $0xb8] sm:$0xff]
      %v201 = vld [vmem:[%s169 + $0xc0] sm:$0xff]
      %v202 = vld [vmem:[%s169 + $0xc8] sm:$0xff]
      %v203 = vld [vmem:[%s169 + $0xd0] sm:$0xff]
      %v204 = vld [vmem:[%s169 + $0xd8] sm:$0xff]
      %v205 = vld [vmem:[%s169 + $0xe0] sm:$0xff]
      %v206 = vld [vmem:[%s169 + $0xe8] sm:$0xff]
      %v207 = vld [vmem:[%s169 + $0xf0] sm:$0xff]
      %v208 = vld [vmem:[%s169 + $0xf8] sm:$0xff]
      %v209 = vld [vmem:[%s169 + $0x100] sm:$0xff]
      %v210 = vld [vmem:[%s169 + $0x108] sm:$0xff]
      %v211 = vld [vmem:[%s169 + $0x110] sm:$0xff]
      %v212 = vld [vmem:[%s169 + $0x118] sm:$0xff]
      %v213 = vld [vmem:[%s169 + $0x120] sm:$0xff]
      %v214 = vld [vmem:[%s169 + $0x128] sm:$0xff]
      %v215 = vld [vmem:[%s169 + $0x130] sm:$0xff]
      %v216 = vld [vmem:[%s169 + $0x138] sm:$0xff]
      %v217 = vld [vmem:[%s169 + $0x140] sm:$0xff]
      %v218 = vld [vmem:[%s169 + $0x148] sm:$0xff]
      %v219 = vld [vmem:[%s169 + $0x150] sm:$0xff]
      %v220 = vld [vmem:[%s169 + $0x158] sm:$0xff]
      %v221 = vld [vmem:[%s169 + $0x160] sm:$0xff]
      %v222 = vld [vmem:[%s169 + $0x168] sm:$0xff]
      %v223 = vld [vmem:[%s169 + $0x170] sm:$0xff]
      %v224 = vld [vmem:[%s169 + $0x178] sm:$0xff]
      %v225 = vld [vmem:[%s169 + $0x180] sm:$0xff]
      %v226 = vld [vmem:[%s169 + $0x188] sm:$0xff]
      %v227 = vld [vmem:[%s1] sm:$0xff]
      %v228 = vld [vmem:[%s1 + $0x8] sm:$0xff]
      %v229 = vld [vmem:[%s1 + $0x10] sm:$0xff]
      %v230 = vld [vmem:[%s1 + $0x18] sm:$0xff]
      %v231 = vld [vmem:[%s1 + $0x20] sm:$0xff]
      %v232 = vld [vmem:[%s1 + $0x28] sm:$0xff]
      %v233 = vld [vmem:[%s1 + $0x30] sm:$0xff]
      %v234 = vld [vmem:[%s1 + $0x38] sm:$0xff]
      %v235 = vld [vmem:[%s1 + $0x40] sm:$0xff]
      %v236 = vld [vmem:[%s1 + $0x48] sm:$0xff]
      %v237 = vld [vmem:[%s1 + $0x50] sm:$0xff]
      %v238 = vld [vmem:[%s1 + $0x58] sm:$0xff]
      %v239 = vld [vmem:[%s1 + $0x60] sm:$0xff]
      %v240 = vld [vmem:[%s1 + $0x68] sm:$0xff]
      %v241 = vld [vmem:[%s1 + $0x70] sm:$0xff]
      %v242 = vld [vmem:[%s1 + $0x78] sm:$0xff]
      %v243 = vld [vmem:[%s1 + $0x80] sm:$0xff]
      %v244 = vld [vmem:[%s1 + $0x88] sm:$0xff]
      %v245 = vld [vmem:[%s1 + $0x90] sm:$0xff]
      %v246 = vld [vmem:[%s1 + $0x98] sm:$0xff]
      %v247 = vld [vmem:[%s1 + $0xa0] sm:$0xff]
      %v248 = vld [vmem:[%s1 + $0xa8] sm:$0xff]
      %v249 = vld [vmem:[%s1 + $0xb0] sm:$0xff]
      %v250 = vld [vmem:[%s1 + $0xb8] sm:$0xff]
      %v251 = vld [vmem:[%s2] sm:$0x1]
      %v253 = vlaneseq
      %v254 = vshrl.u32 %v253, 7
      %v255 = vsub.s32 0, %v254
      %v256 = vrot.slane %v251, %v255
      %vm258 = vcmask 523264
      %v260 = vsel %vm258, %v178, 0
      %v263 = vsel %vm258, %v180, 0
      %v266 = vsel %vm258, %v182, 0
      %v269 = vsel %vm258, %v184, 0
      %v272 = vsel %vm258, %v186, 0
      %v275 = vsel %vm258, %v188, 0
      %v278 = vsel %vm258, %v190, 0
      %v281 = vsel %vm258, %v192, 0
      %v284 = vsel %vm258, %v194, 0
      %v287 = vsel %vm258, %v196, 0
      %v290 = vsel %vm258, %v198, 0
      %v293 = vsel %vm258, %v200, 0
      %v296 = vsel %vm258, %v202, 0
      %v299 = vsel %vm258, %v204, 0
      %v302 = vsel %vm258, %v206, 0
      %v305 = vsel %vm258, %v208, 0
      %v308 = vsel %vm258, %v210, 0
      %v311 = vsel %vm258, %v212, 0
      %v314 = vsel %vm258, %v214, 0
      %v317 = vsel %vm258, %v216, 0
      %v320 = vsel %vm258, %v218, 0
      %v323 = vsel %vm258, %v220, 0
      %v326 = vsel %vm258, %v222, 0
      %v329 = vsel %vm258, %v224, 0
      %v332 = vsel %vm258, %v226, 0
      %334 = vmatprep.subr.mxu0 0.0
      %335 = vmatpush1.msra.mxu0 %v227
      %336 = vmatprep.subr.mxu0 0.0
      %337 = vmatpush1.msra.mxu0 %v228
      %338 = vmatprep.subr.mxu0 0.0
      %339 = vmatpush1.msra.mxu0 %v229
      %340 = vmatprep.subr.mxu0 0.0
      %341 = vmatpush1.msra.mxu0 %v230
      %342 = vmatprep.subr.mxu0 0.0
      %343 = vmatpush1.msra.mxu0 %v231
      %344 = vmatprep.subr.mxu0 0.0
      %345 = vmatpush1.msra.mxu0 %v232
      %346 = vmatprep.subr.mxu0 0.0
      %347 = vmatpush1.msra.mxu0 %v233
      %348 = vmatprep.subr.mxu0 0.0
      %349 = vmatpush1.msra.mxu0 %v234
      %350 = vmatprep.subr.mxu0 0.0
      %351 = vmatpush1.msra.mxu0 %v235
      %352 = vmatprep.subr.mxu0 0.0
      %353 = vmatpush1.msra.mxu0 %v236
      %354 = vmatprep.subr.mxu0 0.0
      %355 = vmatpush1.msra.mxu0 %v237
      %356 = vmatprep.subr.mxu0 0.0
      %357 = vmatpush1.msra.mxu0 %v238
      %358 = vmatprep.subr.mxu0 0.0
      %359 = vmatpush1.msra.mxu0 %v239
      %360 = vmatprep.subr.mxu0 0.0
      %361 = vmatpush1.msra.mxu0 %v240
      %362 = vmatprep.subr.mxu0 0.0
      %363 = vmatpush1.msra.mxu0 %v241
      %364 = vmatprep.subr.mxu0 0.0
      %365 = vmatpush1.msra.mxu0 %v242
      %366 = vmatprep.subr.mxu0 0.0
      %367 = vmatpush1.msra.mxu0 %v243
      %368 = vmatprep.subr.mxu0 0.0
      %369 = vmatpush1.msra.mxu0 %v244
      %370 = vmatprep.subr.mxu0 0.0
      %371 = vmatpush1.msra.mxu0 %v245
      %372 = vmatprep.subr.mxu0 0.0
      %373 = vmatpush1.msra.mxu0 %v246
      %374 = vmatprep.subr.mxu0 0.0
      %375 = vmatpush1.msra.mxu0 %v247
      %376 = vmatprep.subr.mxu0 0.0
      %377 = vmatpush1.msra.mxu0 %v248
      %378 = vmatprep.subr.mxu0 0.0
      %379 = vmatpush1.msra.mxu0 %v249
      %380 = vmatprep.subr.mxu0 0.0
      %381 = vmatpush1.msra.mxu0 %v250
      %382 = vmatprep.subr.mxu0 0.0
      %383 = vmatpush1.msra.mxu0 0.0
      %384 = vmatprep.subr.mxu0 0.0
      %385 = vmatpush1.msra.mxu0 0.0
      %386 = vmatprep.subr.mxu0 0.0
      %387 = vmatpush1.msra.mxu0 0.0
      %388 = vmatprep.subr.mxu0 0.0
      %389 = vmatpush1.msra.mxu0 0.0
      %390 = vmatprep.subr.mxu0 0.0
      %391 = vmatpush1.msra.mxu0 0.0
      %392 = vmatprep.subr.mxu0 0.0
      %393 = vmatpush1.msra.mxu0 0.0
      %394 = vmatprep.subr.mxu0 0.0
      %395 = vmatpush1.msra.mxu0 0.0
      %396 = vmatprep.subr.mxu0 0.0
      %397 = vmatpush1.msra.mxu0 0.0
      %398 = vmatprep.mubr.f32.mxu0 %v260
      %399 = vmatmul.mubr.f32.gmra.mrb[0].mxu0 %v177
      %v400 = vpop.f32.mrb[0].mxu0
      %v401 = vadd.f32 %v256, %v400
      %v402 = vpop.f32.mrb[0].mxu0
      %403 = vmatprep.mubr.f32.mxu0 %v263
      %404 = vmatmul.mubr.f32.gmra.mrb[0].mxu0 %v179
      %v405 = vpop.f32.mrb[0].mxu0
      %v406 = vadd.f32 %v256, %v405
      %v407 = vpop.f32.mrb[0].mxu0
      %408 = vmatprep.mubr.f32.mxu0 %v266
      %409 = vmatmul.mubr.f32.gmra.mrb[0].mxu0 %v181
      %v410 = vpop.f32.mrb[0].mxu0
      %v411 = vadd.f32 %v256, %v410
      %v412 = vpop.f32.mrb[0].mxu0
      %413 = vmatprep.mubr.f32.mxu0 %v269
      %414 = vmatmul.mubr.f32.gmra.mrb[0].mxu0 %v183
      %v415 = vpop.f32.mrb[0].mxu0
      %v416 = vadd.f32 %v256, %v415
      %v417 = vpop.f32.mrb[0].mxu0
      %418 = vmatprep.mubr.f32.mxu0 %v272
      %419 = vmatmul.mubr.f32.gmra.mrb[0].mxu0 %v185
      %v420 = vpop.f32.mrb[0].mxu0
      %v421 = vadd.f32 %v256, %v420
      %v422 = vpop.f32.mrb[0].mxu0
      %423 = vmatprep.mubr.f32.mxu0 %v275
      %424 = vmatmul.mubr.f32.gmra.mrb[0].mxu0 %v187
      %v425 = vpop.f32.mrb[0].mxu0
      %v426 = vadd.f32 %v256, %v425
      %v427 = vpop.f32.mrb[0].mxu0
      %428 = vmatprep.mubr.f32.mxu0 %v278
      %429 = vmatmul.mubr.f32.gmra.mrb[0].mxu0 %v189
      %v430 = vpop.f32.mrb[0].mxu0
      %v431 = vadd.f32 %v256, %v430
      %v432 = vpop.f32.mrb[0].mxu0
      %433 = vmatprep.mubr.f32.mxu0 %v281
      %434 = vmatmul.mubr.f32.gmra.mrb[0].mxu0 %v191
      %v435 = vpop.f32.mrb[0].mxu0
      %v436 = vadd.f32 %v256, %v435
      %v437 = vpop.f32.mrb[0].mxu0
      %438 = vmatprep.mubr.f32.mxu0 %v284
      %439 = vmatmul.mubr.f32.gmra.mrb[0].mxu0 %v193
      %v440 = vpop.f32.mrb[0].mxu0
      %v441 = vadd.f32 %v256, %v440
      %v442 = vpop.f32.mrb[0].mxu0
      %443 = vmatprep.mubr.f32.mxu0 %v287
      %444 = vmatmul.mubr.f32.gmra.mrb[0].mxu0 %v195
      %v445 = vpop.f32.mrb[0].mxu0
      %v446 = vadd.f32 %v256, %v445
      %v447 = vpop.f32.mrb[0].mxu0
      %448 = vmatprep.mubr.f32.mxu0 %v290
      %449 = vmatmul.mubr.f32.gmra.mrb[0].mxu0 %v197
      %v450 = vpop.f32.mrb[0].mxu0
      %v451 = vadd.f32 %v256, %v450
      %v452 = vpop.f32.mrb[0].mxu0
      %453 = vmatprep.mubr.f32.mxu0 %v293
      %454 = vmatmul.mubr.f32.gmra.mrb[0].mxu0 %v199
      %v455 = vpop.f32.mrb[0].mxu0
      %v456 = vadd.f32 %v256, %v455
      %v457 = vpop.f32.mrb[0].mxu0
      %458 = vmatprep.mubr.f32.mxu0 %v296
      %459 = vmatmul.mubr.f32.gmra.mrb[0].mxu0 %v201
      %v460 = vpop.f32.mrb[0].mxu0
      %v461 = vadd.f32 %v256, %v460
      %v462 = vpop.f32.mrb[0].mxu0
      %463 = vmatprep.mubr.f32.mxu0 %v299
      %464 = vmatmul.mubr.f32.gmra.mrb[0].mxu0 %v203
      %v465 = vpop.f32.mrb[0].mxu0
      %v466 = vadd.f32 %v256, %v465
      %v467 = vpop.f32.mrb[0].mxu0
      %468 = vmatprep.mubr.f32.mxu0 %v302
      %469 = vmatmul.mubr.f32.gmra.mrb[0].mxu0 %v205
      %v470 = vpop.f32.mrb[0].mxu0
      %v471 = vadd.f32 %v256, %v470
      %v472 = vpop.f32.mrb[0].mxu0
      %473 = vmatprep.mubr.f32.mxu0 %v305
      %474 = vmatmul.mubr.f32.gmra.mrb[0].mxu0 %v207
      %v475 = vpop.f32.mrb[0].mxu0
      %v476 = vadd.f32 %v256, %v475
      %v477 = vpop.f32.mrb[0].mxu0
      %478 = vmatprep.mubr.f32.mxu0 %v308
      %479 = vmatmul.mubr.f32.gmra.mrb[0].mxu0 %v209
      %v480 = vpop.f32.mrb[0].mxu0
      %v481 = vadd.f32 %v256, %v480
      %v482 = vpop.f32.mrb[0].mxu0
      %483 = vmatprep.mubr.f32.mxu0 %v311
      %484 = vmatmul.mubr.f32.gmra.mrb[0].mxu0 %v211
      %v485 = vpop.f32.mrb[0].mxu0
      %v486 = vadd.f32 %v256, %v485
      %v487 = vpop.f32.mrb[0].mxu0
      %488 = vmatprep.mubr.f32.mxu0 %v314
      %489 = vmatmul.mubr.f32.gmra.mrb[0].mxu0 %v213
      %v490 = vpop.f32.mrb[0].mxu0
      %v491 = vadd.f32 %v256, %v490
      %v492 = vpop.f32.mrb[0].mxu0
      %493 = vmatprep.mubr.f32.mxu0 %v317
      %494 = vmatmul.mubr.f32.gmra.mrb[0].mxu0 %v215
      %v495 = vpop.f32.mrb[0].mxu0
      %v496 = vadd.f32 %v256, %v495
      %v497 = vpop.f32.mrb[0].mxu0
      %498 = vmatprep.mubr.f32.mxu0 %v320
      %499 = vmatmul.mubr.f32.gmra.mrb[0].mxu0 %v217
      %v500 = vpop.f32.mrb[0].mxu0
      %v501 = vadd.f32 %v256, %v500
      %v502 = vpop.f32.mrb[0].mxu0
      %503 = vmatprep.mubr.f32.mxu0 %v323
      %504 = vmatmul.mubr.f32.gmra.mrb[0].mxu0 %v219
      %v505 = vpop.f32.mrb[0].mxu0
      %v506 = vadd.f32 %v256, %v505
      %v507 = vpop.f32.mrb[0].mxu0
      %508 = vmatprep.mubr.f32.mxu0 %v326
      %509 = vmatmul.mubr.f32.gmra.mrb[0].mxu0 %v221
      %v510 = vpop.f32.mrb[0].mxu0
      %v511 = vadd.f32 %v256, %v510
      %v512 = vpop.f32.mrb[0].mxu0
      %513 = vmatprep.mubr.f32.mxu0 %v329
      %514 = vmatmul.mubr.f32.gmra.mrb[0].mxu0 %v223
      %v515 = vpop.f32.mrb[0].mxu0
      %v516 = vadd.f32 %v256, %v515
      %v517 = vpop.f32.mrb[0].mxu0
      %518 = vmatprep.mubr.f32.mxu0 %v332
      %519 = vmatmul.mubr.f32.gmra.mrb[0].mxu0 %v225
      %v520 = vpop.f32.mrb[0].mxu0
      %v521 = vadd.f32 %v256, %v520
      %v522 = vpop.f32.mrb[0].mxu0
      %523 = vdwg.mxu0
      %v524 = vmax.f32 %v401, 0.0
      %v525 = vmax.f32 %v406, 0.0
      %v526 = vmax.f32 %v411, 0.0
      %v527 = vmax.f32 %v416, 0.0
      %v528 = vmax.f32 %v421, 0.0
      %v529 = vmax.f32 %v426, 0.0
      %v530 = vmax.f32 %v431, 0.0
      %v531 = vmax.f32 %v436, 0.0
      %v532 = vmax.f32 %v441, 0.0
      %v533 = vmax.f32 %v446, 0.0
      %v534 = vmax.f32 %v451, 0.0
      %v535 = vmax.f32 %v456, 0.0
      %v536 = vmax.f32 %v461, 0.0
      %v537 = vmax.f32 %v466, 0.0
      %v538 = vmax.f32 %v471, 0.0
      %v539 = vmax.f32 %v476, 0.0
      %v540 = vmax.f32 %v481, 0.0
      %v541 = vmax.f32 %v486, 0.0
      %v542 = vmax.f32 %v491, 0.0
      %v543 = vmax.f32 %v496, 0.0
      %v544 = vmax.f32 %v501, 0.0
      %v545 = vmax.f32 %v506, 0.0
      %v546 = vmax.f32 %v511, 0.0
      %v547 = vmax.f32 %v516, 0.0
      %v548 = vmax.f32 %v521, 0.0
      %549 = vst [vmem:[%s175] sm:$0xff] %v524
      %550 = vst [vmem:[%s175 + $0x8] sm:$0xff] %v525
      %551 = vst [vmem:[%s175 + $0x10] sm:$0xff] %v526
      %552 = vst [vmem:[%s175 + $0x18] sm:$0xff] %v527
      %553 = vst [vmem:[%s175 + $0x20] sm:$0xff] %v528
      %554 = vst [vmem:[%s175 + $0x28] sm:$0xff] %v529
      %555 = vst [vmem:[%s175 + $0x30] sm:$0xff] %v530
      %556 = vst [vmem:[%s175 + $0x38] sm:$0xff] %v531
      %557 = vst [vmem:[%s175 + $0x40] sm:$0xff] %v532
      %558 = vst [vmem:[%s175 + $0x48] sm:$0xff] %v533
      %559 = vst [vmem:[%s175 + $0x50] sm:$0xff] %v534
      %560 = vst [vmem:[%s175 + $0x58] sm:$0xff] %v535
      %561 = vst [vmem:[%s175 + $0x60] sm:$0xff] %v536
      %562 = vst [vmem:[%s175 + $0x68] sm:$0xff] %v537
      %563 = vst [vmem:[%s175 + $0x70] sm:$0xff] %v538
      %564 = vst [vmem:[%s175 + $0x78] sm:$0xff] %v539
      %565 = vst [vmem:[%s175 + $0x80] sm:$0xff] %v540
      %566 = vst [vmem:[%s175 + $0x88] sm:$0xff] %v541
      %567 = vst [vmem:[%s175 + $0x90] sm:$0xff] %v542
      %568 = vst [vmem:[%s175 + $0x98] sm:$0xff] %v543
      %569 = vst [vmem:[%s175 + $0xa0] sm:$0xff] %v544
      %570 = vst [vmem:[%s175 + $0xa8] sm:$0xff] %v545
      %571 = vst [vmem:[%s175 + $0xb0] sm:$0xff] %v546
      %572 = vst [vmem:[%s175 + $0xb8] sm:$0xff] %v547
      %573 = vst [vmem:[%s175 + $0xc0] sm:$0xff] %v548
      %s574 = smul.u32 25, %s14
      %p575 = scmp.lt.s32.totalorder %s574, 99
      %s576 = scalar_select %p575, %s574, 99
      %s577 = smul.addr %s576, 8
      %s578 = scalar_lea.vmem %s3, %s577
      // Predicated region
      $region33: #{ppo_forward.4} parent=31 // pred_check
        %p579 = pneg %p100
      $region34: #{ppo_forward.4} parent=31 // pred_check_branch
        %581 = sbr.rel (%p579) target = $region36
      $region35: #{ppo_forward.4} parent=31 // pred_region
        %s582 = smul.u32 25, %s14
      $region36: #{ppo_forward.4} parent=31 // pred_fallthru
        _
    $region32: #{ppo_forward.4} parent=5 // pred_fallthru
      _
    %p583 = scmp.le.s32.totalorder 2, %s9
    // Predicated region
    $region37: #{ppo_forward.4} parent=5 // pred_check
      %p584 = pneg %p583
    $region38: #{ppo_forward.4} parent=5 // pred_check_branch
      %586 = sbr.rel (%p584) target = $region40
    $region39: #{ppo_forward.4} parent=5 // pred_region
      %s587 = ssub.s32 %s9, 2
      // Predicated region
      $region41: #{ppo_forward.4} parent=39 // pred_check
        %p588 = pneg %p106
      $region42: #{ppo_forward.4} parent=39 // pred_check_branch
        %590 = sbr.rel (%p588) target = $region44
      $region43: #{ppo_forward.4} parent=39 // pred_region
        %s591 = smul.u32 25, %s15
        %p592 = scmp.lt.s32.totalorder %s591, 99
        %s593 = scalar_select %p592, %s591, 99
        %s594 = smul.addr %s593, 8
        %s595 = scalar_lea.vmem %s3, %s594
      $region44: #{ppo_forward.4} parent=39 // pred_fallthru
        _
    $region40: #{ppo_forward.4} parent=5 // pred_fallthru
      _
  $region6: #{ppo_forward.4} parent=0 // loop_footer
    %s13 = sadd.s32 1, %s9
  $region7: #{ppo_forward.4} parent=0 // loop_footer_branch
    %8 = sbr.rel target = $region3
  $region8: #{ppo_forward.4} parent=0 // loop_exit
    _

// kernel: ppo_forward.5
$region0: #{ppo_forward.5}
  #allocation0 [shape = 'u32[]', space=smem, size = 0x4, offset = 0x4, fixed_abs, tag = 'smem constant byte address 0x4 - core index']
  #allocation1 [shape = 'u32[144,128]{1,0:T(1,128)}', space=vmem, size = 0x12000, scoped, tag = 'internal scratch']
  %s0 = inlined_call_operand.vmem [shape: f32[200,512], index: 0, kind: input, shape index: {}]
  %s1 = inlined_call_operand.vmem [shape: f32[512,128], index: 1, kind: input, shape index: {}]
  %s2 = inlined_call_operand.vmem [shape: f32[1,128], index: 2, kind: input, shape index: {}]
  %s3 = inlined_call_operand.vmem [shape: f32[200,128], index: 3, kind: output, shape index: {}]
  %s4 = sld [smem:[#allocation0]]
  $region22: #{ppo_forward.5} parent=0
    _
  %s6 = ssub.s32 1, %s4
  %s7 = scalar_select 0, %s6, %s4
  // Predicated region
  $region2: #{ppo_forward.5} parent=0 // pred_check
    _
  $region3: #{ppo_forward.5} parent=0 // pred_check_branch
    %9 = sbr.rel (0) target = $region5
  $region4: #{ppo_forward.5} parent=0 // pred_region
    _
  $region5: #{ppo_forward.5} parent=0 // pred_fallthru
    _
  // Predicated region
  $region6: #{ppo_forward.5} parent=0 // pred_check
    _
  $region7: #{ppo_forward.5} parent=0 // pred_check_branch
    %11 = sbr.rel (0) target = $region9
  $region8: #{ppo_forward.5} parent=0 // pred_region
    _
  $region9: #{ppo_forward.5} parent=0 // pred_fallthru
    _
  // Predicated region
  $region10: #{ppo_forward.5} parent=0 // pred_check
    _
  $region11: #{ppo_forward.5} parent=0 // pred_check_branch
    %13 = sbr.rel (0) target = $region13
  $region12: #{ppo_forward.5} parent=0 // pred_region
    _
  $region13: #{ppo_forward.5} parent=0 // pred_fallthru
    _
  %v14 = vld [vmem:[%s0] sm:$0xff]
  %v15 = vld [vmem:[%s0 + $0x8] sm:$0xff]
  %v16 = vld [vmem:[%s0 + $0x10] sm:$0xff]
  %v17 = vld [vmem:[%s0 + $0x18] sm:$0xff]
  %v18 = vld [vmem:[%s0 + $0x20] sm:$0xff]
  %v19 = vld [vmem:[%s0 + $0x28] sm:$0xff]
  %v20 = vld [vmem:[%s0 + $0x30] sm:$0xff]
  %v21 = vld [vmem:[%s0 + $0x38] sm:$0xff]
  %v22 = vld [vmem:[%s0 + $0x40] sm:$0xff]
  %v23 = vld [vmem:[%s0 + $0x48] sm:$0xff]
  %v24 = vld [vmem:[%s0 + $0x50] sm:$0xff]
  %v25 = vld [vmem:[%s0 + $0x58] sm:$0xff]
  %v26 = vld [vmem:[%s0 + $0x60] sm:$0xff]
  %v27 = vld [vmem:[%s0 + $0x68] sm:$0xff]
  %v28 = vld [vmem:[%s0 + $0x70] sm:$0xff]
  %v29 = vld [vmem:[%s0 + $0x78] sm:$0xff]
  %v30 = vld [vmem:[%s0 + $0x80] sm:$0xff]
  %v31 = vld [vmem:[%s0 + $0x88] sm:$0xff]
  %v32 = vld [vmem:[%s0 + $0x90] sm:$0xff]
  %v33 = vld [vmem:[%s0 + $0x98] sm:$0xff]
  %v34 = vld [vmem:[%s0 + $0xa0] sm:$0xff]
  %v35 = vld [vmem:[%s0 + $0xa8] sm:$0xff]
  %v36 = vld [vmem:[%s0 + $0xb0] sm:$0xff]
  %v37 = vld [vmem:[%s0 + $0xb8] sm:$0xff]
  %v38 = vld [vmem:[%s0 + $0xc0] sm:$0xff]
  %v39 = vld [vmem:[%s0 + $0xc8] sm:$0xff]
  %v40 = vld [vmem:[%s0 + $0xd0] sm:$0xff]
  %v41 = vld [vmem:[%s0 + $0xd8] sm:$0xff]
  %v42 = vld [vmem:[%s0 + $0xe0] sm:$0xff]
  %v43 = vld [vmem:[%s0 + $0xe8] sm:$0xff]
  %v44 = vld [vmem:[%s0 + $0xf0] sm:$0xff]
  %v45 = vld [vmem:[%s0 + $0xf8] sm:$0xff]
  %v46 = vld [vmem:[%s0 + $0x100] sm:$0xff]
  %v47 = vld [vmem:[%s0 + $0x108] sm:$0xff]
  %v48 = vld [vmem:[%s0 + $0x110] sm:$0xff]
  %v49 = vld [vmem:[%s0 + $0x118] sm:$0xff]
  %v50 = vld [vmem:[%s0 + $0x120] sm:$0xff]
  %v51 = vld [vmem:[%s0 + $0x128] sm:$0xff]
  %v52 = vld [vmem:[%s0 + $0x130] sm:$0xff]
  %v53 = vld [vmem:[%s0 + $0x138] sm:$0xff]
  %v54 = vld [vmem:[%s0 + $0x140] sm:$0xff]
  %v55 = vld [vmem:[%s0 + $0x148] sm:$0xff]
  %v56 = vld [vmem:[%s0 + $0x150] sm:$0xff]
  %v57 = vld [vmem:[%s0 + $0x158] sm:$0xff]
  %v58 = vld [vmem:[%s0 + $0x160] sm:$0xff]
  %v59 = vld [vmem:[%s0 + $0x168] sm:$0xff]
  %v60 = vld [vmem:[%s0 + $0x170] sm:$0xff]
  %v61 = vld [vmem:[%s0 + $0x178] sm:$0xff]
  %v62 = vld [vmem:[%s0 + $0x180] sm:$0xff]
  %v63 = vld [vmem:[%s0 + $0x188] sm:$0xff]
  %v64 = vld [vmem:[%s0 + $0x190] sm:$0xff]
  %v65 = vld [vmem:[%s0 + $0x198] sm:$0xff]
  %v66 = vld [vmem:[%s0 + $0x1a0] sm:$0xff]
  %v67 = vld [vmem:[%s0 + $0x1a8] sm:$0xff]
  %v68 = vld [vmem:[%s0 + $0x1b0] sm:$0xff]
  %v69 = vld [vmem:[%s0 + $0x1b8] sm:$0xff]
  %v70 = vld [vmem:[%s0 + $0x1c0] sm:$0xff]
  %v71 = vld [vmem:[%s0 + $0x1c8] sm:$0xff]
  %v72 = vld [vmem:[%s0 + $0x1d0] sm:$0xff]
  %v73 = vld [vmem:[%s0 + $0x1d8] sm:$0xff]
  %v74 = vld [vmem:[%s0 + $0x1e0] sm:$0xff]
  %v75 = vld [vmem:[%s0 + $0x1e8] sm:$0xff]
  %v76 = vld [vmem:[%s0 + $0x1f0] sm:$0xff]
  %v77 = vld [vmem:[%s0 + $0x1f8] sm:$0xff]
  %v78 = vld [vmem:[%s0 + $0x200] sm:$0xff]
  %v79 = vld [vmem:[%s0 + $0x208] sm:$0xff]
  %v80 = vld [vmem:[%s0 + $0x210] sm:$0xff]
  %v81 = vld [vmem:[%s0 + $0x218] sm:$0xff]
  %v82 = vld [vmem:[%s0 + $0x220] sm:$0xff]
  %v83 = vld [vmem:[%s0 + $0x228] sm:$0xff]
  %v84 = vld [vmem:[%s0 + $0x230] sm:$0xff]
  %v85 = vld [vmem:[%s0 + $0x238] sm:$0xff]
  %v86 = vld [vmem:[%s0 + $0x240] sm:$0xff]
  %v87 = vld [vmem:[%s0 + $0x248] sm:$0xff]
  %v88 = vld [vmem:[%s0 + $0x250] sm:$0xff]
  %v89 = vld [vmem:[%s0 + $0x258] sm:$0xff]
  %v90 = vld [vmem:[%s0 + $0x260] sm:$0xff]
  %v91 = vld [vmem:[%s0 + $0x268] sm:$0xff]
  %v92 = vld [vmem:[%s0 + $0x270] sm:$0xff]
  %v93 = vld [vmem:[%s0 + $0x278] sm:$0xff]
  %v94 = vld [vmem:[%s0 + $0x280] sm:$0xff]
  %v95 = vld [vmem:[%s0 + $0x288] sm:$0xff]
  %v96 = vld [vmem:[%s0 + $0x290] sm:$0xff]
  %v97 = vld [vmem:[%s0 + $0x298] sm:$0xff]
  %v98 = vld [vmem:[%s0 + $0x2a0] sm:$0xff]
  %v99 = vld [vmem:[%s0 + $0x2a8] sm:$0xff]
  %v100 = vld [vmem:[%s0 + $0x2b0] sm:$0xff]
  %v101 = vld [vmem:[%s0 + $0x2b8] sm:$0xff]
  %v102 = vld [vmem:[%s0 + $0x2c0] sm:$0xff]
  %v103 = vld [vmem:[%s0 + $0x2c8] sm:$0xff]
  %v104 = vld [vmem:[%s0 + $0x2d0] sm:$0xff]
  %v105 = vld [vmem:[%s0 + $0x2d8] sm:$0xff]
  %v106 = vld [vmem:[%s0 + $0x2e0] sm:$0xff]
  %v107 = vld [vmem:[%s0 + $0x2e8] sm:$0xff]
  %v108 = vld [vmem:[%s0 + $0x2f0] sm:$0xff]
  %v109 = vld [vmem:[%s0 + $0x2f8] sm:$0xff]
  %v110 = vld [vmem:[%s0 + $0x300] sm:$0xff]
  %v111 = vld [vmem:[%s0 + $0x308] sm:$0xff]
  %v112 = vld [vmem:[%s0 + $0x310] sm:$0xff]
  %v113 = vld [vmem:[%s0 + $0x318] sm:$0xff]
  %v114 = vld [vmem:[%s1] sm:$0xff]
  %v115 = vld [vmem:[%s1 + $0x8] sm:$0xff]
  %v116 = vld [vmem:[%s1 + $0x10] sm:$0xff]
  %v117 = vld [vmem:[%s1 + $0x18] sm:$0xff]
  %v118 = vld [vmem:[%s1 + $0x20] sm:$0xff]
  %v119 = vld [vmem:[%s1 + $0x28] sm:$0xff]
  %v120 = vld [vmem:[%s1 + $0x30] sm:$0xff]
  %v121 = vld [vmem:[%s1 + $0x38] sm:$0xff]
  %v122 = vld [vmem:[%s1 + $0x40] sm:$0xff]
  %v123 = vld [vmem:[%s1 + $0x48] sm:$0xff]
  %v124 = vld [vmem:[%s1 + $0x50] sm:$0xff]
  %v125 = vld [vmem:[%s1 + $0x58] sm:$0xff]
  %v126 = vld [vmem:[%s1 + $0x60] sm:$0xff]
  %v127 = vld [vmem:[%s1 + $0x68] sm:$0xff]
  %v128 = vld [vmem:[%s1 + $0x70] sm:$0xff]
  %v129 = vld [vmem:[%s1 + $0x78] sm:$0xff]
  %v130 = vld [vmem:[%s1 + $0x80] sm:$0xff]
  %v131 = vld [vmem:[%s1 + $0x88] sm:$0xff]
  %v132 = vld [vmem:[%s1 + $0x90] sm:$0xff]
  %v133 = vld [vmem:[%s1 + $0x98] sm:$0xff]
  %v134 = vld [vmem:[%s1 + $0xa0] sm:$0xff]
  %v135 = vld [vmem:[%s1 + $0xa8] sm:$0xff]
  %v136 = vld [vmem:[%s1 + $0xb0] sm:$0xff]
  %v137 = vld [vmem:[%s1 + $0xb8] sm:$0xff]
  %v138 = vld [vmem:[%s1 + $0xc0] sm:$0xff]
  %v139 = vld [vmem:[%s1 + $0xc8] sm:$0xff]
  %v140 = vld [vmem:[%s1 + $0xd0] sm:$0xff]
  %v141 = vld [vmem:[%s1 + $0xd8] sm:$0xff]
  %v142 = vld [vmem:[%s1 + $0xe0] sm:$0xff]
  %v143 = vld [vmem:[%s1 + $0xe8] sm:$0xff]
  %v144 = vld [vmem:[%s1 + $0xf0] sm:$0xff]
  %v145 = vld [vmem:[%s1 + $0xf8] sm:$0xff]
  %v146 = vld [vmem:[%s1 + $0x100] sm:$0xff]
  %v147 = vld [vmem:[%s1 + $0x108] sm:$0xff]
  %v148 = vld [vmem:[%s1 + $0x110] sm:$0xff]
  %v149 = vld [vmem:[%s1 + $0x118] sm:$0xff]
  %v150 = vld [vmem:[%s1 + $0x120] sm:$0xff]
  %v151 = vld [vmem:[%s1 + $0x128] sm:$0xff]
  %v152 = vld [vmem:[%s1 + $0x130] sm:$0xff]
  %v153 = vld [vmem:[%s1 + $0x138] sm:$0xff]
  %v154 = vld [vmem:[%s1 + $0x140] sm:$0xff]
  %v155 = vld [vmem:[%s1 + $0x148] sm:$0xff]
  %v156 = vld [vmem:[%s1 + $0x150] sm:$0xff]
  %v157 = vld [vmem:[%s1 + $0x158] sm:$0xff]
  %v158 = vld [vmem:[%s1 + $0x160] sm:$0xff]
  %v159 = vld [vmem:[%s1 + $0x168] sm:$0xff]
  %v160 = vld [vmem:[%s1 + $0x170] sm:$0xff]
  %v161 = vld [vmem:[%s1 + $0x178] sm:$0xff]
  %v162 = vld [vmem:[%s1 + $0x180] sm:$0xff]
  %v163 = vld [vmem:[%s1 + $0x188] sm:$0xff]
  %v164 = vld [vmem:[%s1 + $0x190] sm:$0xff]
  %v165 = vld [vmem:[%s1 + $0x198] sm:$0xff]
  %v166 = vld [vmem:[%s1 + $0x1a0] sm:$0xff]
  %v167 = vld [vmem:[%s1 + $0x1a8] sm:$0xff]
  %v168 = vld [vmem:[%s1 + $0x1b0] sm:$0xff]
  %v169 = vld [vmem:[%s1 + $0x1b8] sm:$0xff]
  %v170 = vld [vmem:[%s1 + $0x1c0] sm:$0xff]
  %v171 = vld [vmem:[%s1 + $0x1c8] sm:$0xff]
  %v172 = vld [vmem:[%s1 + $0x1d0] sm:$0xff]
  %v173 = vld [vmem:[%s1 + $0x1d8] sm:$0xff]
  %v174 = vld [vmem:[%s1 + $0x1e0] sm:$0xff]
  %v175 = vld [vmem:[%s1 + $0x1e8] sm:$0xff]
  %v176 = vld [vmem:[%s1 + $0x1f0] sm:$0xff]
  %v177 = vld [vmem:[%s1 + $0x1f8] sm:$0xff]
  %v178 = vld [vmem:[%s2] sm:$0x1]
  %v180 = vlaneseq
  %v181 = vshrl.u32 %v180, 7
  %v182 = vsub.s32 0, %v181
  %v183 = vrot.slane %v178, %v182
  %185 = vmatprep.subr.mxu0 0.0
  %186 = vmatpush1.msra.mxu0 %v114
  %187 = vmatprep.subr.mxu0 0.0
  %188 = vmatpush1.msra.mxu0 %v115
  %189 = vmatprep.subr.mxu0 0.0
  %190 = vmatpush1.msra.mxu0 %v116
  %191 = vmatprep.subr.mxu0 0.0
  %192 = vmatpush1.msra.mxu0 %v117
  %193 = vmatprep.subr.mxu0 0.0
  %194 = vmatpush1.msra.mxu0 %v118
  %195 = vmatprep.subr.mxu0 0.0
  %196 = vmatpush1.msra.mxu0 %v119
  %197 = vmatprep.subr.mxu0 0.0
  %198 = vmatpush1.msra.mxu0 %v120
  %199 = vmatprep.subr.mxu0 0.0
  %200 = vmatpush1.msra.mxu0 %v121
  %201 = vmatprep.subr.mxu0 0.0
  %202 = vmatpush1.msra.mxu0 %v122
  %203 = vmatprep.subr.mxu0 0.0
  %204 = vmatpush1.msra.mxu0 %v123
  %205 = vmatprep.subr.mxu0 0.0
  %206 = vmatpush1.msra.mxu0 %v124
  %207 = vmatprep.subr.mxu0 0.0
  %208 = vmatpush1.msra.mxu0 %v125
  %209 = vmatprep.subr.mxu0 0.0
  %210 = vmatpush1.msra.mxu0 %v126
  %211 = vmatprep.subr.mxu0 0.0
  %212 = vmatpush1.msra.mxu0 %v127
  %213 = vmatprep.subr.mxu0 0.0
  %214 = vmatpush1.msra.mxu0 %v128
  %215 = vmatprep.subr.mxu0 0.0
  %216 = vmatpush1.msra.mxu0 %v129
  %217 = vmatprep.subr.mxu0 0.0
  %218 = vmatpush1.msra.mxu0 %v130
  %219 = vmatprep.subr.mxu0 0.0
  %220 = vmatpush1.msra.mxu0 %v131
  %221 = vmatprep.subr.mxu0 0.0
  %222 = vmatpush1.msra.mxu0 %v132
  %223 = vmatprep.subr.mxu0 0.0
  %224 = vmatpush1.msra.mxu0 %v133
  %225 = vmatprep.subr.mxu0 0.0
  %226 = vmatpush1.msra.mxu0 %v134
  %227 = vmatprep.subr.mxu0 0.0
  %228 = vmatpush1.msra.mxu0 %v135
  %229 = vmatprep.subr.mxu0 0.0
  %230 = vmatpush1.msra.mxu0 %v136
  %231 = vmatprep.subr.mxu0 0.0
  %232 = vmatpush1.msra.mxu0 %v137
  %233 = vmatprep.subr.mxu0 0.0
  %234 = vmatpush1.msra.mxu0 %v138
  %235 = vmatprep.subr.mxu0 0.0
  %236 = vmatpush1.msra.mxu0 %v139
  %237 = vmatprep.subr.mxu0 0.0
  %238 = vmatpush1.msra.mxu0 %v140
  %239 = vmatprep.subr.mxu0 0.0
  %240 = vmatpush1.msra.mxu0 %v141
  %241 = vmatprep.subr.mxu0 0.0
  %242 = vmatpush1.msra.mxu0 %v142
  %243 = vmatprep.subr.mxu0 0.0
  %244 = vmatpush1.msra.mxu0 %v143
  %245 = vmatprep.subr.mxu0 0.0
  %246 = vmatpush1.msra.mxu0 %v144
  %247 = vmatprep.subr.mxu0 0.0
  %248 = vmatpush1.msra.mxu0 %v145
  %249 = vmatprep.mubr.f32.mxu0 %v15
  %250 = vmatmul.mubr.f32.gmra.mrb[0].mxu0 %v14
  %v251 = vpop.f32.mrb[0].mxu0
  %v252 = vadd.f32 %v183, %v251
  %v253 = vpop.f32.mrb[0].mxu0
  %254 = vmatprep.mubr.f32.mxu0 %v19
  %255 = vmatmul.mubr.f32.gmra.mrb[0].mxu0 %v18
  %v256 = vpop.f32.mrb[0].mxu0
  %v257 = vadd.f32 %v183, %v256
  %v258 = vpop.f32.mrb[0].mxu0
  %259 = vmatprep.mubr.f32.mxu0 %v23
  %260 = vmatmul.mubr.f32.gmra.mrb[0].mxu0 %v22
  %v261 = vpop.f32.mrb[0].mxu0
  %v262 = vadd.f32 %v183, %v261
  %v263 = vpop.f32.mrb[0].mxu0
  %264 = vmatprep.mubr.f32.mxu0 %v27
  %265 = vmatmul.mubr.f32.gmra.mrb[0].mxu0 %v26
  %v266 = vpop.f32.mrb[0].mxu0
  %v267 = vadd.f32 %v183, %v266
  %v268 = vpop.f32.mrb[0].mxu0
  %269 = vmatprep.mubr.f32.mxu0 %v31
  %270 = vmatmul.mubr.f32.gmra.mrb[0].mxu0 %v30
  %v271 = vpop.f32.mrb[0].mxu0
  %v272 = vadd.f32 %v183, %v271
  %v273 = vpop.f32.mrb[0].mxu0
  %274 = vmatprep.mubr.f32.mxu0 %v35
  %275 = vmatmul.mubr.f32.gmra.mrb[0].mxu0 %v34
  %v276 = vpop.f32.mrb[0].mxu0
  %v277 = vadd.f32 %v183, %v276
  %v278 = vpop.f32.mrb[0].mxu0
  %279 = vmatprep.mubr.f32.mxu0 %v39
  %280 = vmatmul.mubr.f32.gmra.mrb[0].mxu0 %v38
  %v281 = vpop.f32.mrb[0].mxu0
  %v282 = vadd.f32 %v183, %v281
  %v283 = vpop.f32.mrb[0].mxu0
  %284 = vmatprep.mubr.f32.mxu0 %v43
  %285 = vmatmul.mubr.f32.gmra.mrb[0].mxu0 %v42
  %v286 = vpop.f32.mrb[0].mxu0
  %v287 = vadd.f32 %v183, %v286
  %v288 = vpop.f32.mrb[0].mxu0
  %289 = vmatprep.mubr.f32.mxu0 %v47
  %290 = vmatmul.mubr.f32.gmra.mrb[0].mxu0 %v46
  %v291 = vpop.f32.mrb[0].mxu0
  %v292 = vadd.f32 %v183, %v291
  %v293 = vpop.f32.mrb[0].mxu0
  %294 = vmatprep.mubr.f32.mxu0 %v51
  %295 = vmatmul.mubr.f32.gmra.mrb[0].mxu0 %v50
  %v296 = vpop.f32.mrb[0].mxu0
  %v297 = vadd.f32 %v183, %v296
  %v298 = vpop.f32.mrb[0].mxu0
  %299 = vmatprep.mubr.f32.mxu0 %v55
  %300 = vmatmul.mubr.f32.gmra.mrb[0].mxu0 %v54
  %v301 = vpop.f32.mrb[0].mxu0
  %v302 = vadd.f32 %v183, %v301
  %v303 = vpop.f32.mrb[0].mxu0
  %304 = vmatprep.mubr.f32.mxu0 %v59
  %305 = vmatmul.mubr.f32.gmra.mrb[0].mxu0 %v58
  %v306 = vpop.f32.mrb[0].mxu0
  %v307 = vadd.f32 %v183, %v306
  %v308 = vpop.f32.mrb[0].mxu0
  %309 = vmatprep.mubr.f32.mxu0 %v63
  %310 = vmatmul.mubr.f32.gmra.mrb[0].mxu0 %v62
  %v311 = vpop.f32.mrb[0].mxu0
  %v312 = vadd.f32 %v183, %v311
  %v313 = vpop.f32.mrb[0].mxu0
  %314 = vmatprep.mubr.f32.mxu0 %v67
  %315 = vmatmul.mubr.f32.gmra.mrb[0].mxu0 %v66
  %v316 = vpop.f32.mrb[0].mxu0
  %v317 = vadd.f32 %v183, %v316
  %v318 = vpop.f32.mrb[0].mxu0
  %319 = vmatprep.mubr.f32.mxu0 %v71
  %320 = vmatmul.mubr.f32.gmra.mrb[0].mxu0 %v70
  %v321 = vpop.f32.mrb[0].mxu0
  %v322 = vadd.f32 %v183, %v321
  %v323 = vpop.f32.mrb[0].mxu0
  %324 = vmatprep.mubr.f32.mxu0 %v75
  %325 = vmatmul.mubr.f32.gmra.mrb[0].mxu0 %v74
  %v326 = vpop.f32.mrb[0].mxu0
  %v327 = vadd.f32 %v183, %v326
  %v328 = vpop.f32.mrb[0].mxu0
  %329 = vmatprep.mubr.f32.mxu0 %v79
  %330 = vmatmul.mubr.f32.gmra.mrb[0].mxu0 %v78
  %v331 = vpop.f32.mrb[0].mxu0
  %v332 = vadd.f32 %v183, %v331
  %v333 = vpop.f32.mrb[0].mxu0
  %334 = vmatprep.mubr.f32.mxu0 %v83
  %335 = vmatmul.mubr.f32.gmra.mrb[0].mxu0 %v82
  %v336 = vpop.f32.mrb[0].mxu0
  %v337 = vadd.f32 %v183, %v336
  %v338 = vpop.f32.mrb[0].mxu0
  %339 = vmatprep.mubr.f32.mxu0 %v87
  %340 = vmatmul.mubr.f32.gmra.mrb[0].mxu0 %v86
  %v341 = vpop.f32.mrb[0].mxu0
  %v342 = vadd.f32 %v183, %v341
  %v343 = vpop.f32.mrb[0].mxu0
  %344 = vmatprep.mubr.f32.mxu0 %v91
  %345 = vmatmul.mubr.f32.gmra.mrb[0].mxu0 %v90
  %v346 = vpop.f32.mrb[0].mxu0
  %v347 = vadd.f32 %v183, %v346
  %v348 = vpop.f32.mrb[0].mxu0
  %349 = vmatprep.mubr.f32.mxu0 %v95
  %350 = vmatmul.mubr.f32.gmra.mrb[0].mxu0 %v94
  %v351 = vpop.f32.mrb[0].mxu0
  %v352 = vadd.f32 %v183, %v351
  %v353 = vpop.f32.mrb[0].mxu0
  %354 = vmatprep.mubr.f32.mxu0 %v99
  %355 = vmatmul.mubr.f32.gmra.mrb[0].mxu0 %v98
  %v356 = vpop.f32.mrb[0].mxu0
  %v357 = vadd.f32 %v183, %v356
  %v358 = vpop.f32.mrb[0].mxu0
  %359 = vmatprep.mubr.f32.mxu0 %v103
  %360 = vmatmul.mubr.f32.gmra.mrb[0].mxu0 %v102
  %v361 = vpop.f32.mrb[0].mxu0
  %v362 = vadd.f32 %v183, %v361
  %v363 = vpop.f32.mrb[0].mxu0
  %364 = vmatprep.mubr.f32.mxu0 %v107
  %365 = vmatmul.mubr.f32.gmra.mrb[0].mxu0 %v106
  %v366 = vpop.f32.mrb[0].mxu0
  %v367 = vadd.f32 %v183, %v366
  %v368 = vpop.f32.mrb[0].mxu0
  %369 = vmatprep.mubr.f32.mxu0 %v111
  %370 = vmatmul.mubr.f32.gmra.mrb[0].mxu0 %v110
  %v371 = vpop.f32.mrb[0].mxu0
  %v372 = vadd.f32 %v183, %v371
  %v373 = vpop.f32.mrb[0].mxu0
  %374 = vdwg.mxu0
  %375 = vmatprep.subr.mxu0 0.0
  %376 = vmatpush1.msra.mxu0 %v146
  %377 = vmatprep.subr.mxu0 0.0
  %378 = vmatpush1.msra.mxu0 %v147
  %379 = vmatprep.subr.mxu0 0.0
  %380 = vmatpush1.msra.mxu0 %v148
  %381 = vmatprep.subr.mxu0 0.0
  %382 = vmatpush1.msra.mxu0 %v149
  %383 = vmatprep.subr.mxu0 0.0
  %384 = vmatpush1.msra.mxu0 %v150
  %385 = vmatprep.subr.mxu0 0.0
  %386 = vmatpush1.msra.mxu0 %v151
  %387 = vmatprep.subr.mxu0 0.0
  %388 = vmatpush1.msra.mxu0 %v152
  %389 = vmatprep.subr.mxu0 0.0
  %390 = vmatpush1.msra.mxu0 %v153
  %391 = vmatprep.subr.mxu0 0.0
  %392 = vmatpush1.msra.mxu0 %v154
  %393 = vmatprep.subr.mxu0 0.0
  %394 = vmatpush1.msra.mxu0 %v155
  %395 = vmatprep.subr.mxu0 0.0
  %396 = vmatpush1.msra.mxu0 %v156
  %397 = vmatprep.subr.mxu0 0.0
  %398 = vmatpush1.msra.mxu0 %v157
  %399 = vmatprep.subr.mxu0 0.0
  %400 = vmatpush1.msra.mxu0 %v158
  %401 = vmatprep.subr.mxu0 0.0
  %402 = vmatpush1.msra.mxu0 %v159
  %403 = vmatprep.subr.mxu0 0.0
  %404 = vmatpush1.msra.mxu0 %v160
  %405 = vmatprep.subr.mxu0 0.0
  %406 = vmatpush1.msra.mxu0 %v161
  %407 = vmatprep.subr.mxu0 0.0
  %408 = vmatpush1.msra.mxu0 %v162
  %409 = vmatprep.subr.mxu0 0.0
  %410 = vmatpush1.msra.mxu0 %v163
  %411 = vmatprep.subr.mxu0 0.0
  %412 = vmatpush1.msra.mxu0 %v164
  %413 = vmatprep.subr.mxu0 0.0
  %414 = vmatpush1.msra.mxu0 %v165
  %415 = vmatprep.subr.mxu0 0.0
  %416 = vmatpush1.msra.mxu0 %v166
  %417 = vmatprep.subr.mxu0 0.0
  %418 = vmatpush1.msra.mxu0 %v167
  %419 = vmatprep.subr.mxu0 0.0
  %420 = vmatpush1.msra.mxu0 %v168
  %421 = vmatprep.subr.mxu0 0.0
  %422 = vmatpush1.msra.mxu0 %v169
  %423 = vmatprep.subr.mxu0 0.0
  %424 = vmatpush1.msra.mxu0 %v170
  %425 = vmatprep.subr.mxu0 0.0
  %426 = vmatpush1.msra.mxu0 %v171
  %427 = vmatprep.subr.mxu0 0.0
  %428 = vmatpush1.msra.mxu0 %v172
  %429 = vmatprep.subr.mxu0 0.0
  %430 = vmatpush1.msra.mxu0 %v173
  %431 = vmatprep.subr.mxu0 0.0
  %432 = vmatpush1.msra.mxu0 %v174
  %433 = vmatprep.subr.mxu0 0.0
  %434 = vmatpush1.msra.mxu0 %v175
  %435 = vmatprep.subr.mxu0 0.0
  %436 = vmatpush1.msra.mxu0 %v176
  %437 = vmatprep.subr.mxu0 0.0
  %438 = vmatpush1.msra.mxu0 %v177
  %439 = vmatprep.mubr.f32.mxu0 %v17
  %440 = vmatmul.mubr.f32.gmra.mrb[0].mxu0 %v16
  %v441 = vpop.f32.mrb[0].mxu0
  %v442 = vadd.f32 %v252, %v441
  %v443 = vpop.f32.mrb[0].mxu0
  %444 = vmatprep.mubr.f32.mxu0 %v21
  %445 = vmatmul.mubr.f32.gmra.mrb[0].mxu0 %v20
  %v446 = vpop.f32.mrb[0].mxu0
  %v447 = vadd.f32 %v257, %v446
  %v448 = vpop.f32.mrb[0].mxu0
  %449 = vmatprep.mubr.f32.mxu0 %v25
  %450 = vmatmul.mubr.f32.gmra.mrb[0].mxu0 %v24
  %v451 = vpop.f32.mrb[0].mxu0
  %v452 = vadd.f32 %v262, %v451
  %v453 = vpop.f32.mrb[0].mxu0
  %454 = vmatprep.mubr.f32.mxu0 %v29
  %455 = vmatmul.mubr.f32.gmra.mrb[0].mxu0 %v28
  %v456 = vpop.f32.mrb[0].mxu0
  %v457 = vadd.f32 %v267, %v456
  %v458 = vpop.f32.mrb[0].mxu0
  %459 = vmatprep.mubr.f32.mxu0 %v33
  %460 = vmatmul.mubr.f32.gmra.mrb[0].mxu0 %v32
  %v461 = vpop.f32.mrb[0].mxu0
  %v462 = vadd.f32 %v272, %v461
  %v463 = vpop.f32.mrb[0].mxu0
  %464 = vmatprep.mubr.f32.mxu0 %v37
  %465 = vmatmul.mubr.f32.gmra.mrb[0].mxu0 %v36
  %v466 = vpop.f32.mrb[0].mxu0
  %v467 = vadd.f32 %v277, %v466
  %v468 = vpop.f32.mrb[0].mxu0
  %469 = vmatprep.mubr.f32.mxu0 %v41
  %470 = vmatmul.mubr.f32.gmra.mrb[0].mxu0 %v40
  %v471 = vpop.f32.mrb[0].mxu0
  %v472 = vadd.f32 %v282, %v471
  %v473 = vpop.f32.mrb[0].mxu0
  %474 = vmatprep.mubr.f32.mxu0 %v45
  %475 = vmatmul.mubr.f32.gmra.mrb[0].mxu0 %v44
  %v476 = vpop.f32.mrb[0].mxu0
  %v477 = vadd.f32 %v287, %v476
  %v478 = vpop.f32.mrb[0].mxu0
  %479 = vmatprep.mubr.f32.mxu0 %v49
  %480 = vmatmul.mubr.f32.gmra.mrb[0].mxu0 %v48
  %v481 = vpop.f32.mrb[0].mxu0
  %v482 = vadd.f32 %v292, %v481
  %v483 = vpop.f32.mrb[0].mxu0
  %484 = vmatprep.mubr.f32.mxu0 %v53
  %485 = vmatmul.mubr.f32.gmra.mrb[0].mxu0 %v52
  %v486 = vpop.f32.mrb[0].mxu0
  %v487 = vadd.f32 %v297, %v486
  %v488 = vpop.f32.mrb[0].mxu0
  %489 = vmatprep.mubr.f32.mxu0 %v57
  %490 = vmatmul.mubr.f32.gmra.mrb[0].mxu0 %v56
  %v491 = vpop.f32.mrb[0].mxu0
  %v492 = vadd.f32 %v302, %v491
  %v493 = vpop.f32.mrb[0].mxu0
  %494 = vmatprep.mubr.f32.mxu0 %v61
  %495 = vmatmul.mubr.f32.gmra.mrb[0].mxu0 %v60
  %v496 = vpop.f32.mrb[0].mxu0
  %v497 = vadd.f32 %v307, %v496
  %v498 = vpop.f32.mrb[0].mxu0
  %499 = vmatprep.mubr.f32.mxu0 %v65
  %500 = vmatmul.mubr.f32.gmra.mrb[0].mxu0 %v64
  %v501 = vpop.f32.mrb[0].mxu0
  %v502 = vadd.f32 %v312, %v501
  %v503 = vpop.f32.mrb[0].mxu0
  %504 = vmatprep.mubr.f32.mxu0 %v69
  %505 = vmatmul.mubr.f32.gmra.mrb[0].mxu0 %v68
  %v506 = vpop.f32.mrb[0].mxu0
  %v507 = vadd.f32 %v317, %v506
  %v508 = vpop.f32.mrb[0].mxu0
  %509 = vmatprep.mubr.f32.mxu0 %v73
  %510 = vmatmul.mubr.f32.gmra.mrb[0].mxu0 %v72
  %v511 = vpop.f32.mrb[0].mxu0
  %v512 = vadd.f32 %v322, %v511
  %v513 = vpop.f32.mrb[0].mxu0
  %514 = vmatprep.mubr.f32.mxu0 %v77
  %515 = vmatmul.mubr.f32.gmra.mrb[0].mxu0 %v76
  %v516 = vpop.f32.mrb[0].mxu0
  %v517 = vadd.f32 %v327, %v516
  %v518 = vpop.f32.mrb[0].mxu0
  %519 = vmatprep.mubr.f32.mxu0 %v81
  %520 = vmatmul.mubr.f32.gmra.mrb[0].mxu0 %v80
  %v521 = vpop.f32.mrb[0].mxu0
  %v522 = vadd.f32 %v332, %v521
  %v523 = vpop.f32.mrb[0].mxu0
  %524 = vmatprep.mubr.f32.mxu0 %v85
  %525 = vmatmul.mubr.f32.gmra.mrb[0].mxu0 %v84
  %v526 = vpop.f32.mrb[0].mxu0
  %v527 = vadd.f32 %v337, %v526
  %v528 = vpop.f32.mrb[0].mxu0
  %529 = vmatprep.mubr.f32.mxu0 %v89
  %530 = vmatmul.mubr.f32.gmra.mrb[0].mxu0 %v88
  %v531 = vpop.f32.mrb[0].mxu0
  %v532 = vadd.f32 %v342, %v531
  %v533 = vpop.f32.mrb[0].mxu0
  %534 = vmatprep.mubr.f32.mxu0 %v93
  %535 = vmatmul.mubr.f32.gmra.mrb[0].mxu0 %v92
  %v536 = vpop.f32.mrb[0].mxu0
  %v537 = vadd.f32 %v347, %v536
  %v538 = vpop.f32.mrb[0].mxu0
  %539 = vmatprep.mubr.f32.mxu0 %v97
  %540 = vmatmul.mubr.f32.gmra.mrb[0].mxu0 %v96
  %v541 = vpop.f32.mrb[0].mxu0
  %v542 = vadd.f32 %v352, %v541
  %v543 = vpop.f32.mrb[0].mxu0
  %544 = vmatprep.mubr.f32.mxu0 %v101
  %545 = vmatmul.mubr.f32.gmra.mrb[0].mxu0 %v100
  %v546 = vpop.f32.mrb[0].mxu0
  %v547 = vadd.f32 %v357, %v546
  %v548 = vpop.f32.mrb[0].mxu0
  %549 = vmatprep.mubr.f32.mxu0 %v105
  %550 = vmatmul.mubr.f32.gmra.mrb[0].mxu0 %v104
  %v551 = vpop.f32.mrb[0].mxu0
  %v552 = vadd.f32 %v362, %v551
  %v553 = vpop.f32.mrb[0].mxu0
  %554 = vmatprep.mubr.f32.mxu0 %v109
  %555 = vmatmul.mubr.f32.gmra.mrb[0].mxu0 %v108
  %v556 = vpop.f32.mrb[0].mxu0
  %v557 = vadd.f32 %v367, %v556
  %v558 = vpop.f32.mrb[0].mxu0
  %559 = vmatprep.mubr.f32.mxu0 %v113
  %560 = vmatmul.mubr.f32.gmra.mrb[0].mxu0 %v112
  %v561 = vpop.f32.mrb[0].mxu0
  %v562 = vadd.f32 %v372, %v561
  %v563 = vpop.f32.mrb[0].mxu0
  %564 = vdwg.mxu0
  %v565 = vmax.f32 %v442, 0.0
  %v566 = vmax.f32 %v447, 0.0
  %v567 = vmax.f32 %v452, 0.0
  %v568 = vmax.f32 %v457, 0.0
  %v569 = vmax.f32 %v462, 0.0
  %v570 = vmax.f32 %v467, 0.0
  %v571 = vmax.f32 %v472, 0.0
  %v572 = vmax.f32 %v477, 0.0
  %v573 = vmax.f32 %v482, 0.0
  %v574 = vmax.f32 %v487, 0.0
  %v575 = vmax.f32 %v492, 0.0
  %v576 = vmax.f32 %v497, 0.0
  %v577 = vmax.f32 %v502, 0.0
  %v578 = vmax.f32 %v507, 0.0
  %v579 = vmax.f32 %v512, 0.0
  %v580 = vmax.f32 %v517, 0.0
  %v581 = vmax.f32 %v522, 0.0
  %v582 = vmax.f32 %v527, 0.0
  %v583 = vmax.f32 %v532, 0.0
  %v584 = vmax.f32 %v537, 0.0
  %v585 = vmax.f32 %v542, 0.0
  %v586 = vmax.f32 %v547, 0.0
  %v587 = vmax.f32 %v552, 0.0
  %v588 = vmax.f32 %v557, 0.0
  %v589 = vmax.f32 %v562, 0.0
  %590 = vst [vmem:[%s3] sm:$0xff] %v565
  %591 = vst [vmem:[%s3 + $0x8] sm:$0xff] %v566
  %592 = vst [vmem:[%s3 + $0x10] sm:$0xff] %v567
  %593 = vst [vmem:[%s3 + $0x18] sm:$0xff] %v568
  %594 = vst [vmem:[%s3 + $0x20] sm:$0xff] %v569
  %595 = vst [vmem:[%s3 + $0x28] sm:$0xff] %v570
  %596 = vst [vmem:[%s3 + $0x30] sm:$0xff] %v571
  %597 = vst [vmem:[%s3 + $0x38] sm:$0xff] %v572
  %598 = vst [vmem:[%s3 + $0x40] sm:$0xff] %v573
  %599 = vst [vmem:[%s3 + $0x48] sm:$0xff] %v574
  %600 = vst [vmem:[%s3 + $0x50] sm:$0xff] %v575
  %601 = vst [vmem:[%s3 + $0x58] sm:$0xff] %v576
  %602 = vst [vmem:[%s3 + $0x60] sm:$0xff] %v577
  %603 = vst [vmem:[%s3 + $0x68] sm:$0xff] %v578
  %604 = vst [vmem:[%s3 + $0x70] sm:$0xff] %v579
  %605 = vst [vmem:[%s3 + $0x78] sm:$0xff] %v580
  %606 = vst [vmem:[%s3 + $0x80] sm:$0xff] %v581
  %607 = vst [vmem:[%s3 + $0x88] sm:$0xff] %v582
  %608 = vst [vmem:[%s3 + $0x90] sm:$0xff] %v583
  %609 = vst [vmem:[%s3 + $0x98] sm:$0xff] %v584
  %610 = vst [vmem:[%s3 + $0xa0] sm:$0xff] %v585
  %611 = vst [vmem:[%s3 + $0xa8] sm:$0xff] %v586
  %612 = vst [vmem:[%s3 + $0xb0] sm:$0xff] %v587
  %613 = vst [vmem:[%s3 + $0xb8] sm:$0xff] %v588
  %614 = vst [vmem:[%s3 + $0xc0] sm:$0xff] %v589
  // Predicated region
  $region14: #{ppo_forward.5} parent=0 // pred_check
    _
  $region15: #{ppo_forward.5} parent=0 // pred_check_branch
    %616 = sbr.rel (0) target = $region17
  $region16: #{ppo_forward.5} parent=0 // pred_region
    _
  $region17: #{ppo_forward.5} parent=0 // pred_fallthru
    _
  // Predicated region
  $region18: #{ppo_forward.5} parent=0 // pred_check
    _
  $region19: #{ppo_forward.5} parent=0 // pred_check_branch
    %618 = sbr.rel (0) target = $region21
  $region20: #{ppo_forward.5} parent=0 // pred_region
    _
  $region21: #{ppo_forward.5} parent=0 // pred_fallthru
    _

// kernel: ppo_forward.6
$region0: #{ppo_forward.6}
  #allocation0 [shape = 'u32[]', space=smem, size = 0x4, offset = 0x4, fixed_abs, tag = 'smem constant byte address 0x4 - core index']
  #allocation1 [shape = 'u32[144,128]{1,0:T(1,128)}', space=vmem, size = 0x12000, scoped, tag = 'internal scratch']
  %s0 = inlined_call_operand.vmem [shape: f32[200,576], index: 0, kind: input, shape index: {}]
  %s1 = inlined_call_operand.vmem [shape: f32[576,128], index: 1, kind: input, shape index: {}]
  %s2 = inlined_call_operand.vmem [shape: f32[1,128], index: 2, kind: input, shape index: {}]
  %s3 = inlined_call_operand.vmem [shape: f32[200,128], index: 3, kind: output, shape index: {}]
  %s4 = sld [smem:[#allocation0]]
  $region22: #{ppo_forward.6} parent=0
    _
  %s6 = ssub.s32 1, %s4
  %s7 = scalar_select 0, %s6, %s4
  // Predicated region
  $region2: #{ppo_forward.6} parent=0 // pred_check
    _
  $region3: #{ppo_forward.6} parent=0 // pred_check_branch
    %9 = sbr.rel (0) target = $region5
  $region4: #{ppo_forward.6} parent=0 // pred_region
    _
  $region5: #{ppo_forward.6} parent=0 // pred_fallthru
    _
  // Predicated region
  $region6: #{ppo_forward.6} parent=0 // pred_check
    _
  $region7: #{ppo_forward.6} parent=0 // pred_check_branch
    %11 = sbr.rel (0) target = $region9
  $region8: #{ppo_forward.6} parent=0 // pred_region
    _
  $region9: #{ppo_forward.6} parent=0 // pred_fallthru
    _
  // Predicated region
  $region10: #{ppo_forward.6} parent=0 // pred_check
    _
  $region11: #{ppo_forward.6} parent=0 // pred_check_branch
    %13 = sbr.rel (0) target = $region13
  $region12: #{ppo_forward.6} parent=0 // pred_region
    _
  $region13: #{ppo_forward.6} parent=0 // pred_fallthru
    _
  %v14 = vld [vmem:[%s0] sm:$0xff]
  %v15 = vld [vmem:[%s0 + $0x8] sm:$0xff]
  %v16 = vld [vmem:[%s0 + $0x10] sm:$0xff]
  %v17 = vld [vmem:[%s0 + $0x18] sm:$0xff]
  %v18 = vld [vmem:[%s0 + $0x20] sm:$0xff]
  %v19 = vld [vmem:[%s0 + $0x28] sm:$0xff]
  %v20 = vld [vmem:[%s0 + $0x30] sm:$0xff]
  %v21 = vld [vmem:[%s0 + $0x38] sm:$0xff]
  %v22 = vld [vmem:[%s0 + $0x40] sm:$0xff]
  %v23 = vld [vmem:[%s0 + $0x48] sm:$0xff]
  %v24 = vld [vmem:[%s0 + $0x50] sm:$0xff]
  %v25 = vld [vmem:[%s0 + $0x58] sm:$0xff]
  %v26 = vld [vmem:[%s0 + $0x60] sm:$0xff]
  %v27 = vld [vmem:[%s0 + $0x68] sm:$0xff]
  %v28 = vld [vmem:[%s0 + $0x70] sm:$0xff]
  %v29 = vld [vmem:[%s0 + $0x78] sm:$0xff]
  %v30 = vld [vmem:[%s0 + $0x80] sm:$0xff]
  %v31 = vld [vmem:[%s0 + $0x88] sm:$0xff]
  %v32 = vld [vmem:[%s0 + $0x90] sm:$0xff]
  %v33 = vld [vmem:[%s0 + $0x98] sm:$0xff]
  %v34 = vld [vmem:[%s0 + $0xa0] sm:$0xff]
  %v35 = vld [vmem:[%s0 + $0xa8] sm:$0xff]
  %v36 = vld [vmem:[%s0 + $0xb0] sm:$0xff]
  %v37 = vld [vmem:[%s0 + $0xb8] sm:$0xff]
  %v38 = vld [vmem:[%s0 + $0xc0] sm:$0xff]
  %v39 = vld [vmem:[%s0 + $0xc8] sm:$0xff]
  %v40 = vld [vmem:[%s0 + $0xd0] sm:$0xff]
  %v41 = vld [vmem:[%s0 + $0xd8] sm:$0xff]
  %v42 = vld [vmem:[%s0 + $0xe0] sm:$0xff]
  %v43 = vld [vmem:[%s0 + $0xe8] sm:$0xff]
  %v44 = vld [vmem:[%s0 + $0xf0] sm:$0xff]
  %v45 = vld [vmem:[%s0 + $0xf8] sm:$0xff]
  %v46 = vld [vmem:[%s0 + $0x100] sm:$0xff]
  %v47 = vld [vmem:[%s0 + $0x108] sm:$0xff]
  %v48 = vld [vmem:[%s0 + $0x110] sm:$0xff]
  %v49 = vld [vmem:[%s0 + $0x118] sm:$0xff]
  %v50 = vld [vmem:[%s0 + $0x120] sm:$0xff]
  %v51 = vld [vmem:[%s0 + $0x128] sm:$0xff]
  %v52 = vld [vmem:[%s0 + $0x130] sm:$0xff]
  %v53 = vld [vmem:[%s0 + $0x138] sm:$0xff]
  %v54 = vld [vmem:[%s0 + $0x140] sm:$0xff]
  %v55 = vld [vmem:[%s0 + $0x148] sm:$0xff]
  %v56 = vld [vmem:[%s0 + $0x150] sm:$0xff]
  %v57 = vld [vmem:[%s0 + $0x158] sm:$0xff]
  %v58 = vld [vmem:[%s0 + $0x160] sm:$0xff]
  %v59 = vld [vmem:[%s0 + $0x168] sm:$0xff]
  %v60 = vld [vmem:[%s0 + $0x170] sm:$0xff]
  %v61 = vld [vmem:[%s0 + $0x178] sm:$0xff]
  %v62 = vld [vmem:[%s0 + $0x180] sm:$0xff]
  %v63 = vld [vmem:[%s0 + $0x188] sm:$0xff]
  %v64 = vld [vmem:[%s0 + $0x190] sm:$0xff]
  %v65 = vld [vmem:[%s0 + $0x198] sm:$0xff]
  %v66 = vld [vmem:[%s0 + $0x1a0] sm:$0xff]
  %v67 = vld [vmem:[%s0 + $0x1a8] sm:$0xff]
  %v68 = vld [vmem:[%s0 + $0x1b0] sm:$0xff]
  %v69 = vld [vmem:[%s0 + $0x1b8] sm:$0xff]
  %v70 = vld [vmem:[%s0 + $0x1c0] sm:$0xff]
  %v71 = vld [vmem:[%s0 + $0x1c8] sm:$0xff]
  %v72 = vld [vmem:[%s0 + $0x1d0] sm:$0xff]
  %v73 = vld [vmem:[%s0 + $0x1d8] sm:$0xff]
  %v74 = vld [vmem:[%s0 + $0x1e0] sm:$0xff]
  %v75 = vld [vmem:[%s0 + $0x1e8] sm:$0xff]
  %v76 = vld [vmem:[%s0 + $0x1f0] sm:$0xff]
  %v77 = vld [vmem:[%s0 + $0x1f8] sm:$0xff]
  %v78 = vld [vmem:[%s0 + $0x200] sm:$0xff]
  %v79 = vld [vmem:[%s0 + $0x208] sm:$0xff]
  %v80 = vld [vmem:[%s0 + $0x210] sm:$0xff]
  %v81 = vld [vmem:[%s0 + $0x218] sm:$0xff]
  %v82 = vld [vmem:[%s0 + $0x220] sm:$0xff]
  %v83 = vld [vmem:[%s0 + $0x228] sm:$0xff]
  %v84 = vld [vmem:[%s0 + $0x230] sm:$0xff]
  %v85 = vld [vmem:[%s0 + $0x238] sm:$0xff]
  %v86 = vld [vmem:[%s0 + $0x240] sm:$0xff]
  %v87 = vld [vmem:[%s0 + $0x248] sm:$0xff]
  %v88 = vld [vmem:[%s0 + $0x250] sm:$0xff]
  %v89 = vld [vmem:[%s0 + $0x258] sm:$0xff]
  %v90 = vld [vmem:[%s0 + $0x260] sm:$0xff]
  %v91 = vld [vmem:[%s0 + $0x268] sm:$0xff]
  %v92 = vld [vmem:[%s0 + $0x270] sm:$0xff]
  %v93 = vld [vmem:[%s0 + $0x278] sm:$0xff]
  %v94 = vld [vmem:[%s0 + $0x280] sm:$0xff]
  %v95 = vld [vmem:[%s0 + $0x288] sm:$0xff]
  %v96 = vld [vmem:[%s0 + $0x290] sm:$0xff]
  %v97 = vld [vmem:[%s0 + $0x298] sm:$0xff]
  %v98 = vld [vmem:[%s0 + $0x2a0] sm:$0xff]
  %v99 = vld [vmem:[%s0 + $0x2a8] sm:$0xff]
  %v100 = vld [vmem:[%s0 + $0x2b0] sm:$0xff]
  %v101 = vld [vmem:[%s0 + $0x2b8] sm:$0xff]
  %v102 = vld [vmem:[%s0 + $0x2c0] sm:$0xff]
  %v103 = vld [vmem:[%s0 + $0x2c8] sm:$0xff]
  %v104 = vld [vmem:[%s0 + $0x2d0] sm:$0xff]
  %v105 = vld [vmem:[%s0 + $0x2d8] sm:$0xff]
  %v106 = vld [vmem:[%s0 + $0x2e0] sm:$0xff]
  %v107 = vld [vmem:[%s0 + $0x2e8] sm:$0xff]
  %v108 = vld [vmem:[%s0 + $0x2f0] sm:$0xff]
  %v109 = vld [vmem:[%s0 + $0x2f8] sm:$0xff]
  %v110 = vld [vmem:[%s0 + $0x300] sm:$0xff]
  %v111 = vld [vmem:[%s0 + $0x308] sm:$0xff]
  %v112 = vld [vmem:[%s0 + $0x310] sm:$0xff]
  %v113 = vld [vmem:[%s0 + $0x318] sm:$0xff]
  %v114 = vld [vmem:[%s0 + $0x320] sm:$0xff]
  %v115 = vld [vmem:[%s0 + $0x328] sm:$0xff]
  %v116 = vld [vmem:[%s0 + $0x330] sm:$0xff]
  %v117 = vld [vmem:[%s0 + $0x338] sm:$0xff]
  %v118 = vld [vmem:[%s0 + $0x340] sm:$0xff]
  %v119 = vld [vmem:[%s0 + $0x348] sm:$0xff]
  %v120 = vld [vmem:[%s0 + $0x350] sm:$0xff]
  %v121 = vld [vmem:[%s0 + $0x358] sm:$0xff]
  %v122 = vld [vmem:[%s0 + $0x360] sm:$0xff]
  %v123 = vld [vmem:[%s0 + $0x368] sm:$0xff]
  %v124 = vld [vmem:[%s0 + $0x370] sm:$0xff]
  %v125 = vld [vmem:[%s0 + $0x378] sm:$0xff]
  %v126 = vld [vmem:[%s0 + $0x380] sm:$0xff]
  %v127 = vld [vmem:[%s0 + $0x388] sm:$0xff]
  %v128 = vld [vmem:[%s0 + $0x390] sm:$0xff]
  %v129 = vld [vmem:[%s0 + $0x398] sm:$0xff]
  %v130 = vld [vmem:[%s0 + $0x3a0] sm:$0xff]
  %v131 = vld [vmem:[%s0 + $0x3a8] sm:$0xff]
  %v132 = vld [vmem:[%s0 + $0x3b0] sm:$0xff]
  %v133 = vld [vmem:[%s0 + $0x3b8] sm:$0xff]
  %v134 = vld [vmem:[%s0 + $0x3c0] sm:$0xff]
  %v135 = vld [vmem:[%s0 + $0x3c8] sm:$0xff]
  %v136 = vld [vmem:[%s0 + $0x3d0] sm:$0xff]
  %v137 = vld [vmem:[%s0 + $0x3d8] sm:$0xff]
  %v138 = vld [vmem:[%s0 + $0x3e0] sm:$0xff]
  %v139 = vld [vmem:[%s1] sm:$0xff]
  %v140 = vld [vmem:[%s1 + $0x8] sm:$0xff]
  %v141 = vld [vmem:[%s1 + $0x10] sm:$0xff]
  %v142 = vld [vmem:[%s1 + $0x18] sm:$0xff]
  %v143 = vld [vmem:[%s1 + $0x20] sm:$0xff]
  %v144 = vld [vmem:[%s1 + $0x28] sm:$0xff]
  %v145 = vld [vmem:[%s1 + $0x30] sm:$0xff]
  %v146 = vld [vmem:[%s1 + $0x38] sm:$0xff]
  %v147 = vld [vmem:[%s1 + $0x40] sm:$0xff]
  %v148 = vld [vmem:[%s1 + $0x48] sm:$0xff]
  %v149 = vld [vmem:[%s1 + $0x50] sm:$0xff]
  %v150 = vld [vmem:[%s1 + $0x58] sm:$0xff]
  %v151 = vld [vmem:[%s1 + $0x60] sm:$0xff]
  %v152 = vld [vmem:[%s1 + $0x68] sm:$0xff]
  %v153 = vld [vmem:[%s1 + $0x70] sm:$0xff]
  %v154 = vld [vmem:[%s1 + $0x78] sm:$0xff]
  %v155 = vld [vmem:[%s1 + $0x80] sm:$0xff]
  %v156 = vld [vmem:[%s1 + $0x88] sm:$0xff]
  %v157 = vld [vmem:[%s1 + $0x90] sm:$0xff]
  %v158 = vld [vmem:[%s1 + $0x98] sm:$0xff]
  %v159 = vld [vmem:[%s1 + $0xa0] sm:$0xff]
  %v160 = vld [vmem:[%s1 + $0xa8] sm:$0xff]
  %v161 = vld [vmem:[%s1 + $0xb0] sm:$0xff]
  %v162 = vld [vmem:[%s1 + $0xb8] sm:$0xff]
  %v163 = vld [vmem:[%s1 + $0xc0] sm:$0xff]
  %v164 = vld [vmem:[%s1 + $0xc8] sm:$0xff]
  %v165 = vld [vmem:[%s1 + $0xd0] sm:$0xff]
  %v166 = vld [vmem:[%s1 + $0xd8] sm:$0xff]
  %v167 = vld [vmem:[%s1 + $0xe0] sm:$0xff]
  %v168 = vld [vmem:[%s1 + $0xe8] sm:$0xff]
  %v169 = vld [vmem:[%s1 + $0xf0] sm:$0xff]
  %v170 = vld [vmem:[%s1 + $0xf8] sm:$0xff]
  %v171 = vld [vmem:[%s1 + $0x100] sm:$0xff]
  %v172 = vld [vmem:[%s1 + $0x108] sm:$0xff]
  %v173 = vld [vmem:[%s1 + $0x110] sm:$0xff]
  %v174 = vld [vmem:[%s1 + $0x118] sm:$0xff]
  %v175 = vld [vmem:[%s1 + $0x120] sm:$0xff]
  %v176 = vld [vmem:[%s1 + $0x128] sm:$0xff]
  %v177 = vld [vmem:[%s1 + $0x130] sm:$0xff]
  %v178 = vld [vmem:[%s1 + $0x138] sm:$0xff]
  %v179 = vld [vmem:[%s1 + $0x140] sm:$0xff]
  %v180 = vld [vmem:[%s1 + $0x148] sm:$0xff]
  %v181 = vld [vmem:[%s1 + $0x150] sm:$0xff]
  %v182 = vld [vmem:[%s1 + $0x158] sm:$0xff]
  %v183 = vld [vmem:[%s1 + $0x160] sm:$0xff]
  %v184 = vld [vmem:[%s1 + $0x168] sm:$0xff]
  %v185 = vld [vmem:[%s1 + $0x170] sm:$0xff]
  %v186 = vld [vmem:[%s1 + $0x178] sm:$0xff]
  %v187 = vld [vmem:[%s1 + $0x180] sm:$0xff]
  %v188 = vld [vmem:[%s1 + $0x188] sm:$0xff]
  %v189 = vld [vmem:[%s1 + $0x190] sm:$0xff]
  %v190 = vld [vmem:[%s1 + $0x198] sm:$0xff]
  %v191 = vld [vmem:[%s1 + $0x1a0] sm:$0xff]
  %v192 = vld [vmem:[%s1 + $0x1a8] sm:$0xff]
  %v193 = vld [vmem:[%s1 + $0x1b0] sm:$0xff]
  %v194 = vld [vmem:[%s1 + $0x1b8] sm:$0xff]
  %v195 = vld [vmem:[%s1 + $0x1c0] sm:$0xff]
  %v196 = vld [vmem:[%s1 + $0x1c8] sm:$0xff]
  %v197 = vld [vmem:[%s1 + $0x1d0] sm:$0xff]
  %v198 = vld [vmem:[%s1 + $0x1d8] sm:$0xff]
  %v199 = vld [vmem:[%s1 + $0x1e0] sm:$0xff]
  %v200 = vld [vmem:[%s1 + $0x1e8] sm:$0xff]
  %v201 = vld [vmem:[%s1 + $0x1f0] sm:$0xff]
  %v202 = vld [vmem:[%s1 + $0x1f8] sm:$0xff]
  %v203 = vld [vmem:[%s1 + $0x200] sm:$0xff]
  %v204 = vld [vmem:[%s1 + $0x208] sm:$0xff]
  %v205 = vld [vmem:[%s1 + $0x210] sm:$0xff]
  %v206 = vld [vmem:[%s1 + $0x218] sm:$0xff]
  %v207 = vld [vmem:[%s1 + $0x220] sm:$0xff]
  %v208 = vld [vmem:[%s1 + $0x228] sm:$0xff]
  %v209 = vld [vmem:[%s1 + $0x230] sm:$0xff]
  %v210 = vld [vmem:[%s1 + $0x238] sm:$0xff]
  %v211 = vld [vmem:[%s2] sm:$0x1]
  %v213 = vlaneseq
  %v214 = vshrl.u32 %v213, 7
  %v215 = vsub.s32 0, %v214
  %v216 = vrot.slane %v211, %v215
  %vm218 = vcmask 523264
  %v220 = vsel %vm218, %v18, 0
  %v223 = vsel %vm218, %v23, 0
  %v226 = vsel %vm218, %v28, 0
  %v229 = vsel %vm218, %v33, 0
  %v232 = vsel %vm218, %v38, 0
  %v235 = vsel %vm218, %v43, 0
  %v238 = vsel %vm218, %v48, 0
  %v241 = vsel %vm218, %v53, 0
  %v244 = vsel %vm218, %v58, 0
  %v247 = vsel %vm218, %v63, 0
  %v250 = vsel %vm218, %v68, 0
  %v253 = vsel %vm218, %v73, 0
  %v256 = vsel %vm218, %v78, 0
  %v259 = vsel %vm218, %v83, 0
  %v262 = vsel %vm218, %v88, 0
  %v265 = vsel %vm218, %v93, 0
  %v268 = vsel %vm218, %v98, 0
  %v271 = vsel %vm218, %v103, 0
  %v274 = vsel %vm218, %v108, 0
  %v277 = vsel %vm218, %v113, 0
  %v280 = vsel %vm218, %v118, 0
  %v283 = vsel %vm218, %v123, 0
  %v286 = vsel %vm218, %v128, 0
  %v289 = vsel %vm218, %v133, 0
  %v292 = vsel %vm218, %v138, 0
  %294 = vmatprep.subr.mxu0 0.0
  %295 = vmatpush1.msra.mxu0 %v139
  %296 = vmatprep.subr.mxu0 0.0
  %297 = vmatpush1.msra.mxu0 %v140
  %298 = vmatprep.subr.mxu0 0.0
  %299 = vmatpush1.msra.mxu0 %v141
  %300 = vmatprep.subr.mxu0 0.0
  %301 = vmatpush1.msra.mxu0 %v142
  %302 = vmatprep.subr.mxu0 0.0
  %303 = vmatpush1.msra.mxu0 %v143
  %304 = vmatprep.subr.mxu0 0.0
  %305 = vmatpush1.msra.mxu0 %v144
  %306 = vmatprep.subr.mxu0 0.0
  %307 = vmatpush1.msra.mxu0 %v145
  %308 = vmatprep.subr.mxu0 0.0
  %309 = vmatpush1.msra.mxu0 %v146
  %310 = vmatprep.subr.mxu0 0.0
  %311 = vmatpush1.msra.mxu0 %v147
  %312 = vmatprep.subr.mxu0 0.0
  %313 = vmatpush1.msra.mxu0 %v148
  %314 = vmatprep.subr.mxu0 0.0
  %315 = vmatpush1.msra.mxu0 %v149
  %316 = vmatprep.subr.mxu0 0.0
  %317 = vmatpush1.msra.mxu0 %v150
  %318 = vmatprep.subr.mxu0 0.0
  %319 = vmatpush1.msra.mxu0 %v151
  %320 = vmatprep.subr.mxu0 0.0
  %321 = vmatpush1.msra.mxu0 %v152
  %322 = vmatprep.subr.mxu0 0.0
  %323 = vmatpush1.msra.mxu0 %v153
  %324 = vmatprep.subr.mxu0 0.0
  %325 = vmatpush1.msra.mxu0 %v154
  %326 = vmatprep.subr.mxu0 0.0
  %327 = vmatpush1.msra.mxu0 %v155
  %328 = vmatprep.subr.mxu0 0.0
  %329 = vmatpush1.msra.mxu0 %v156
  %330 = vmatprep.subr.mxu0 0.0
  %331 = vmatpush1.msra.mxu0 %v157
  %332 = vmatprep.subr.mxu0 0.0
  %333 = vmatpush1.msra.mxu0 %v158
  %334 = vmatprep.subr.mxu0 0.0
  %335 = vmatpush1.msra.mxu0 %v159
  %336 = vmatprep.subr.mxu0 0.0
  %337 = vmatpush1.msra.mxu0 %v160
  %338 = vmatprep.subr.mxu0 0.0
  %339 = vmatpush1.msra.mxu0 %v161
  %340 = vmatprep.subr.mxu0 0.0
  %341 = vmatpush1.msra.mxu0 %v162
  %342 = vmatprep.subr.mxu0 0.0
  %343 = vmatpush1.msra.mxu0 %v163
  %344 = vmatprep.subr.mxu0 0.0
  %345 = vmatpush1.msra.mxu0 %v164
  %346 = vmatprep.subr.mxu0 0.0
  %347 = vmatpush1.msra.mxu0 %v165
  %348 = vmatprep.subr.mxu0 0.0
  %349 = vmatpush1.msra.mxu0 %v166
  %350 = vmatprep.subr.mxu0 0.0
  %351 = vmatpush1.msra.mxu0 %v167
  %352 = vmatprep.subr.mxu0 0.0
  %353 = vmatpush1.msra.mxu0 %v168
  %354 = vmatprep.subr.mxu0 0.0
  %355 = vmatpush1.msra.mxu0 %v169
  %356 = vmatprep.subr.mxu0 0.0
  %357 = vmatpush1.msra.mxu0 %v170
  %358 = vmatprep.mubr.f32.mxu0 %v15
  %359 = vmatmul.mubr.f32.gmra.mrb[0].mxu0 %v14
  %v360 = vpop.f32.mrb[0].mxu0
  %v361 = vadd.f32 %v216, %v360
  %v362 = vpop.f32.mrb[0].mxu0
  %363 = vmatprep.mubr.f32.mxu0 %v20
  %364 = vmatmul.mubr.f32.gmra.mrb[0].mxu0 %v19
  %v365 = vpop.f32.mrb[0].mxu0
  %v366 = vadd.f32 %v216, %v365
  %v367 = vpop.f32.mrb[0].mxu0
  %368 = vmatprep.mubr.f32.mxu0 %v25
  %369 = vmatmul.mubr.f32.gmra.mrb[0].mxu0 %v24
  %v370 = vpop.f32.mrb[0].mxu0
  %v371 = vadd.f32 %v216, %v370
  %v372 = vpop.f32.mrb[0].mxu0
  %373 = vmatprep.mubr.f32.mxu0 %v30
  %374 = vmatmul.mubr.f32.gmra.mrb[0].mxu0 %v29
  %v375 = vpop.f32.mrb[0].mxu0
  %v376 = vadd.f32 %v216, %v375
  %v377 = vpop.f32.mrb[0].mxu0
  %378 = vmatprep.mubr.f32.mxu0 %v35
  %379 = vmatmul.mubr.f32.gmra.mrb[0].mxu0 %v34
  %v380 = vpop.f32.mrb[0].mxu0
  %v381 = vadd.f32 %v216, %v380
  %v382 = vpop.f32.mrb[0].mxu0
  %383 = vmatprep.mubr.f32.mxu0 %v40
  %384 = vmatmul.mubr.f32.gmra.mrb[0].mxu0 %v39
  %v385 = vpop.f32.mrb[0].mxu0
  %v386 = vadd.f32 %v216, %v385
  %v387 = vpop.f32.mrb[0].mxu0
  %388 = vmatprep.mubr.f32.mxu0 %v45
  %389 = vmatmul.mubr.f32.gmra.mrb[0].mxu0 %v44
  %v390 = vpop.f32.mrb[0].mxu0
  %v391 = vadd.f32 %v216, %v390
  %v392 = vpop.f32.mrb[0].mxu0
  %393 = vmatprep.mubr.f32.mxu0 %v50
  %394 = vmatmul.mubr.f32.gmra.mrb[0].mxu0 %v49
  %v395 = vpop.f32.mrb[0].mxu0
  %v396 = vadd.f32 %v216, %v395
  %v397 = vpop.f32.mrb[0].mxu0
  %398 = vmatprep.mubr.f32.mxu0 %v55
  %399 = vmatmul.mubr.f32.gmra.mrb[0].mxu0 %v54
  %v400 = vpop.f32.mrb[0].mxu0
  %v401 = vadd.f32 %v216, %v400
  %v402 = vpop.f32.mrb[0].mxu0
  %403 = vmatprep.mubr.f32.mxu0 %v60
  %404 = vmatmul.mubr.f32.gmra.mrb[0].mxu0 %v59
  %v405 = vpop.f32.mrb[0].mxu0
  %v406 = vadd.f32 %v216, %v405
  %v407 = vpop.f32.mrb[0].mxu0
  %408 = vmatprep.mubr.f32.mxu0 %v65
  %409 = vmatmul.mubr.f32.gmra.mrb[0].mxu0 %v64
  %v410 = vpop.f32.mrb[0].mxu0
  %v411 = vadd.f32 %v216, %v410
  %v412 = vpop.f32.mrb[0].mxu0
  %413 = vmatprep.mubr.f32.mxu0 %v70
  %414 = vmatmul.mubr.f32.gmra.mrb[0].mxu0 %v69
  %v415 = vpop.f32.mrb[0].mxu0
  %v416 = vadd.f32 %v216, %v415
  %v417 = vpop.f32.mrb[0].mxu0
  %418 = vmatprep.mubr.f32.mxu0 %v75
  %419 = vmatmul.mubr.f32.gmra.mrb[0].mxu0 %v74
  %v420 = vpop.f32.mrb[0].mxu0
  %v421 = vadd.f32 %v216, %v420
  %v422 = vpop.f32.mrb[0].mxu0
  %423 = vmatprep.mubr.f32.mxu0 %v80
  %424 = vmatmul.mubr.f32.gmra.mrb[0].mxu0 %v79
  %v425 = vpop.f32.mrb[0].mxu0
  %v426 = vadd.f32 %v216, %v425
  %v427 = vpop.f32.mrb[0].mxu0
  %428 = vmatprep.mubr.f32.mxu0 %v85
  %429 = vmatmul.mubr.f32.gmra.mrb[0].mxu0 %v84
  %v430 = vpop.f32.mrb[0].mxu0
  %v431 = vadd.f32 %v216, %v430
  %v432 = vpop.f32.mrb[0].mxu0
  %433 = vmatprep.mubr.f32.mxu0 %v90
  %434 = vmatmul.mubr.f32.gmra.mrb[0].mxu0 %v89
  %v435 = vpop.f32.mrb[0].mxu0
  %v436 = vadd.f32 %v216, %v435
  %v437 = vpop.f32.mrb[0].mxu0
  %438 = vmatprep.mubr.f32.mxu0 %v95
  %439 = vmatmul.mubr.f32.gmra.mrb[0].mxu0 %v94
  %v440 = vpop.f32.mrb[0].mxu0
  %v441 = vadd.f32 %v216, %v440
  %v442 = vpop.f32.mrb[0].mxu0
  %443 = vmatprep.mubr.f32.mxu0 %v100
  %444 = vmatmul.mubr.f32.gmra.mrb[0].mxu0 %v99
  %v445 = vpop.f32.mrb[0].mxu0
  %v446 = vadd.f32 %v216, %v445
  %v447 = vpop.f32.mrb[0].mxu0
  %448 = vmatprep.mubr.f32.mxu0 %v105
  %449 = vmatmul.mubr.f32.gmra.mrb[0].mxu0 %v104
  %v450 = vpop.f32.mrb[0].mxu0
  %v451 = vadd.f32 %v216, %v450
  %v452 = vpop.f32.mrb[0].mxu0
  %453 = vmatprep.mubr.f32.mxu0 %v110
  %454 = vmatmul.mubr.f32.gmra.mrb[0].mxu0 %v109
  %v455 = vpop.f32.mrb[0].mxu0
  %v456 = vadd.f32 %v216, %v455
  %v457 = vpop.f32.mrb[0].mxu0
  %458 = vmatprep.mubr.f32.mxu0 %v115
  %459 = vmatmul.mubr.f32.gmra.mrb[0].mxu0 %v114
  %v460 = vpop.f32.mrb[0].mxu0
  %v461 = vadd.f32 %v216, %v460
  %v462 = vpop.f32.mrb[0].mxu0
  %463 = vmatprep.mubr.f32.mxu0 %v120
  %464 = vmatmul.mubr.f32.gmra.mrb[0].mxu0 %v119
  %v465 = vpop.f32.mrb[0].mxu0
  %v466 = vadd.f32 %v216, %v465
  %v467 = vpop.f32.mrb[0].mxu0
  %468 = vmatprep.mubr.f32.mxu0 %v125
  %469 = vmatmul.mubr.f32.gmra.mrb[0].mxu0 %v124
  %v470 = vpop.f32.mrb[0].mxu0
  %v471 = vadd.f32 %v216, %v470
  %v472 = vpop.f32.mrb[0].mxu0
  %473 = vmatprep.mubr.f32.mxu0 %v130
  %474 = vmatmul.mubr.f32.gmra.mrb[0].mxu0 %v129
  %v475 = vpop.f32.mrb[0].mxu0
  %v476 = vadd.f32 %v216, %v475
  %v477 = vpop.f32.mrb[0].mxu0
  %478 = vmatprep.mubr.f32.mxu0 %v135
  %479 = vmatmul.mubr.f32.gmra.mrb[0].mxu0 %v134
  %v480 = vpop.f32.mrb[0].mxu0
  %v481 = vadd.f32 %v216, %v480
  %v482 = vpop.f32.mrb[0].mxu0
  %483 = vdwg.mxu0
  %484 = vmatprep.subr.mxu0 0.0
  %485 = vmatpush1.msra.mxu0 %v171
  %486 = vmatprep.subr.mxu0 0.0
  %487 = vmatpush1.msra.mxu0 %v172
  %488 = vmatprep.subr.mxu0 0.0
  %489 = vmatpush1.msra.mxu0 %v173
  %490 = vmatprep.subr.mxu0 0.0
  %491 = vmatpush1.msra.mxu0 %v174
  %492 = vmatprep.subr.mxu0 0.0
  %493 = vmatpush1.msra.mxu0 %v175
  %494 = vmatprep.subr.mxu0 0.0
  %495 = vmatpush1.msra.mxu0 %v176
  %496 = vmatprep.subr.mxu0 0.0
  %497 = vmatpush1.msra.mxu0 %v177
  %498 = vmatprep.subr.mxu0 0.0
  %499 = vmatpush1.msra.mxu0 %v178
  %500 = vmatprep.subr.mxu0 0.0
  %501 = vmatpush1.msra.mxu0 %v179
  %502 = vmatprep.subr.mxu0 0.0
  %503 = vmatpush1.msra.mxu0 %v180
  %504 = vmatprep.subr.mxu0 0.0
  %505 = vmatpush1.msra.mxu0 %v181
  %506 = vmatprep.subr.mxu0 0.0
  %507 = vmatpush1.msra.mxu0 %v182
  %508 = vmatprep.subr.mxu0 0.0
  %509 = vmatpush1.msra.mxu0 %v183
  %510 = vmatprep.subr.mxu0 0.0
  %511 = vmatpush1.msra.mxu0 %v184
  %512 = vmatprep.subr.mxu0 0.0
  %513 = vmatpush1.msra.mxu0 %v185
  %514 = vmatprep.subr.mxu0 0.0
  %515 = vmatpush1.msra.mxu0 %v186
  %516 = vmatprep.subr.mxu0 0.0
  %517 = vmatpush1.msra.mxu0 %v187
  %518 = vmatprep.subr.mxu0 0.0
  %519 = vmatpush1.msra.mxu0 %v188
  %520 = vmatprep.subr.mxu0 0.0
  %521 = vmatpush1.msra.mxu0 %v189
  %522 = vmatprep.subr.mxu0 0.0
  %523 = vmatpush1.msra.mxu0 %v190
  %524 = vmatprep.subr.mxu0 0.0
  %525 = vmatpush1.msra.mxu0 %v191
  %526 = vmatprep.subr.mxu0 0.0
  %527 = vmatpush1.msra.mxu0 %v192
  %528 = vmatprep.subr.mxu0 0.0
  %529 = vmatpush1.msra.mxu0 %v193
  %530 = vmatprep.subr.mxu0 0.0
  %531 = vmatpush1.msra.mxu0 %v194
  %532 = vmatprep.subr.mxu0 0.0
  %533 = vmatpush1.msra.mxu0 %v195
  %534 = vmatprep.subr.mxu0 0.0
  %535 = vmatpush1.msra.mxu0 %v196
  %536 = vmatprep.subr.mxu0 0.0
  %537 = vmatpush1.msra.mxu0 %v197
  %538 = vmatprep.subr.mxu0 0.0
  %539 = vmatpush1.msra.mxu0 %v198
  %540 = vmatprep.subr.mxu0 0.0
  %541 = vmatpush1.msra.mxu0 %v199
  %542 = vmatprep.subr.mxu0 0.0
  %543 = vmatpush1.msra.mxu0 %v200
  %544 = vmatprep.subr.mxu0 0.0
  %545 = vmatpush1.msra.mxu0 %v201
  %546 = vmatprep.subr.mxu0 0.0
  %547 = vmatpush1.msra.mxu0 %v202
  %548 = vmatprep.mubr.f32.mxu0 %v17
  %549 = vmatmul.mubr.f32.gmra.mrb[0].mxu0 %v16
  %v550 = vpop.f32.mrb[0].mxu0
  %v551 = vadd.f32 %v361, %v550
  %v552 = vpop.f32.mrb[0].mxu0
  %553 = vmatprep.mubr.f32.mxu0 %v22
  %554 = vmatmul.mubr.f32.gmra.mrb[0].mxu0 %v21
  %v555 = vpop.f32.mrb[0].mxu0
  %v556 = vadd.f32 %v366, %v555
  %v557 = vpop.f32.mrb[0].mxu0
  %558 = vmatprep.mubr.f32.mxu0 %v27
  %559 = vmatmul.mubr.f32.gmra.mrb[0].mxu0 %v26
  %v560 = vpop.f32.mrb[0].mxu0
  %v561 = vadd.f32 %v371, %v560
  %v562 = vpop.f32.mrb[0].mxu0
  %563 = vmatprep.mubr.f32.mxu0 %v32
  %564 = vmatmul.mubr.f32.gmra.mrb[0].mxu0 %v31
  %v565 = vpop.f32.mrb[0].mxu0
  %v566 = vadd.f32 %v376, %v565
  %v567 = vpop.f32.mrb[0].mxu0
  %568 = vmatprep.mubr.f32.mxu0 %v37
  %569 = vmatmul.mubr.f32.gmra.mrb[0].mxu0 %v36
  %v570 = vpop.f32.mrb[0].mxu0
  %v571 = vadd.f32 %v381, %v570
  %v572 = vpop.f32.mrb[0].mxu0
  %573 = vmatprep.mubr.f32.mxu0 %v42
  %574 = vmatmul.mubr.f32.gmra.mrb[0].mxu0 %v41
  %v575 = vpop.f32.mrb[0].mxu0
  %v576 = vadd.f32 %v386, %v575
  %v577 = vpop.f32.mrb[0].mxu0
  %578 = vmatprep.mubr.f32.mxu0 %v47
  %579 = vmatmul.mubr.f32.gmra.mrb[0].mxu0 %v46
  %v580 = vpop.f32.mrb[0].mxu0
  %v581 = vadd.f32 %v391, %v580
  %v582 = vpop.f32.mrb[0].mxu0
  %583 = vmatprep.mubr.f32.mxu0 %v52
  %584 = vmatmul.mubr.f32.gmra.mrb[0].mxu0 %v51
  %v585 = vpop.f32.mrb[0].mxu0
  %v586 = vadd.f32 %v396, %v585
  %v587 = vpop.f32.mrb[0].mxu0
  %588 = vmatprep.mubr.f32.mxu0 %v57
  %589 = vmatmul.mubr.f32.gmra.mrb[0].mxu0 %v56
  %v590 = vpop.f32.mrb[0].mxu0
  %v591 = vadd.f32 %v401, %v590
  %v592 = vpop.f32.mrb[0].mxu0
  %593 = vmatprep.mubr.f32.mxu0 %v62
  %594 = vmatmul.mubr.f32.gmra.mrb[0].mxu0 %v61
  %v595 = vpop.f32.mrb[0].mxu0
  %v596 = vadd.f32 %v406, %v595
  %v597 = vpop.f32.mrb[0].mxu0
  %598 = vmatprep.mubr.f32.mxu0 %v67
  %599 = vmatmul.mubr.f32.gmra.mrb[0].mxu0 %v66
  %v600 = vpop.f32.mrb[0].mxu0
  %v601 = vadd.f32 %v411, %v600
  %v602 = vpop.f32.mrb[0].mxu0
  %603 = vmatprep.mubr.f32.mxu0 %v72
  %604 = vmatmul.mubr.f32.gmra.mrb[0].mxu0 %v71
  %v605 = vpop.f32.mrb[0].mxu0
  %v606 = vadd.f32 %v416, %v605
  %v607 = vpop.f32.mrb[0].mxu0
  %608 = vmatprep.mubr.f32.mxu0 %v77
  %609 = vmatmul.mubr.f32.gmra.mrb[0].mxu0 %v76
  %v610 = vpop.f32.mrb[0].mxu0
  %v611 = vadd.f32 %v421, %v610
  %v612 = vpop.f32.mrb[0].mxu0
  %613 = vmatprep.mubr.f32.mxu0 %v82
  %614 = vmatmul.mubr.f32.gmra.mrb[0].mxu0 %v81
  %v615 = vpop.f32.mrb[0].mxu0
  %v616 = vadd.f32 %v426, %v615
  %v617 = vpop.f32.mrb[0].mxu0
  %618 = vmatprep.mubr.f32.mxu0 %v87
  %619 = vmatmul.mubr.f32.gmra.mrb[0].mxu0 %v86
  %v620 = vpop.f32.mrb[0].mxu0
  %v621 = vadd.f32 %v431, %v620
  %v622 = vpop.f32.mrb[0].mxu0
  %623 = vmatprep.mubr.f32.mxu0 %v92
  %624 = vmatmul.mubr.f32.gmra.mrb[0].mxu0 %v91
  %v625 = vpop.f32.mrb[0].mxu0
  %v626 = vadd.f32 %v436, %v625
  %v627 = vpop.f32.mrb[0].mxu0
  %628 = vmatprep.mubr.f32.mxu0 %v97
  %629 = vmatmul.mubr.f32.gmra.mrb[0].mxu0 %v96
  %v630 = vpop.f32.mrb[0].mxu0
  %v631 = vadd.f32 %v441, %v630
  %v632 = vpop.f32.mrb[0].mxu0
  %633 = vmatprep.mubr.f32.mxu0 %v102
  %634 = vmatmul.mubr.f32.gmra.mrb[0].mxu0 %v101
  %v635 = vpop.f32.mrb[0].mxu0
  %v636 = vadd.f32 %v446, %v635
  %v637 = vpop.f32.mrb[0].mxu0
  %638 = vmatprep.mubr.f32.mxu0 %v107
  %639 = vmatmul.mubr.f32.gmra.mrb[0].mxu0 %v106
  %v640 = vpop.f32.mrb[0].mxu0
  %v641 = vadd.f32 %v451, %v640
  %v642 = vpop.f32.mrb[0].mxu0
  %643 = vmatprep.mubr.f32.mxu0 %v112
  %644 = vmatmul.mubr.f32.gmra.mrb[0].mxu0 %v111
  %v645 = vpop.f32.mrb[0].mxu0
  %v646 = vadd.f32 %v456, %v645
  %v647 = vpop.f32.mrb[0].mxu0
  %648 = vmatprep.mubr.f32.mxu0 %v117
  %649 = vmatmul.mubr.f32.gmra.mrb[0].mxu0 %v116
  %v650 = vpop.f32.mrb[0].mxu0
  %v651 = vadd.f32 %v461, %v650
  %v652 = vpop.f32.mrb[0].mxu0
  %653 = vmatprep.mubr.f32.mxu0 %v122
  %654 = vmatmul.mubr.f32.gmra.mrb[0].mxu0 %v121
  %v655 = vpop.f32.mrb[0].mxu0
  %v656 = vadd.f32 %v466, %v655
  %v657 = vpop.f32.mrb[0].mxu0
  %658 = vmatprep.mubr.f32.mxu0 %v127
  %659 = vmatmul.mubr.f32.gmra.mrb[0].mxu0 %v126
  %v660 = vpop.f32.mrb[0].mxu0
  %v661 = vadd.f32 %v471, %v660
  %v662 = vpop.f32.mrb[0].mxu0
  %663 = vmatprep.mubr.f32.mxu0 %v132
  %664 = vmatmul.mubr.f32.gmra.mrb[0].mxu0 %v131
  %v665 = vpop.f32.mrb[0].mxu0
  %v666 = vadd.f32 %v476, %v665
  %v667 = vpop.f32.mrb[0].mxu0
  %668 = vmatprep.mubr.f32.mxu0 %v137
  %669 = vmatmul.mubr.f32.gmra.mrb[0].mxu0 %v136
  %v670 = vpop.f32.mrb[0].mxu0
  %v671 = vadd.f32 %v481, %v670
  %v672 = vpop.f32.mrb[0].mxu0
  %673 = vdwg.mxu0
  %674 = vmatprep.subr.mxu0 0.0
  %675 = vmatpush1.msra.mxu0 %v203
  %676 = vmatprep.subr.mxu0 0.0
  %677 = vmatpush1.msra.mxu0 %v204
  %678 = vmatprep.subr.mxu0 0.0
  %679 = vmatpush1.msra.mxu0 %v205
  %680 = vmatprep.subr.mxu0 0.0
  %681 = vmatpush1.msra.mxu0 %v206
  %682 = vmatprep.subr.mxu0 0.0
  %683 = vmatpush1.msra.mxu0 %v207
  %684 = vmatprep.subr.mxu0 0.0
  %685 = vmatpush1.msra.mxu0 %v208
  %686 = vmatprep.subr.mxu0 0.0
  %687 = vmatpush1.msra.mxu0 %v209
  %688 = vmatprep.subr.mxu0 0.0
  %689 = vmatpush1.msra.mxu0 %v210
  %690 = vmatprep.subr.mxu0 0.0
  %691 = vmatpush1.msra.mxu0 0.0
  %692 = vmatprep.subr.mxu0 0.0
  %693 = vmatpush1.msra.mxu0 0.0
  %694 = vmatprep.subr.mxu0 0.0
  %695 = vmatpush1.msra.mxu0 0.0
  %696 = vmatprep.subr.mxu0 0.0
  %697 = vmatpush1.msra.mxu0 0.0
  %698 = vmatprep.subr.mxu0 0.0
  %699 = vmatpush1.msra.mxu0 0.0
  %700 = vmatprep.subr.mxu0 0.0
  %701 = vmatpush1.msra.mxu0 0.0
  %702 = vmatprep.subr.mxu0 0.0
  %703 = vmatpush1.msra.mxu0 0.0
  %704 = vmatprep.subr.mxu0 0.0
  %705 = vmatpush1.msra.mxu0 0.0
  %706 = vmatprep.subr.mxu0 0.0
  %707 = vmatpush1.msra.mxu0 0.0
  %708 = vmatprep.subr.mxu0 0.0
  %709 = vmatpush1.msra.mxu0 0.0
  %710 = vmatprep.subr.mxu0 0.0
  %711 = vmatpush1.msra.mxu0 0.0
  %712 = vmatprep.subr.mxu0 0.0
  %713 = vmatpush1.msra.mxu0 0.0
  %714 = vmatprep.subr.mxu0 0.0
  %715 = vmatpush1.msra.mxu0 0.0
  %716 = vmatprep.subr.mxu0 0.0
  %717 = vmatpush1.msra.mxu0 0.0
  %718 = vmatprep.subr.mxu0 0.0
  %719 = vmatpush1.msra.mxu0 0.0
  %720 = vmatprep.subr.mxu0 0.0
  %721 = vmatpush1.msra.mxu0 0.0
  %722 = vmatprep.subr.mxu0 0.0
  %723 = vmatpush1.msra.mxu0 0.0
  %724 = vmatprep.subr.mxu0 0.0
  %725 = vmatpush1.msra.mxu0 0.0
  %726 = vmatprep.subr.mxu0 0.0
  %727 = vmatpush1.msra.mxu0 0.0
  %728 = vmatprep.subr.mxu0 0.0
  %729 = vmatpush1.msra.mxu0 0.0
  %730 = vmatprep.subr.mxu0 0.0
  %731 = vmatpush1.msra.mxu0 0.0
  %732 = vmatprep.subr.mxu0 0.0
  %733 = vmatpush1.msra.mxu0 0.0
  %734 = vmatprep.subr.mxu0 0.0
  %735 = vmatpush1.msra.mxu0 0.0
  %736 = vmatprep.subr.mxu0 0.0
  %737 = vmatpush1.msra.mxu0 0.0
  %738 = vmatprep.mubr.f32.mxu0 0.0
  %739 = vmatmul.mubr.f32.gmra.mrb[0].mxu0 %v220
  %v740 = vpop.f32.mrb[0].mxu0
  %v741 = vadd.f32 %v551, %v740
  %v742 = vpop.f32.mrb[0].mxu0
  %743 = vmatprep.mubr.f32.mxu0 0.0
  %744 = vmatmul.mubr.f32.gmra.mrb[0].mxu0 %v223
  %v745 = vpop.f32.mrb[0].mxu0
  %v746 = vadd.f32 %v556, %v745
  %v747 = vpop.f32.mrb[0].mxu0
  %748 = vmatprep.mubr.f32.mxu0 0.0
  %749 = vmatmul.mubr.f32.gmra.mrb[0].mxu0 %v226
  %v750 = vpop.f32.mrb[0].mxu0
  %v751 = vadd.f32 %v561, %v750
  %v752 = vpop.f32.mrb[0].mxu0
  %753 = vmatprep.mubr.f32.mxu0 0.0
  %754 = vmatmul.mubr.f32.gmra.mrb[0].mxu0 %v229
  %v755 = vpop.f32.mrb[0].mxu0
  %v756 = vadd.f32 %v566, %v755
  %v757 = vpop.f32.mrb[0].mxu0
  %758 = vmatprep.mubr.f32.mxu0 0.0
  %759 = vmatmul.mubr.f32.gmra.mrb[0].mxu0 %v232
  %v760 = vpop.f32.mrb[0].mxu0
  %v761 = vadd.f32 %v571, %v760
  %v762 = vpop.f32.mrb[0].mxu0
  %763 = vmatprep.mubr.f32.mxu0 0.0
  %764 = vmatmul.mubr.f32.gmra.mrb[0].mxu0 %v235
  %v765 = vpop.f32.mrb[0].mxu0
  %v766 = vadd.f32 %v576, %v765
  %v767 = vpop.f32.mrb[0].mxu0
  %768 = vmatprep.mubr.f32.mxu0 0.0
  %769 = vmatmul.mubr.f32.gmra.mrb[0].mxu0 %v238
  %v770 = vpop.f32.mrb[0].mxu0
  %v771 = vadd.f32 %v581, %v770
  %v772 = vpop.f32.mrb[0].mxu0
  %773 = vmatprep.mubr.f32.mxu0 0.0
  %774 = vmatmul.mubr.f32.gmra.mrb[0].mxu0 %v241
  %v775 = vpop.f32.mrb[0].mxu0
  %v776 = vadd.f32 %v586, %v775
  %v777 = vpop.f32.mrb[0].mxu0
  %778 = vmatprep.mubr.f32.mxu0 0.0
  %779 = vmatmul.mubr.f32.gmra.mrb[0].mxu0 %v244
  %v780 = vpop.f32.mrb[0].mxu0
  %v781 = vadd.f32 %v591, %v780
  %v782 = vpop.f32.mrb[0].mxu0
  %783 = vmatprep.mubr.f32.mxu0 0.0
  %784 = vmatmul.mubr.f32.gmra.mrb[0].mxu0 %v247
  %v785 = vpop.f32.mrb[0].mxu0
  %v786 = vadd.f32 %v596, %v785
  %v787 = vpop.f32.mrb[0].mxu0
  %788 = vmatprep.mubr.f32.mxu0 0.0
  %789 = vmatmul.mubr.f32.gmra.mrb[0].mxu0 %v250
  %v790 = vpop.f32.mrb[0].mxu0
  %v791 = vadd.f32 %v601, %v790
  %v792 = vpop.f32.mrb[0].mxu0
  %793 = vmatprep.mubr.f32.mxu0 0.0
  %794 = vmatmul.mubr.f32.gmra.mrb[0].mxu0 %v253
  %v795 = vpop.f32.mrb[0].mxu0
  %v796 = vadd.f32 %v606, %v795
  %v797 = vpop.f32.mrb[0].mxu0
  %798 = vmatprep.mubr.f32.mxu0 0.0
  %799 = vmatmul.mubr.f32.gmra.mrb[0].mxu0 %v256
  %v800 = vpop.f32.mrb[0].mxu0
  %v801 = vadd.f32 %v611, %v800
  %v802 = vpop.f32.mrb[0].mxu0
  %803 = vmatprep.mubr.f32.mxu0 0.0
  %804 = vmatmul.mubr.f32.gmra.mrb[0].mxu0 %v259
  %v805 = vpop.f32.mrb[0].mxu0
  %v806 = vadd.f32 %v616, %v805
  %v807 = vpop.f32.mrb[0].mxu0
  %808 = vmatprep.mubr.f32.mxu0 0.0
  %809 = vmatmul.mubr.f32.gmra.mrb[0].mxu0 %v262
  %v810 = vpop.f32.mrb[0].mxu0
  %v811 = vadd.f32 %v621, %v810
  %v812 = vpop.f32.mrb[0].mxu0
  %813 = vmatprep.mubr.f32.mxu0 0.0
  %814 = vmatmul.mubr.f32.gmra.mrb[0].mxu0 %v265
  %v815 = vpop.f32.mrb[0].mxu0
  %v816 = vadd.f32 %v626, %v815
  %v817 = vpop.f32.mrb[0].mxu0
  %818 = vmatprep.mubr.f32.mxu0 0.0
  %819 = vmatmul.mubr.f32.gmra.mrb[0].mxu0 %v268
  %v820 = vpop.f32.mrb[0].mxu0
  %v821 = vadd.f32 %v631, %v820
  %v822 = vpop.f32.mrb[0].mxu0
  %823 = vmatprep.mubr.f32.mxu0 0.0
  %824 = vmatmul.mubr.f32.gmra.mrb[0].mxu0 %v271
  %v825 = vpop.f32.mrb[0].mxu0
  %v826 = vadd.f32 %v636, %v825
  %v827 = vpop.f32.mrb[0].mxu0
  %828 = vmatprep.mubr.f32.mxu0 0.0
  %829 = vmatmul.mubr.f32.gmra.mrb[0].mxu0 %v274
  %v830 = vpop.f32.mrb[0].mxu0
  %v831 = vadd.f32 %v641, %v830
  %v832 = vpop.f32.mrb[0].mxu0
  %833 = vmatprep.mubr.f32.mxu0 0.0
  %834 = vmatmul.mubr.f32.gmra.mrb[0].mxu0 %v277
  %v835 = vpop.f32.mrb[0].mxu0
  %v836 = vadd.f32 %v646, %v835
  %v837 = vpop.f32.mrb[0].mxu0
  %838 = vmatprep.mubr.f32.mxu0 0.0
  %839 = vmatmul.mubr.f32.gmra.mrb[0].mxu0 %v280
  %v840 = vpop.f32.mrb[0].mxu0
  %v841 = vadd.f32 %v651, %v840
  %v842 = vpop.f32.mrb[0].mxu0
  %843 = vmatprep.mubr.f32.mxu0 0.0
  %844 = vmatmul.mubr.f32.gmra.mrb[0].mxu0 %v283
  %v845 = vpop.f32.mrb[0].mxu0
  %v846 = vadd.f32 %v656, %v845
  %v847 = vpop.f32.mrb[0].mxu0
  %848 = vmatprep.mubr.f32.mxu0 0.0
  %849 = vmatmul.mubr.f32.gmra.mrb[0].mxu0 %v286
  %v850 = vpop.f32.mrb[0].mxu0
  %v851 = vadd.f32 %v661, %v850
  %v852 = vpop.f32.mrb[0].mxu0
  %853 = vmatprep.mubr.f32.mxu0 0.0
  %854 = vmatmul.mubr.f32.gmra.mrb[0].mxu0 %v289
  %v855 = vpop.f32.mrb[0].mxu0
  %v856 = vadd.f32 %v666, %v855
  %v857 = vpop.f32.mrb[0].mxu0
  %858 = vmatprep.mubr.f32.mxu0 0.0
  %859 = vmatmul.mubr.f32.gmra.mrb[0].mxu0 %v292
  %v860 = vpop.f32.mrb[0].mxu0
  %v861 = vadd.f32 %v671, %v860
  %v862 = vpop.f32.mrb[0].mxu0
  %863 = vdwg.mxu0
  %v864 = vmax.f32 %v741, 0.0
  %v865 = vmax.f32 %v746, 0.0
  %v866 = vmax.f32 %v751, 0.0
  %v867 = vmax.f32 %v756, 0.0
  %v868 = vmax.f32 %v761, 0.0
  %v869 = vmax.f32 %v766, 0.0
  %v870 = vmax.f32 %v771, 0.0
  %v871 = vmax.f32 %v776, 0.0
  %v872 = vmax.f32 %v781, 0.0
  %v873 = vmax.f32 %v786, 0.0
  %v874 = vmax.f32 %v791, 0.0
  %v875 = vmax.f32 %v796, 0.0
  %v876 = vmax.f32 %v801, 0.0
  %v877 = vmax.f32 %v806, 0.0
  %v878 = vmax.f32 %v811, 0.0
  %v879 = vmax.f32 %v816, 0.0
  %v880 = vmax.f32 %v821, 0.0
  %v881 = vmax.f32 %v826, 0.0
  %v882 = vmax.f32 %v831, 0.0
  %v883 = vmax.f32 %v836, 0.0
  %v884 = vmax.f32 %v841, 0.0
  %v885 = vmax.f32 %v846, 0.0
  %v886 = vmax.f32 %v851, 0.0
  %v887 = vmax.f32 %v856, 0.0
  %v888 = vmax.f32 %v861, 0.0
  %889 = vst [vmem:[%s3] sm:$0xff] %v864
  %890 = vst [vmem:[%s3 + $0x8] sm:$0xff] %v865
  %891 = vst [vmem:[%s3 + $0x10] sm:$0xff] %v866
  %892 = vst [vmem:[%s3 + $0x18] sm:$0xff] %v867
  %893 = vst [vmem:[%s3 + $0x20] sm:$0xff] %v868
  %894 = vst [vmem:[%s3 + $0x28] sm:$0xff] %v869
  %895 = vst [vmem:[%s3 + $0x30] sm:$0xff] %v870
  %896 = vst [vmem:[%s3 + $0x38] sm:$0xff] %v871
  %897 = vst [vmem:[%s3 + $0x40] sm:$0xff] %v872
  %898 = vst [vmem:[%s3 + $0x48] sm:$0xff] %v873
  %899 = vst [vmem:[%s3 + $0x50] sm:$0xff] %v874
  %900 = vst [vmem:[%s3 + $0x58] sm:$0xff] %v875
  %901 = vst [vmem:[%s3 + $0x60] sm:$0xff] %v876
  %902 = vst [vmem:[%s3 + $0x68] sm:$0xff] %v877
  %903 = vst [vmem:[%s3 + $0x70] sm:$0xff] %v878
  %904 = vst [vmem:[%s3 + $0x78] sm:$0xff] %v879
  %905 = vst [vmem:[%s3 + $0x80] sm:$0xff] %v880
  %906 = vst [vmem:[%s3 + $0x88] sm:$0xff] %v881
  %907 = vst [vmem:[%s3 + $0x90] sm:$0xff] %v882
  %908 = vst [vmem:[%s3 + $0x98] sm:$0xff] %v883
  %909 = vst [vmem:[%s3 + $0xa0] sm:$0xff] %v884
  %910 = vst [vmem:[%s3 + $0xa8] sm:$0xff] %v885
  %911 = vst [vmem:[%s3 + $0xb0] sm:$0xff] %v886
  %912 = vst [vmem:[%s3 + $0xb8] sm:$0xff] %v887
  %913 = vst [vmem:[%s3 + $0xc0] sm:$0xff] %v888
  // Predicated region
  $region14: #{ppo_forward.6} parent=0 // pred_check
    _
  $region15: #{ppo_forward.6} parent=0 // pred_check_branch
    %915 = sbr.rel (0) target = $region17
  $region16: #{ppo_forward.6} parent=0 // pred_region
    _
  $region17: #{ppo_forward.6} parent=0 // pred_fallthru
    _
  // Predicated region
  $region18: #{ppo_forward.6} parent=0 // pred_check
    _
  $region19: #{ppo_forward.6} parent=0 // pred_check_branch
    %917 = sbr.rel (0) target = $region21
  $region20: #{ppo_forward.6} parent=0 // pred_region
    _
  $region21: #{ppo_forward.6} parent=0 // pred_fallthru
    _

// kernel: ppo_forward.7
$region0: #{ppo_forward.7}
  #allocation0 [shape = 'u32[]', space=smem, size = 0x4, offset = 0x4, fixed_abs, tag = 'smem constant byte address 0x4 - core index']
  #allocation1 [shape = 'u32[144,128]{1,0:T(1,128)}', space=vmem, size = 0x12000, scoped, tag = 'internal scratch']
  #allocation2 [shape = 'f32[2,64]{1,0:T(2,128)}', space=vmem, size = 0x400, scoped, tag = 'scratch operand']
  %s0 = inlined_call_operand.vmem [shape: f32[2,6400], index: 0, kind: input, shape index: {}]
  %s1 = inlined_call_operand.vmem [shape: f32[6400,64], index: 1, kind: input, shape index: {}]
  %s2 = inlined_call_operand.vmem [shape: f32[1,64], index: 2, kind: input, shape index: {}]
  %s3 = inlined_call_operand.vmem [shape: f32[64,128], index: 3, kind: input, shape index: {}]
  %s4 = inlined_call_operand.vmem [shape: f32[1,128], index: 4, kind: input, shape index: {}]
  %s5 = inlined_call_operand.vmem [shape: f32[2,128], index: 5, kind: output, shape index: {}]
  %s6 = sld [smem:[#allocation0]]
  $region61: #{ppo_forward.7} parent=0
    _
  %s8 = ssub.s32 1, %s6
  %s9 = scalar_select 0, %s8, %s6
  loop: start=0, step=1, limit=7
  $region2: #{ppo_forward.7} parent=0 // loop_pre_header
    _
  $region3: #{ppo_forward.7} parent=0 // loop_header
    %s11 = sphi 0, %s15
    %p12 = scmp.ge.s32.totalorder %s11, 7
    %s21 = sphi 0, %s23
    %s24 = sphi 0, %s21
    %s25 = sphi 0, %s24
    %s41 = sphi 0, %s25
    %s47 = sphi 0, %s49
    %s50 = sphi 0, %s47
    %s51 = sphi 0, %s50
    %s67 = sphi 0, %s51
    %s71 = sphi 0, %s71
    %s73 = sphi 0, %s71
    %s74 = sphi 0, %s73
    %s88 = sphi 0, %s74
    %s92 = sphi 0, %s92
    %s94 = sphi 0, %s92
    %s95 = sphi 0, %s94
    %s109 = sphi 0, %s95
    %s113 = sphi 0, %s113
    %s115 = sphi 0, %s113
    %s116 = sphi 0, %s115
    %s130 = sphi 0, %s116
    %s134 = sphi 0, %s134
    %s136 = sphi 0, %s134
    %s137 = sphi 0, %s136
    %s151 = sphi 0, %s137
  $region4: #{ppo_forward.7} parent=0 // loop_header_branch
    %14 = sbr.rel (%p12) target = $region8
  $region5: #{ppo_forward.7} parent=0 // loop_body
    %s16 = ssub.s32 %s11, 1
    %s17 = ssub.s32 %s11, 2
    %s18 = sadd.s32 %s11, 1
    %s19 = ssub.s32 %s11, %s18
    %p20 = scmp.eq.s32.totalorder %s19, 0
    %s22 = sadd.s32 %s21, 1
    %s23 = scalar_select %p20, %s21, %s22
    %p26 = pneg %p20
    %p27 = scmp.eq.s32.totalorder %s11, 4
    %p28 = por %p26, %p27
    %p29 = scmp.ne.s32.totalorder %s21, %s24
    %p30 = scmp.eq.s32.totalorder %s11, 0
    %p31 = por %p29, %p30
    %p32 = scmp.ne.s32.totalorder %s21, %s24
    %p33 = scmp.eq.s32.totalorder %s16, 4
    %p34 = por %p32, %p33
    %p35 = scmp.ne.s32.totalorder %s24, %s25
    %p36 = scmp.eq.s32.totalorder %s16, 0
    %p37 = por %p35, %p36
    %p38 = scmp.ne.s32.totalorder %s24, %s25
    %p39 = scmp.eq.s32.totalorder %s17, 4
    %p40 = por %p38, %p39
    %p42 = scmp.ne.s32.totalorder %s25, %s41
    %p43 = scmp.eq.s32.totalorder %s17, 0
    %p44 = por %p42, %p43
    %s45 = ssub.s32 %s11, %s18
    %p46 = scmp.eq.s32.totalorder %s45, 0
    %s48 = sadd.s32 %s47, 1
    %s49 = scalar_select %p46, %s47, %s48
    %p52 = pneg %p46
    %p53 = scmp.eq.s32.totalorder %s11, 4
    %p54 = por %p52, %p53
    %p55 = scmp.ne.s32.totalorder %s47, %s50
    %p56 = scmp.eq.s32.totalorder %s11, 0
    %p57 = por %p55, %p56
    %p58 = scmp.ne.s32.totalorder %s47, %s50
    %p59 = scmp.eq.s32.totalorder %s16, 4
    %p60 = por %p58, %p59
    %p61 = scmp.ne.s32.totalorder %s50, %s51
    %p62 = scmp.eq.s32.totalorder %s16, 0
    %p63 = por %p61, %p62
    %p64 = scmp.ne.s32.totalorder %s50, %s51
    %p65 = scmp.eq.s32.totalorder %s17, 4
    %p66 = por %p64, %p65
    %p68 = scmp.ne.s32.totalorder %s51, %s67
    %p69 = scmp.eq.s32.totalorder %s17, 0
    %p70 = por %p68, %p69
    %s72 = sadd.s32 %s71, 1
    %p75 = scmp.eq.s32.totalorder %s11, 4
    %p76 = scmp.ne.s32.totalorder %s71, %s73
    %p77 = scmp.eq.s32.totalorder %s11, 0
    %p78 = por %p76, %p77
    %p79 = scmp.ne.s32.totalorder %s71, %s73
    %p80 = scmp.eq.s32.totalorder %s16, 4
    %p81 = por %p79, %p80
    %p82 = scmp.ne.s32.totalorder %s73, %s74
    %p83 = scmp.eq.s32.totalorder %s16, 0
    %p84 = por %p82, %p83
    %p85 = scmp.ne.s32.totalorder %s73, %s74
    %p86 = scmp.eq.s32.totalorder %s17, 4
    %p87 = por %p85, %p86
    %p89 = scmp.ne.s32.totalorder %s74, %s88
    %p90 = scmp.eq.s32.totalorder %s17, 0
    %p91 = por %p89, %p90
    %s93 = sadd.s32 %s92, 1
    %p96 = scmp.eq.s32.totalorder %s11, 4
    %p97 = scmp.ne.s32.totalorder %s92, %s94
    %p98 = scmp.eq.s32.totalorder %s11, 0
    %p99 = por %p97, %p98
    %p100 = scmp.ne.s32.totalorder %s92, %s94
    %p101 = scmp.eq.s32.totalorder %s16, 4
    %p102 = por %p100, %p101
    %p103 = scmp.ne.s32.totalorder %s94, %s95
    %p104 = scmp.eq.s32.totalorder %s16, 0
    %p105 = por %p103, %p104
    %p106 = scmp.ne.s32.totalorder %s94, %s95
    %p107 = scmp.eq.s32.totalorder %s17, 4
    %p108 = por %p106, %p107
    %p110 = scmp.ne.s32.totalorder %s95, %s109
    %p111 = scmp.eq.s32.totalorder %s17, 0
    %p112 = por %p110, %p111
    %s114 = sadd.s32 %s113, 1
    %p117 = scmp.eq.s32.totalorder %s11, 4
    %p118 = scmp.ne.s32.totalorder %s113, %s115
    %p119 = scmp.eq.s32.totalorder %s11, 0
    %p120 = por %p118, %p119
    %p121 = scmp.ne.s32.totalorder %s113, %s115
    %p122 = scmp.eq.s32.totalorder %s16, 4
    %p123 = por %p121, %p122
    %p124 = scmp.ne.s32.totalorder %s115, %s116
    %p125 = scmp.eq.s32.totalorder %s16, 0
    %p126 = por %p124, %p125
    %p127 = scmp.ne.s32.totalorder %s115, %s116
    %p128 = scmp.eq.s32.totalorder %s17, 4
    %p129 = por %p127, %p128
    %p131 = scmp.ne.s32.totalorder %s116, %s130
    %p132 = scmp.eq.s32.totalorder %s17, 0
    %p133 = por %p131, %p132
    %s135 = sadd.s32 %s134, 1
    %p138 = scmp.eq.s32.totalorder %s11, 4
    %p139 = scmp.ne.s32.totalorder %s134, %s136
    %p140 = scmp.eq.s32.totalorder %s11, 0
    %p141 = por %p139, %p140
    %p142 = scmp.ne.s32.totalorder %s134, %s136
    %p143 = scmp.eq.s32.totalorder %s16, 4
    %p144 = por %p142, %p143
    %p145 = scmp.ne.s32.totalorder %s136, %s137
    %p146 = scmp.eq.s32.totalorder %s16, 0
    %p147 = por %p145, %p146
    %p148 = scmp.ne.s32.totalorder %s136, %s137
    %p149 = scmp.eq.s32.totalorder %s17, 4
    %p150 = por %p148, %p149
    %p152 = scmp.ne.s32.totalorder %s137, %s151
    %p153 = scmp.eq.s32.totalorder %s17, 0
    %p154 = por %p152, %p153
    %p155 = scmp.le.s32.totalorder 1, %s11
    %p156 = scmp.lt.s32.totalorder %s11, 6
    %p157 = pnand %p155, %p156
    %p158 = pneg %p157
    // Predicated region
    $region9: #{ppo_forward.7} parent=5 // pred_check
      _
    $region10: #{ppo_forward.7} parent=5 // pred_check_branch
      %160 = sbr.rel (%p157) target = $region12
    $region11: #{ppo_forward.7} parent=5 // pred_region
      %s161 = ssub.s32 %s11, 1
      // Predicated region
      $region13: #{ppo_forward.7} parent=11 // pred_check
        %p162 = pneg %p84
      $region14: #{ppo_forward.7} parent=11 // pred_check_branch
        %164 = sbr.rel (%p162) target = $region16
      $region15: #{ppo_forward.7} parent=11 // pred_region
        _
      $region16: #{ppo_forward.7} parent=11 // pred_fallthru
        _
      // Predicated region
      $region17: #{ppo_forward.7} parent=11 // pred_check
        %p165 = pneg %p105
      $region18: #{ppo_forward.7} parent=11 // pred_check_branch
        %167 = sbr.rel (%p165) target = $region20
      $region19: #{ppo_forward.7} parent=11 // pred_region
        _
      $region20: #{ppo_forward.7} parent=11 // pred_fallthru
        _
      // Predicated region
      $region21: #{ppo_forward.7} parent=11 // pred_check
        %p168 = pneg %p126
      $region22: #{ppo_forward.7} parent=11 // pred_check_branch
        %170 = sbr.rel (%p168) target = $region24
      $region23: #{ppo_forward.7} parent=11 // pred_region
        _
      $region24: #{ppo_forward.7} parent=11 // pred_fallthru
        _
    $region12: #{ppo_forward.7} parent=5 // pred_fallthru
      _
    %p171 = scmp.lt.s32.totalorder %s11, 5
    // Predicated region
    $region25: #{ppo_forward.7} parent=5 // pred_check
      %p172 = pneg %p171
    $region26: #{ppo_forward.7} parent=5 // pred_check_branch
      %174 = sbr.rel (%p172) target = $region28
    $region27: #{ppo_forward.7} parent=5 // pred_region
      // Predicated region
      $region29: #{ppo_forward.7} parent=27 // pred_check
        %p175 = pneg %p31
      $region30: #{ppo_forward.7} parent=27 // pred_check_branch
        %177 = sbr.rel (%p175) target = $region32
      $region31: #{ppo_forward.7} parent=27 // pred_region
        %s178 = smul.u32 10, %s11
        %p179 = scmp.lt.s32.totalorder %s178, 49
        %s180 = scalar_select %p179, %s178, 49
        %s181 = smul.addr %s180, 2
        %s182 = scalar_lea.vmem %s0, %s181
        %s183 = smul.u32 10, %s11
      $region32: #{ppo_forward.7} parent=27 // pred_fallthru
        _
      // Predicated region
      $region33: #{ppo_forward.7} parent=27 // pred_check
        %p184 = pneg %p57
      $region34: #{ppo_forward.7} parent=27 // pred_check_branch
        %186 = sbr.rel (%p184) target = $region36
      $region35: #{ppo_forward.7} parent=27 // pred_region
        %s187 = smul.u32 160, %s11
        %p188 = scmp.lt.s32.totalorder %s187, 799
        %s189 = scalar_select %p188, %s187, 799
        %s190 = smul.addr %s189, 8
        %s191 = scalar_lea.vmem %s1, %s190
        %s192 = smul.u32 160, %s11
      $region36: #{ppo_forward.7} parent=27 // pred_fallthru
        _
    $region28: #{ppo_forward.7} parent=5 // pred_fallthru
      _
    %p193 = scmp.le.s32.totalorder 1, %s11
    %p194 = scmp.lt.s32.totalorder %s11, 6
    %p195 = pnand %p193, %p194
    %p196 = pneg %p195
    // Predicated region
    $region37: #{ppo_forward.7} parent=5 // pred_check
      _
    $region38: #{ppo_forward.7} parent=5 // pred_check_branch
      %198 = sbr.rel (%p195) target = $region40
    $region39: #{ppo_forward.7} parent=5 // pred_region
      %s199 = ssub.s32 %s11, 1
      %s200 = smul.u32 10, %s16
      %p201 = scmp.lt.s32.totalorder %s200, 49
      %s202 = scalar_select %p201, %s200, 49
      %s203 = smul.addr %s202, 2
      %s204 = scalar_lea.vmem %s0, %s203
      %p205 = pneg %p37
      %p206 = pneg %p34
      %s207 = smul.u32 160, %s16
      %p208 = scmp.lt.s32.totalorder %s207, 799
      %s209 = scalar_select %p208, %s207, 799
      %s210 = smul.addr %s209, 8
      %s211 = scalar_lea.vmem %s1, %s210
      %p212 = pneg %p63
      %p213 = pneg %p60
      %p214 = pneg %p84
      %p215 = pneg %p81
      %p216 = pneg %p105
      %p217 = pneg %p102
      %p218 = pneg %p126
      %p219 = pneg %p123
      %p220 = pneg %p147
      %p221 = pneg %p144
      %s222 = smul.u32 10, %s16
      %p223 = scmp.lt.s32.totalorder %s222, 49
      %s224 = scalar_select %p223, %s222, 49
      %s225 = smul.addr %s224, 2
      %s226 = scalar_lea.vmem %s0, %s225
      %s227 = smul.u32 10, %s16
      %s228 = smul.u32 160, %s16
      %p229 = scmp.lt.s32.totalorder %s228, 799
      %s230 = scalar_select %p229, %s228, 799
      %s231 = smul.addr %s230, 8
      %s232 = scalar_lea.vmem %s1, %s231
      %s233 = smul.u32 160, %s16
      %p234 = scmp.eq.s32.totalorder %s16, 0
      // Predicated region
      $region41: #{ppo_forward.7} parent=39 // pred_check
        %p235 = pneg %p234
      $region42: #{ppo_forward.7} parent=39 // pred_check_branch
        %237 = sbr.rel (%p235) target = $region44
      $region43: #{ppo_forward.7} parent=39 // pred_region
        %vm238 = vcmask 517120
        %239 = vst.msk [vmem:[#allocation2] sm:$0x3] %vm238, 0.0
      $region44: #{ppo_forward.7} parent=39 // pred_fallthru
        _
      %v240 = vld [vmem:[#allocation2] sm:$0x3]
      %v241 = vld [vmem:[%s226] sm:$0xff]
      %v242 = vld [vmem:[%s226 + $0x8] sm:$0xff]
      %v243 = vld [vmem:[%s226 + $0x10] sm:$0xf]
      %v244 = vld [vmem:[%s232] sm:$0xff]
      %v245 = vld [vmem:[%s232 + $0x8] sm:$0xff]
      %v246 = vld [vmem:[%s232 + $0x10] sm:$0xff]
      %v247 = vld [vmem:[%s232 + $0x18] sm:$0xff]
      %v248 = vld [vmem:[%s232 + $0x20] sm:$0xff]
      %v249 = vld [vmem:[%s232 + $0x28] sm:$0xff]
      %v250 = vld [vmem:[%s232 + $0x30] sm:$0xff]
      %v251 = vld [vmem:[%s232 + $0x38] sm:$0xff]
      %v252 = vld [vmem:[%s232 + $0x40] sm:$0xff]
      %v253 = vld [vmem:[%s232 + $0x48] sm:$0xff]
      %v254 = vld [vmem:[%s232 + $0x50] sm:$0xff]
      %v255 = vld [vmem:[%s232 + $0x58] sm:$0xff]
      %v256 = vld [vmem:[%s232 + $0x60] sm:$0xff]
      %v257 = vld [vmem:[%s232 + $0x68] sm:$0xff]
      %v258 = vld [vmem:[%s232 + $0x70] sm:$0xff]
      %v259 = vld [vmem:[%s232 + $0x78] sm:$0xff]
      %v260 = vld [vmem:[%s232 + $0x80] sm:$0xff]
      %v261 = vld [vmem:[%s232 + $0x88] sm:$0xff]
      %v262 = vld [vmem:[%s232 + $0x90] sm:$0xff]
      %v263 = vld [vmem:[%s232 + $0x98] sm:$0xff]
      %v264 = vld [vmem:[%s232 + $0xa0] sm:$0xff]
      %v265 = vld [vmem:[%s232 + $0xa8] sm:$0xff]
      %v266 = vld [vmem:[%s232 + $0xb0] sm:$0xff]
      %v267 = vld [vmem:[%s232 + $0xb8] sm:$0xff]
      %v268 = vld [vmem:[%s232 + $0xc0] sm:$0xff]
      %v269 = vld [vmem:[%s232 + $0xc8] sm:$0xff]
      %v270 = vld [vmem:[%s232 + $0xd0] sm:$0xff]
      %v271 = vld [vmem:[%s232 + $0xd8] sm:$0xff]
      %v272 = vld [vmem:[%s232 + $0xe0] sm:$0xff]
      %v273 = vld [vmem:[%s232 + $0xe8] sm:$0xff]
      %v274 = vld [vmem:[%s232 + $0xf0] sm:$0xff]
      %v275 = vld [vmem:[%s232 + $0xf8] sm:$0xff]
      %v276 = vld [vmem:[%s232 + $0x100] sm:$0xff]
      %v277 = vld [vmem:[%s232 + $0x108] sm:$0xff]
      %v278 = vld [vmem:[%s232 + $0x110] sm:$0xff]
      %v279 = vld [vmem:[%s232 + $0x118] sm:$0xff]
      %v280 = vld [vmem:[%s232 + $0x120] sm:$0xff]
      %v281 = vld [vmem:[%s232 + $0x128] sm:$0xff]
      %v282 = vld [vmem:[%s232 + $0x130] sm:$0xff]
      %v283 = vld [vmem:[%s232 + $0x138] sm:$0xff]
      %v284 = vld [vmem:[%s232 + $0x140] sm:$0xff]
      %v285 = vld [vmem:[%s232 + $0x148] sm:$0xff]
      %v286 = vld [vmem:[%s232 + $0x150] sm:$0xff]
      %v287 = vld [vmem:[%s232 + $0x158] sm:$0xff]
      %v288 = vld [vmem:[%s232 + $0x160] sm:$0xff]
      %v289 = vld [vmem:[%s232 + $0x168] sm:$0xff]
      %v290 = vld [vmem:[%s232 + $0x170] sm:$0xff]
      %v291 = vld [vmem:[%s232 + $0x178] sm:$0xff]
      %v292 = vld [vmem:[%s232 + $0x180] sm:$0xff]
      %v293 = vld [vmem:[%s232 + $0x188] sm:$0xff]
      %v294 = vld [vmem:[%s232 + $0x190] sm:$0xff]
      %v295 = vld [vmem:[%s232 + $0x198] sm:$0xff]
      %v296 = vld [vmem:[%s232 + $0x1a0] sm:$0xff]
      %v297 = vld [vmem:[%s232 + $0x1a8] sm:$0xff]
      %v298 = vld [vmem:[%s232 + $0x1b0] sm:$0xff]
      %v299 = vld [vmem:[%s232 + $0x1b8] sm:$0xff]
      %v300 = vld [vmem:[%s232 + $0x1c0] sm:$0xff]
      %v301 = vld [vmem:[%s232 + $0x1c8] sm:$0xff]
      %v302 = vld [vmem:[%s232 + $0x1d0] sm:$0xff]
      %v303 = vld [vmem:[%s232 + $0x1d8] sm:$0xff]
      %v304 = vld [vmem:[%s232 + $0x1e0] sm:$0xff]
      %v305 = vld [vmem:[%s232 + $0x1e8] sm:$0xff]
      %v306 = vld [vmem:[%s232 + $0x1f0] sm:$0xff]
      %v307 = vld [vmem:[%s232 + $0x1f8] sm:$0xff]
      %v308 = vld [vmem:[%s232 + $0x200] sm:$0xff]
      %v309 = vld [vmem:[%s232 + $0x208] sm:$0xff]
      %v310 = vld [vmem:[%s232 + $0x210] sm:$0xff]
      %v311 = vld [vmem:[%s232 + $0x218] sm:$0xff]
      %v312 = vld [vmem:[%s232 + $0x220] sm:$0xff]
      %v313 = vld [vmem:[%s232 + $0x228] sm:$0xff]
      %v314 = vld [vmem:[%s232 + $0x230] sm:$0xff]
      %v315 = vld [vmem:[%s232 + $0x238] sm:$0xff]
      %v316 = vld [vmem:[%s232 + $0x240] sm:$0xff]
      %v317 = vld [vmem:[%s232 + $0x248] sm:$0xff]
      %v318 = vld [vmem:[%s232 + $0x250] sm:$0xff]
      %v319 = vld [vmem:[%s232 + $0x258] sm:$0xff]
      %v320 = vld [vmem:[%s232 + $0x260] sm:$0xff]
      %v321 = vld [vmem:[%s232 + $0x268] sm:$0xff]
      %v322 = vld [vmem:[%s232 + $0x270] sm:$0xff]
      %v323 = vld [vmem:[%s232 + $0x278] sm:$0xff]
      %v324 = vld [vmem:[%s232 + $0x280] sm:$0xff]
      %v325 = vld [vmem:[%s232 + $0x288] sm:$0xff]
      %v326 = vld [vmem:[%s232 + $0x290] sm:$0xff]
      %v327 = vld [vmem:[%s232 + $0x298] sm:$0xff]
      %v328 = vld [vmem:[%s232 + $0x2a0] sm:$0xff]
      %v329 = vld [vmem:[%s232 + $0x2a8] sm:$0xff]
      %v330 = vld [vmem:[%s232 + $0x2b0] sm:$0xff]
      %v331 = vld [vmem:[%s232 + $0x2b8] sm:$0xff]
      %v332 = vld [vmem:[%s232 + $0x2c0] sm:$0xff]
      %v333 = vld [vmem:[%s232 + $0x2c8] sm:$0xff]
      %v334 = vld [vmem:[%s232 + $0x2d0] sm:$0xff]
      %v335 = vld [vmem:[%s232 + $0x2d8] sm:$0xff]
      %v336 = vld [vmem:[%s232 + $0x2e0] sm:$0xff]
      %v337 = vld [vmem:[%s232 + $0x2e8] sm:$0xff]
      %v338 = vld [vmem:[%s232 + $0x2f0] sm:$0xff]
      %v339 = vld [vmem:[%s232 + $0x2f8] sm:$0xff]
      %v340 = vld [vmem:[%s232 + $0x300] sm:$0xff]
      %v341 = vld [vmem:[%s232 + $0x308] sm:$0xff]
      %v342 = vld [vmem:[%s232 + $0x310] sm:$0xff]
      %v343 = vld [vmem:[%s232 + $0x318] sm:$0xff]
      %v344 = vld [vmem:[%s232 + $0x320] sm:$0xff]
      %v345 = vld [vmem:[%s232 + $0x328] sm:$0xff]
      %v346 = vld [vmem:[%s232 + $0x330] sm:$0xff]
      %v347 = vld [vmem:[%s232 + $0x338] sm:$0xff]
      %v348 = vld [vmem:[%s232 + $0x340] sm:$0xff]
      %v349 = vld [vmem:[%s232 + $0x348] sm:$0xff]
      %v350 = vld [vmem:[%s232 + $0x350] sm:$0xff]
      %v351 = vld [vmem:[%s232 + $0x358] sm:$0xff]
      %v352 = vld [vmem:[%s232 + $0x360] sm:$0xff]
      %v353 = vld [vmem:[%s232 + $0x368] sm:$0xff]
      %v354 = vld [vmem:[%s232 + $0x370] sm:$0xff]
      %v355 = vld [vmem:[%s232 + $0x378] sm:$0xff]
      %v356 = vld [vmem:[%s232 + $0x380] sm:$0xff]
      %v357 = vld [vmem:[%s232 + $0x388] sm:$0xff]
      %v358 = vld [vmem:[%s232 + $0x390] sm:$0xff]
      %v359 = vld [vmem:[%s232 + $0x398] sm:$0xff]
      %v360 = vld [vmem:[%s232 + $0x3a0] sm:$0xff]
      %v361 = vld [vmem:[%s232 + $0x3a8] sm:$0xff]
      %v362 = vld [vmem:[%s232 + $0x3b0] sm:$0xff]
      %v363 = vld [vmem:[%s232 + $0x3b8] sm:$0xff]
      %v364 = vld [vmem:[%s232 + $0x3c0] sm:$0xff]
      %v365 = vld [vmem:[%s232 + $0x3c8] sm:$0xff]
      %v366 = vld [vmem:[%s232 + $0x3d0] sm:$0xff]
      %v367 = vld [vmem:[%s232 + $0x3d8] sm:$0xff]
      %v368 = vld [vmem:[%s232 + $0x3e0] sm:$0xff]
      %v369 = vld [vmem:[%s232 + $0x3e8] sm:$0xff]
      %v370 = vld [vmem:[%s232 + $0x3f0] sm:$0xff]
      %v371 = vld [vmem:[%s232 + $0x3f8] sm:$0xff]
      %v372 = vld [vmem:[%s232 + $0x400] sm:$0xff]
      %v373 = vld [vmem:[%s232 + $0x408] sm:$0xff]
      %v374 = vld [vmem:[%s232 + $0x410] sm:$0xff]
      %v375 = vld [vmem:[%s232 + $0x418] sm:$0xff]
      %v376 = vld [vmem:[%s232 + $0x420] sm:$0xff]
      %v377 = vld [vmem:[%s232 + $0x428] sm:$0xff]
      %v378 = vld [vmem:[%s232 + $0x430] sm:$0xff]
      %v379 = vld [vmem:[%s232 + $0x438] sm:$0xff]
      %v380 = vld [vmem:[%s232 + $0x440] sm:$0xff]
      %v381 = vld [vmem:[%s232 + $0x448] sm:$0xff]
      %v382 = vld [vmem:[%s232 + $0x450] sm:$0xff]
      %v383 = vld [vmem:[%s232 + $0x458] sm:$0xff]
      %v384 = vld [vmem:[%s232 + $0x460] sm:$0xff]
      %v385 = vld [vmem:[%s232 + $0x468] sm:$0xff]
      %v386 = vld [vmem:[%s232 + $0x470] sm:$0xff]
      %v387 = vld [vmem:[%s232 + $0x478] sm:$0xff]
      %v388 = vld [vmem:[%s232 + $0x480] sm:$0xff]
      %v389 = vld [vmem:[%s232 + $0x488] sm:$0xff]
      %v390 = vld [vmem:[%s232 + $0x490] sm:$0xff]
      %v391 = vld [vmem:[%s232 + $0x498] sm:$0xff]
      %v392 = vld [vmem:[%s232 + $0x4a0] sm:$0xff]
      %v393 = vld [vmem:[%s232 + $0x4a8] sm:$0xff]
      %v394 = vld [vmem:[%s232 + $0x4b0] sm:$0xff]
      %v395 = vld [vmem:[%s232 + $0x4b8] sm:$0xff]
      %v396 = vld [vmem:[%s232 + $0x4c0] sm:$0xff]
      %v397 = vld [vmem:[%s232 + $0x4c8] sm:$0xff]
      %v398 = vld [vmem:[%s232 + $0x4d0] sm:$0xff]
      %v399 = vld [vmem:[%s232 + $0x4d8] sm:$0xff]
      %v400 = vld [vmem:[%s232 + $0x4e0] sm:$0xff]
      %v401 = vld [vmem:[%s232 + $0x4e8] sm:$0xff]
      %v402 = vld [vmem:[%s232 + $0x4f0] sm:$0xff]
      %v403 = vld [vmem:[%s232 + $0x4f8] sm:$0xff]
      %v407 = vcombine.high %v241, %v241
      %v409 = vunpack.c.l.s4 1983009808
      %v410 = vunpack.c.0.s8 %v409
      %v411 = vlaneseq
      %v412 = vshrl.u32 %v411, 7
      %v413 = vsub.s32 %v410, %v412
      %v414 = vrot.slane %v241, %v413
      %v416 = vunpack.c.l.s4 1983009808
      %v417 = vunpack.c.0.s8 %v416
      %v418 = vlaneseq
      %v419 = vshrl.u32 %v418, 7
      %v420 = vsub.s32 %v417, %v419
      %v421 = vrot.slane %v407, %v420
      %v422 = vcombine.high %v414, %v414
      %v423 = vcombine.high %v421, %v421
      %v424 = vcombine.high %v242, %v242
      %v426 = vunpack.c.l.s4 1983009808
      %v427 = vunpack.c.0.s8 %v426
      %v428 = vlaneseq
      %v429 = vshrl.u32 %v428, 7
      %v430 = vsub.s32 %v427, %v429
      %v431 = vrot.slane %v242, %v430
      %v433 = vunpack.c.l.s4 1983009808
      %v434 = vunpack.c.0.s8 %v433
      %v435 = vlaneseq
      %v436 = vshrl.u32 %v435, 7
      %v437 = vsub.s32 %v434, %v436
      %v438 = vrot.slane %v424, %v437
      %v439 = vcombine.high %v431, %v431
      %v440 = vcombine.high %v438, %v438
      %v442 = vunpack.c.l.s4 1983009808
      %v443 = vunpack.c.0.s8 %v442
      %v444 = vlaneseq
      %v445 = vshrl.u32 %v444, 7
      %v446 = vsub.s32 %v443, %v445
      %v447 = vrot.slane %v243, %v446
      %v448 = vcombine.high %v447, %v447
      %459 = vmatprep.subr.mxu0 0.0
      %460 = vmatpush1.msra.mxu0 %v244
      %461 = vmatprep.subr.mxu0 0.0
      %462 = vmatpush1.msra.mxu0 %v245
      %463 = vmatprep.subr.mxu0 0.0
      %464 = vmatpush1.msra.mxu0 %v246
      %465 = vmatprep.subr.mxu0 0.0
      %466 = vmatpush1.msra.mxu0 %v247
      %467 = vmatprep.subr.mxu0 0.0
      %468 = vmatpush1.msra.mxu0 %v248
      %469 = vmatprep.subr.mxu0 0.0
      %470 = vmatpush1.msra.mxu0 %v249
      %471 = vmatprep.subr.mxu0 0.0
      %472 = vmatpush1.msra.mxu0 %v250
      %473 = vmatprep.subr.mxu0 0.0
      %474 = vmatpush1.msra.mxu0 %v251
      %475 = vmatprep.subr.mxu0 0.0
      %476 = vmatpush1.msra.mxu0 %v252
      %477 = vmatprep.subr.mxu0 0.0
      %478 = vmatpush1.msra.mxu0 %v253
      %479 = vmatprep.subr.mxu0 0.0
      %480 = vmatpush1.msra.mxu0 %v254
      %481 = vmatprep.subr.mxu0 0.0
      %482 = vmatpush1.msra.mxu0 %v255
      %483 = vmatprep.subr.mxu0 0.0
      %484 = vmatpush1.msra.mxu0 %v256
      %485 = vmatprep.subr.mxu0 0.0
      %486 = vmatpush1.msra.mxu0 %v257
      %487 = vmatprep.subr.mxu0 0.0
      %488 = vmatpush1.msra.mxu0 %v258
      %489 = vmatprep.subr.mxu0 0.0
      %490 = vmatpush1.msra.mxu0 %v259
      %491 = vmatprep.subr.mxu0 0.0
      %492 = vmatpush1.msra.mxu0 %v260
      %493 = vmatprep.subr.mxu0 0.0
      %494 = vmatpush1.msra.mxu0 %v261
      %495 = vmatprep.subr.mxu0 0.0
      %496 = vmatpush1.msra.mxu0 %v262
      %497 = vmatprep.subr.mxu0 0.0
      %498 = vmatpush1.msra.mxu0 %v263
      %499 = vmatprep.subr.mxu0 0.0
      %500 = vmatpush1.msra.mxu0 %v264
      %501 = vmatprep.subr.mxu0 0.0
      %502 = vmatpush1.msra.mxu0 %v265
      %503 = vmatprep.subr.mxu0 0.0
      %504 = vmatpush1.msra.mxu0 %v266
      %505 = vmatprep.subr.mxu0 0.0
      %506 = vmatpush1.msra.mxu0 %v267
      %507 = vmatprep.subr.mxu0 0.0
      %508 = vmatpush1.msra.mxu0 %v268
      %509 = vmatprep.subr.mxu0 0.0
      %510 = vmatpush1.msra.mxu0 %v269
      %511 = vmatprep.subr.mxu0 0.0
      %512 = vmatpush1.msra.mxu0 %v270
      %513 = vmatprep.subr.mxu0 0.0
      %514 = vmatpush1.msra.mxu0 %v271
      %515 = vmatprep.subr.mxu0 0.0
      %516 = vmatpush1.msra.mxu0 %v272
      %517 = vmatprep.subr.mxu0 0.0
      %518 = vmatpush1.msra.mxu0 %v273
      %519 = vmatprep.subr.mxu0 0.0
      %520 = vmatpush1.msra.mxu0 %v274
      %521 = vmatprep.subr.mxu0 0.0
      %522 = vmatpush1.msra.mxu0 %v275
      %523 = vmatprep.mubr.f32.mxu0 %v422
      %524 = vmatmul.mubr.f32.gmra.mrb[0].mxu0 %v414
      %v525 = vpop.f32.mrb[0].mxu0
      %v526 = vadd.f32 0.0, %v525
      %v527 = vpop.f32.mrb[0].mxu0
      %528 = vdwg.mxu0
      %529 = vmatprep.subr.mxu0 0.0
      %530 = vmatpush1.msra.mxu0 %v276
      %531 = vmatprep.subr.mxu0 0.0
      %532 = vmatpush1.msra.mxu0 %v277
      %533 = vmatprep.subr.mxu0 0.0
      %534 = vmatpush1.msra.mxu0 %v278
      %535 = vmatprep.subr.mxu0 0.0
      %536 = vmatpush1.msra.mxu0 %v279
      %537 = vmatprep.subr.mxu0 0.0
      %538 = vmatpush1.msra.mxu0 %v280
      %539 = vmatprep.subr.mxu0 0.0
      %540 = vmatpush1.msra.mxu0 %v281
      %541 = vmatprep.subr.mxu0 0.0
      %542 = vmatpush1.msra.mxu0 %v282
      %543 = vmatprep.subr.mxu0 0.0
      %544 = vmatpush1.msra.mxu0 %v283
      %545 = vmatprep.subr.mxu0 0.0
      %546 = vmatpush1.msra.mxu0 %v284
      %547 = vmatprep.subr.mxu0 0.0
      %548 = vmatpush1.msra.mxu0 %v285
      %549 = vmatprep.subr.mxu0 0.0
      %550 = vmatpush1.msra.mxu0 %v286
      %551 = vmatprep.subr.mxu0 0.0
      %552 = vmatpush1.msra.mxu0 %v287
      %553 = vmatprep.subr.mxu0 0.0
      %554 = vmatpush1.msra.mxu0 %v288
      %555 = vmatprep.subr.mxu0 0.0
      %556 = vmatpush1.msra.mxu0 %v289
      %557 = vmatprep.subr.mxu0 0.0
      %558 = vmatpush1.msra.mxu0 %v290
      %559 = vmatprep.subr.mxu0 0.0
      %560 = vmatpush1.msra.mxu0 %v291
      %561 = vmatprep.subr.mxu0 0.0
      %562 = vmatpush1.msra.mxu0 %v292
      %563 = vmatprep.subr.mxu0 0.0
      %564 = vmatpush1.msra.mxu0 %v293
      %565 = vmatprep.subr.mxu0 0.0
      %566 = vmatpush1.msra.mxu0 %v294
      %567 = vmatprep.subr.mxu0 0.0
      %568 = vmatpush1.msra.mxu0 %v295
      %569 = vmatprep.subr.mxu0 0.0
      %570 = vmatpush1.msra.mxu0 %v296
      %571 = vmatprep.subr.mxu0 0.0
      %572 = vmatpush1.msra.mxu0 %v297
      %573 = vmatprep.subr.mxu0 0.0
      %574 = vmatpush1.msra.mxu0 %v298
      %575 = vmatprep.subr.mxu0 0.0
      %576 = vmatpush1.msra.mxu0 %v299
      %577 = vmatprep.subr.mxu0 0.0
      %578 = vmatpush1.msra.mxu0 %v300
      %579 = vmatprep.subr.mxu0 0.0
      %580 = vmatpush1.msra.mxu0 %v301
      %581 = vmatprep.subr.mxu0 0.0
      %582 = vmatpush1.msra.mxu0 %v302
      %583 = vmatprep.subr.mxu0 0.0
      %584 = vmatpush1.msra.mxu0 %v303
      %585 = vmatprep.subr.mxu0 0.0
      %586 = vmatpush1.msra.mxu0 %v304
      %587 = vmatprep.subr.mxu0 0.0
      %588 = vmatpush1.msra.mxu0 %v305
      %589 = vmatprep.subr.mxu0 0.0
      %590 = vmatpush1.msra.mxu0 %v306
      %591 = vmatprep.subr.mxu0 0.0
      %592 = vmatpush1.msra.mxu0 %v307
      %593 = vmatprep.mubr.f32.mxu0 %v423
      %594 = vmatmul.mubr.f32.gmra.mrb[0].mxu0 %v421
      %v595 = vpop.f32.mrb[0].mxu0
      %v596 = vadd.f32 %v526, %v595
      %v597 = vpop.f32.mrb[0].mxu0
      %598 = vdwg.mxu0
      %599 = vmatprep.subr.mxu0 0.0
      %600 = vmatpush1.msra.mxu0 %v308
      %601 = vmatprep.subr.mxu0 0.0
      %602 = vmatpush1.msra.mxu0 %v309
      %603 = vmatprep.subr.mxu0 0.0
      %604 = vmatpush1.msra.mxu0 %v310
      %605 = vmatprep.subr.mxu0 0.0
      %606 = vmatpush1.msra.mxu0 %v311
      %607 = vmatprep.subr.mxu0 0.0
      %608 = vmatpush1.msra.mxu0 %v312
      %609 = vmatprep.subr.mxu0 0.0
      %610 = vmatpush1.msra.mxu0 %v313
      %611 = vmatprep.subr.mxu0 0.0
      %612 = vmatpush1.msra.mxu0 %v314
      %613 = vmatprep.subr.mxu0 0.0
      %614 = vmatpush1.msra.mxu0 %v315
      %615 = vmatprep.subr.mxu0 0.0
      %616 = vmatpush1.msra.mxu0 %v316
      %617 = vmatprep.subr.mxu0 0.0
      %618 = vmatpush1.msra.mxu0 %v317
      %619 = vmatprep.subr.mxu0 0.0
      %620 = vmatpush1.msra.mxu0 %v318
      %621 = vmatprep.subr.mxu0 0.0
      %622 = vmatpush1.msra.mxu0 %v319
      %623 = vmatprep.subr.mxu0 0.0
      %624 = vmatpush1.msra.mxu0 %v320
      %625 = vmatprep.subr.mxu0 0.0
      %626 = vmatpush1.msra.mxu0 %v321
      %627 = vmatprep.subr.mxu0 0.0
      %628 = vmatpush1.msra.mxu0 %v322
      %629 = vmatprep.subr.mxu0 0.0
      %630 = vmatpush1.msra.mxu0 %v323
      %631 = vmatprep.subr.mxu0 0.0
      %632 = vmatpush1.msra.mxu0 %v324
      %633 = vmatprep.subr.mxu0 0.0
      %634 = vmatpush1.msra.mxu0 %v325
      %635 = vmatprep.subr.mxu0 0.0
      %636 = vmatpush1.msra.mxu0 %v326
      %637 = vmatprep.subr.mxu0 0.0
      %638 = vmatpush1.msra.mxu0 %v327
      %639 = vmatprep.subr.mxu0 0.0
      %640 = vmatpush1.msra.mxu0 %v328
      %641 = vmatprep.subr.mxu0 0.0
      %642 = vmatpush1.msra.mxu0 %v329
      %643 = vmatprep.subr.mxu0 0.0
      %644 = vmatpush1.msra.mxu0 %v330
      %645 = vmatprep.subr.mxu0 0.0
      %646 = vmatpush1.msra.mxu0 %v331
      %647 = vmatprep.subr.mxu0 0.0
      %648 = vmatpush1.msra.mxu0 %v332
      %649 = vmatprep.subr.mxu0 0.0
      %650 = vmatpush1.msra.mxu0 %v333
      %651 = vmatprep.subr.mxu0 0.0
      %652 = vmatpush1.msra.mxu0 %v334
      %653 = vmatprep.subr.mxu0 0.0
      %654 = vmatpush1.msra.mxu0 %v335
      %655 = vmatprep.subr.mxu0 0.0
      %656 = vmatpush1.msra.mxu0 %v336
      %657 = vmatprep.subr.mxu0 0.0
      %658 = vmatpush1.msra.mxu0 %v337
      %659 = vmatprep.subr.mxu0 0.0
      %660 = vmatpush1.msra.mxu0 %v338
      %661 = vmatprep.subr.mxu0 0.0
      %662 = vmatpush1.msra.mxu0 %v339
      %663 = vmatprep.mubr.f32.mxu0 %v439
      %664 = vmatmul.mubr.f32.gmra.mrb[0].mxu0 %v431
      %v665 = vpop.f32.mrb[0].mxu0
      %v666 = vadd.f32 %v596, %v665
      %v667 = vpop.f32.mrb[0].mxu0
      %668 = vdwg.mxu0
      %669 = vmatprep.subr.mxu0 0.0
      %670 = vmatpush1.msra.mxu0 %v340
      %671 = vmatprep.subr.mxu0 0.0
      %672 = vmatpush1.msra.mxu0 %v341
      %673 = vmatprep.subr.mxu0 0.0
      %674 = vmatpush1.msra.mxu0 %v342
      %675 = vmatprep.subr.mxu0 0.0
      %676 = vmatpush1.msra.mxu0 %v343
      %677 = vmatprep.subr.mxu0 0.0
      %678 = vmatpush1.msra.mxu0 %v344
      %679 = vmatprep.subr.mxu0 0.0
      %680 = vmatpush1.msra.mxu0 %v345
      %681 = vmatprep.subr.mxu0 0.0
      %682 = vmatpush1.msra.mxu0 %v346
      %683 = vmatprep.subr.mxu0 0.0
      %684 = vmatpush1.msra.mxu0 %v347
      %685 = vmatprep.subr.mxu0 0.0
      %686 = vmatpush1.msra.mxu0 %v348
      %687 = vmatprep.subr.mxu0 0.0
      %688 = vmatpush1.msra.mxu0 %v349
      %689 = vmatprep.subr.mxu0 0.0
      %690 = vmatpush1.msra.mxu0 %v350
      %691 = vmatprep.subr.mxu0 0.0
      %692 = vmatpush1.msra.mxu0 %v351
      %693 = vmatprep.subr.mxu0 0.0
      %694 = vmatpush1.msra.mxu0 %v352
      %695 = vmatprep.subr.mxu0 0.0
      %696 = vmatpush1.msra.mxu0 %v353
      %697 = vmatprep.subr.mxu0 0.0
      %698 = vmatpush1.msra.mxu0 %v354
      %699 = vmatprep.subr.mxu0 0.0
      %700 = vmatpush1.msra.mxu0 %v355
      %701 = vmatprep.subr.mxu0 0.0
      %702 = vmatpush1.msra.mxu0 %v356
      %703 = vmatprep.subr.mxu0 0.0
      %704 = vmatpush1.msra.mxu0 %v357
      %705 = vmatprep.subr.mxu0 0.0
      %706 = vmatpush1.msra.mxu0 %v358
      %707 = vmatprep.subr.mxu0 0.0
      %708 = vmatpush1.msra.mxu0 %v359
      %709 = vmatprep.subr.mxu0 0.0
      %710 = vmatpush1.msra.mxu0 %v360
      %711 = vmatprep.subr.mxu0 0.0
      %712 = vmatpush1.msra.mxu0 %v361
      %713 = vmatprep.subr.mxu0 0.0
      %714 = vmatpush1.msra.mxu0 %v362
      %715 = vmatprep.subr.mxu0 0.0
      %716 = vmatpush1.msra.mxu0 %v363
      %717 = vmatprep.subr.mxu0 0.0
      %718 = vmatpush1.msra.mxu0 %v364
      %719 = vmatprep.subr.mxu0 0.0
      %720 = vmatpush1.msra.mxu0 %v365
      %721 = vmatprep.subr.mxu0 0.0
      %722 = vmatpush1.msra.mxu0 %v366
      %723 = vmatprep.subr.mxu0 0.0
      %724 = vmatpush1.msra.mxu0 %v367
      %725 = vmatprep.subr.mxu0 0.0
      %726 = vmatpush1.msra.mxu0 %v368
      %727 = vmatprep.subr.mxu0 0.0
      %728 = vmatpush1.msra.mxu0 %v369
      %729 = vmatprep.subr.mxu0 0.0
      %730 = vmatpush1.msra.mxu0 %v370
      %731 = vmatprep.subr.mxu0 0.0
      %732 = vmatpush1.msra.mxu0 %v371
      %733 = vmatprep.mubr.f32.mxu0 %v440
      %734 = vmatmul.mubr.f32.gmra.mrb[0].mxu0 %v438
      %v735 = vpop.f32.mrb[0].mxu0
      %v736 = vadd.f32 %v666, %v735
      %v737 = vpop.f32.mrb[0].mxu0
      %738 = vdwg.mxu0
      %739 = vmatprep.subr.mxu0 0.0
      %740 = vmatpush1.msra.mxu0 %v372
      %741 = vmatprep.subr.mxu0 0.0
      %742 = vmatpush1.msra.mxu0 %v373
      %743 = vmatprep.subr.mxu0 0.0
      %744 = vmatpush1.msra.mxu0 %v374
      %745 = vmatprep.subr.mxu0 0.0
      %746 = vmatpush1.msra.mxu0 %v375
      %747 = vmatprep.subr.mxu0 0.0
      %748 = vmatpush1.msra.mxu0 %v376
      %749 = vmatprep.subr.mxu0 0.0
      %750 = vmatpush1.msra.mxu0 %v377
      %751 = vmatprep.subr.mxu0 0.0
      %752 = vmatpush1.msra.mxu0 %v378
      %753 = vmatprep.subr.mxu0 0.0
      %754 = vmatpush1.msra.mxu0 %v379
      %755 = vmatprep.subr.mxu0 0.0
      %756 = vmatpush1.msra.mxu0 %v380
      %757 = vmatprep.subr.mxu0 0.0
      %758 = vmatpush1.msra.mxu0 %v381
      %759 = vmatprep.subr.mxu0 0.0
      %760 = vmatpush1.msra.mxu0 %v382
      %761 = vmatprep.subr.mxu0 0.0
      %762 = vmatpush1.msra.mxu0 %v383
      %763 = vmatprep.subr.mxu0 0.0
      %764 = vmatpush1.msra.mxu0 %v384
      %765 = vmatprep.subr.mxu0 0.0
      %766 = vmatpush1.msra.mxu0 %v385
      %767 = vmatprep.subr.mxu0 0.0
      %768 = vmatpush1.msra.mxu0 %v386
      %769 = vmatprep.subr.mxu0 0.0
      %770 = vmatpush1.msra.mxu0 %v387
      %771 = vmatprep.subr.mxu0 0.0
      %772 = vmatpush1.msra.mxu0 %v388
      %773 = vmatprep.subr.mxu0 0.0
      %774 = vmatpush1.msra.mxu0 %v389
      %775 = vmatprep.subr.mxu0 0.0
      %776 = vmatpush1.msra.mxu0 %v390
      %777 = vmatprep.subr.mxu0 0.0
      %778 = vmatpush1.msra.mxu0 %v391
      %779 = vmatprep.subr.mxu0 0.0
      %780 = vmatpush1.msra.mxu0 %v392
      %781 = vmatprep.subr.mxu0 0.0
      %782 = vmatpush1.msra.mxu0 %v393
      %783 = vmatprep.subr.mxu0 0.0
      %784 = vmatpush1.msra.mxu0 %v394
      %785 = vmatprep.subr.mxu0 0.0
      %786 = vmatpush1.msra.mxu0 %v395
      %787 = vmatprep.subr.mxu0 0.0
      %788 = vmatpush1.msra.mxu0 %v396
      %789 = vmatprep.subr.mxu0 0.0
      %790 = vmatpush1.msra.mxu0 %v397
      %791 = vmatprep.subr.mxu0 0.0
      %792 = vmatpush1.msra.mxu0 %v398
      %793 = vmatprep.subr.mxu0 0.0
      %794 = vmatpush1.msra.mxu0 %v399
      %795 = vmatprep.subr.mxu0 0.0
      %796 = vmatpush1.msra.mxu0 %v400
      %797 = vmatprep.subr.mxu0 0.0
      %798 = vmatpush1.msra.mxu0 %v401
      %799 = vmatprep.subr.mxu0 0.0
      %800 = vmatpush1.msra.mxu0 %v402
      %801 = vmatprep.subr.mxu0 0.0
      %802 = vmatpush1.msra.mxu0 %v403
      %803 = vmatprep.mubr.f32.mxu0 %v448
      %804 = vmatmul.mubr.f32.gmra.mrb[0].mxu0 %v447
      %v805 = vpop.f32.mrb[0].mxu0
      %v806 = vadd.f32 %v736, %v805
      %v807 = vpop.f32.mrb[0].mxu0
      %808 = vdwg.mxu0
      %v809 = vadd.f32 %v240, %v806
      %vm810 = vcmask 517120
      %811 = vst.msk [vmem:[#allocation2] sm:$0x3] %vm810, %v809
      %p812 = scmp.eq.s32.totalorder %s16, 4
      // Predicated region
      $region45: #{ppo_forward.7} parent=39 // pred_check
        %p813 = pneg %p812
      $region46: #{ppo_forward.7} parent=39 // pred_check_branch
        %815 = sbr.rel (%p813) target = $region48
      $region47: #{ppo_forward.7} parent=39 // pred_region
        %v816 = vld [vmem:[#allocation2] sm:$0x3]
        %v817 = vld [vmem:[%s2] sm:$0x1]
        %v819 = vlaneseq
        %v820 = vshrl.u32 %v819, 7
        %v821 = vsub.s32 0, %v820
        %v822 = vrot.slane %v817, %v821
        %v824 = vadd.f32 %v816, %v822
        %v825 = vmax.f32 %v824, 0.0
        %v826 = vld [vmem:[%s3] sm:$0xff]
        %v827 = vld [vmem:[%s3 + $0x8] sm:$0xff]
        %v828 = vld [vmem:[%s3 + $0x10] sm:$0xff]
        %v829 = vld [vmem:[%s3 + $0x18] sm:$0xff]
        %v830 = vld [vmem:[%s3 + $0x20] sm:$0xff]
        %v831 = vld [vmem:[%s3 + $0x28] sm:$0xff]
        %v832 = vld [vmem:[%s3 + $0x30] sm:$0xff]
        %v833 = vld [vmem:[%s3 + $0x38] sm:$0xff]
        %v834 = vld [vmem:[%s4] sm:$0x1]
        %v836 = vlaneseq
        %v837 = vshrl.u32 %v836, 7
        %v838 = vsub.s32 0, %v837
        %v839 = vrot.slane %v834, %v838
        %vm841 = vcmask 523264
        %v843 = vsel %vm841, %v825, 0
        %845 = vmatprep.subr.mxu0 0.0
        %846 = vmatpush1.msra.mxu0 %v826
        %847 = vmatprep.subr.mxu0 0.0
        %848 = vmatpush1.msra.mxu0 %v827
        %849 = vmatprep.subr.mxu0 0.0
        %850 = vmatpush1.msra.mxu0 %v828
        %851 = vmatprep.subr.mxu0 0.0
        %852 = vmatpush1.msra.mxu0 %v829
        %853 = vmatprep.subr.mxu0 0.0
        %854 = vmatpush1.msra.mxu0 %v830
        %855 = vmatprep.subr.mxu0 0.0
        %856 = vmatpush1.msra.mxu0 %v831
        %857 = vmatprep.subr.mxu0 0.0
        %858 = vmatpush1.msra.mxu0 %v832
        %859 = vmatprep.subr.mxu0 0.0
        %860 = vmatpush1.msra.mxu0 %v833
        %861 = vmatprep.subr.mxu0 0.0
        %862 = vmatpush1.msra.mxu0 0.0
        %863 = vmatprep.subr.mxu0 0.0
        %864 = vmatpush1.msra.mxu0 0.0
        %865 = vmatprep.subr.mxu0 0.0
        %866 = vmatpush1.msra.mxu0 0.0
        %867 = vmatprep.subr.mxu0 0.0
        %868 = vmatpush1.msra.mxu0 0.0
        %869 = vmatprep.subr.mxu0 0.0
        %870 = vmatpush1.msra.mxu0 0.0
        %871 = vmatprep.subr.mxu0 0.0
        %872 = vmatpush1.msra.mxu0 0.0
        %873 = vmatprep.subr.mxu0 0.0
        %874 = vmatpush1.msra.mxu0 0.0
        %875 = vmatprep.subr.mxu0 0.0
        %876 = vmatpush1.msra.mxu0 0.0
        %877 = vmatprep.subr.mxu0 0.0
        %878 = vmatpush1.msra.mxu0 0.0
        %879 = vmatprep.subr.mxu0 0.0
        %880 = vmatpush1.msra.mxu0 0.0
        %881 = vmatprep.subr.mxu0 0.0
        %882 = vmatpush1.msra.mxu0 0.0
        %883 = vmatprep.subr.mxu0 0.0
        %884 = vmatpush1.msra.mxu0 0.0
        %885 = vmatprep.subr.mxu0 0.0
        %886 = vmatpush1.msra.mxu0 0.0
        %887 = vmatprep.subr.mxu0 0.0
        %888 = vmatpush1.msra.mxu0 0.0
        %889 = vmatprep.subr.mxu0 0.0
        %890 = vmatpush1.msra.mxu0 0.0
        %891 = vmatprep.subr.mxu0 0.0
        %892 = vmatpush1.msra.mxu0 0.0
        %893 = vmatprep.subr.mxu0 0.0
        %894 = vmatpush1.msra.mxu0 0.0
        %895 = vmatprep.subr.mxu0 0.0
        %896 = vmatpush1.msra.mxu0 0.0
        %897 = vmatprep.subr.mxu0 0.0
        %898 = vmatpush1.msra.mxu0 0.0
        %899 = vmatprep.subr.mxu0 0.0
        %900 = vmatpush1.msra.mxu0 0.0
        %901 = vmatprep.subr.mxu0 0.0
        %902 = vmatpush1.msra.mxu0 0.0
        %903 = vmatprep.subr.mxu0 0.0
        %904 = vmatpush1.msra.mxu0 0.0
        %905 = vmatprep.subr.mxu0 0.0
        %906 = vmatpush1.msra.mxu0 0.0
        %907 = vmatprep.subr.mxu0 0.0
        %908 = vmatpush1.msra.mxu0 0.0
        %909 = vmatprep.mubr.f32.mxu0 0.0
        %910 = vmatmul.mubr.f32.gmra.mrb[0].mxu0 %v843
        %v911 = vpop.f32.mrb[0].mxu0
        %v912 = vadd.f32 %v839, %v911
        %v913 = vpop.f32.mrb[0].mxu0
        %914 = vdwg.mxu0
        %915 = vst [vmem:[%s5] sm:$0x3] %v912
      $region48: #{ppo_forward.7} parent=39 // pred_fallthru
        _
      // Predicated region
      $region49: #{ppo_forward.7} parent=39 // pred_check
        %p916 = pneg %p144
      $region50: #{ppo_forward.7} parent=39 // pred_check_branch
        %918 = sbr.rel (%p916) target = $region52
      $region51: #{ppo_forward.7} parent=39 // pred_region
        _
      $region52: #{ppo_forward.7} parent=39 // pred_fallthru
        _
      // Predicated region
      $region53: #{ppo_forward.7} parent=39 // pred_check
        %p919 = pneg %p144
      $region54: #{ppo_forward.7} parent=39 // pred_check_branch
        %921 = sbr.rel (%p919) target = $region56
      $region55: #{ppo_forward.7} parent=39 // pred_region
        _
      $region56: #{ppo_forward.7} parent=39 // pred_fallthru
        _
    $region40: #{ppo_forward.7} parent=5 // pred_fallthru
      _
    %p922 = scmp.le.s32.totalorder 2, %s11
    // Predicated region
    $region57: #{ppo_forward.7} parent=5 // pred_check
      %p923 = pneg %p922
    $region58: #{ppo_forward.7} parent=5 // pred_check_branch
      %925 = sbr.rel (%p923) target = $region60
    $region59: #{ppo_forward.7} parent=5 // pred_region
      %s926 = ssub.s32 %s11, 2
    $region60: #{ppo_forward.7} parent=5 // pred_fallthru
      _
  $region6: #{ppo_forward.7} parent=0 // loop_footer
    %s15 = sadd.s32 1, %s11
  $region7: #{ppo_forward.7} parent=0 // loop_footer_branch
    %10 = sbr.rel target = $region3
  $region8: #{ppo_forward.7} parent=0 // loop_exit
    _

</llo_original>
